<compile_context>
chip_gen: v6e
topology: v6e:2x2x1
jax: 0.10.0
libtpu: 0.0.40
codegen_flags: <defaults>
</compile_context>

<pallas_src>
import functools
import math

import jax
import jax.numpy as jnp
from jax import lax
from jax.experimental import pallas as pl
from jax.experimental.pallas import tpu as pltpu


def _round_up(x, m):
    return (x + m - 1) // m * m


# ----------------------------------------------------------------------------
# One-time parameter repack (hoisted out of the per-call path).
# ----------------------------------------------------------------------------
def pack_gru_params(w_ih, w_hh, b_ih, b_hh, *, proj_dtype=jnp.bfloat16,
                    rec_dtype=jnp.float32):
    """Repack torch.nn.GRU weights (3H,I)/(3H,H)/(3H,) into gate-aligned,
    lane-dense TPU layouts.  Call once per parameter set and reuse."""
    f32 = jnp.float32
    w_ih = jnp.asarray(w_ih, f32)
    w_hh = jnp.asarray(w_hh, f32)
    b_ih = jnp.asarray(b_ih, f32)
    b_hh = jnp.asarray(b_hh, f32)

    H = w_hh.shape[1]
    I = w_ih.shape[1]
    Hp = _round_up(max(H, 128), 128)   # lane-dense hidden dim
    Ip = _round_up(max(I, 8), 8)       # sublane-aligned input dim

    # Gate-aligned layout: gate g (r,z,n) owns lanes [g*Hp, g*Hp + H); padding
    # is exactly zero so padded lanes stay at h == 0 forever (h_0 == 0).
    wih_ga = jnp.zeros((Ip, 3 * Hp), f32)
    whh_ga = jnp.zeros((Hp, 3 * Hp), f32)
    for g in range(3):
        wih_ga = wih_ga.at[:I, g * Hp:g * Hp + H].set(w_ih[g * H:(g + 1) * H, :].T)
        whh_ga = whh_ga.at[:H, g * Hp:g * Hp + H].set(w_hh[g * H:(g + 1) * H, :].T)

    # Fold biases: b_ih fully + r/z thirds of b_hh into the projection; only
    # the n-gate third of b_hh must stay inside r*(...) in the recurrence.
    bias_fold = jnp.zeros((1, 3 * Hp), f32)
    bias_fold = bias_fold.at[0, 0:H].set(b_ih[0:H] + b_hh[0:H])
    bias_fold = bias_fold.at[0, Hp:Hp + H].set(b_ih[H:2 * H] + b_hh[H:2 * H])
    bias_fold = bias_fold.at[0, 2 * Hp:2 * Hp + H].set(b_ih[2 * H:3 * H])
    bhn = jnp.zeros((1, Hp), f32).at[0, 0:H].set(b_hh[2 * H:3 * H])

    return {
        "wih": wih_ga.astype(proj_dtype),
        "whh": whh_ga.astype(rec_dtype),
        "bias": bias_fold,
        "bhn": bhn,
        "H": H, "I": I, "Hp": Hp, "Ip": Ip,
        "proj_dtype": jnp.dtype(proj_dtype),
        "rec_dtype": jnp.dtype(rec_dtype),
    }


# ----------------------------------------------------------------------------
# Fused kernel: per-block input projection (MXU) + time-blocked recurrence.
# ----------------------------------------------------------------------------
def _gru_fused_kernel(x_ref, wih_ref, bias_ref, whh_ref, bhn_ref, out_ref,
                      h_ref, gi_ref, *, t_blk, bb, hp, unroll,
                      proj_dtype, rec_dtype):
    # x_ref   : (t_blk*bb, Ip)    input slab for this (batch-block, time-block)
    # wih_ref : (Ip, 3*Hp)        gate-aligned W_ih^T        [grid-invariant]
    # bias_ref: (1, 3*Hp)         folded bias                [grid-invariant]
    # whh_ref : (Hp, 3*Hp)        gate-aligned W_hh^T        [grid-invariant]
    # bhn_ref : (1, Hp)           n-gate third of b_hh       [grid-invariant]
    # out_ref : (t_blk*bb, Hp)    lane-dense output slab
    # h_ref   : (bb, Hp) f32      VMEM scratch: h carried across time blocks
    # gi_ref  : (t_blk*bb, 3*Hp)  VMEM scratch: fused input projection (no HBM)

    @pl.when(pl.program_id(1) == 0)      # first time block of this batch block
    def _():
        h_ref[...] = jnp.zeros_like(h_ref)   # PyTorch default: h_0 = zeros

    # Fused input projection: one big MXU matmul, result stays in VMEM.
    x = x_ref[...].astype(proj_dtype)
    gi = jnp.dot(x, wih_ref[...], preferred_element_type=jnp.float32)
    gi_ref[...] = gi + bias_ref[...]

    # Hoist broadcasts / resident loads out of the per-timestep loop.
    bhn = jnp.broadcast_to(bhn_ref[...], (bb, hp))     # (bb, Hp) f32
    whh = whh_ref[...]                                 # (Hp, 3*Hp)

    def step(i, h):
        row = pl.multiple_of(i * bb, 8)                # sublane-aligned offset
        gi_i = gi_ref[pl.ds(row, bb), :]               # (bb, 3*Hp) f32
        gh = jnp.dot(h.astype(rec_dtype), whh,
                     preferred_element_type=jnp.float32)   # (bb, 3*Hp) f32
        # Gate slices are 128-lane aligned (hp multiple of 128) => free views.
        r = jax.nn.sigmoid(gi_i[:, 0:hp] + gh[:, 0:hp])
        z = jax.nn.sigmoid(gi_i[:, hp:2 * hp] + gh[:, hp:2 * hp])
        n = jnp.tanh(gi_i[:, 2 * hp:3 * hp] + r * (gh[:, 2 * hp:3 * hp] + bhn))
        h_new = (1.0 - z) * n + z * h
        out_ref[pl.ds(row, bb), :] = h_new.astype(out_ref.dtype)  # lane-dense
        return h_new

    h_final = lax.fori_loop(0, t_blk, step, h_ref[...], unroll=unroll)
    h_ref[...] = h_final


# ----------------------------------------------------------------------------
# Sizing helpers.
# ----------------------------------------------------------------------------
def _vmem_estimate_bytes(t_blk, bb, ip, hp, proj_bytes, rec_bytes):
    x_blk = t_blk * bb * ip * 4
    out_blk = t_blk * bb * hp * 4
    gi = t_blk * bb * 3 * hp * 4
    wts = ip * 3 * hp * proj_bytes + hp * 3 * hp * rec_bytes
    bias = (3 * hp + hp) * 4
    h = bb * hp * 4
    # worst case: x/out double-buffered, weights double-buffered (fallback path)
    return 2 * (x_blk + out_blk) + gi + 2 * (wts + bias) + h


def _choose_t_blk(T, bb, ip, hp, proj_bytes, rec_bytes,
                  budget_bytes=12 * 1024 * 1024):
    # Budget stays under v5e's 16 MiB scoped default; v6e/v7x have more room
    # but the serial stage is latency-bound, so bigger blocks buy little.
    t = min(max(T, 1), 64)
    while t > 8 and _vmem_estimate_bytes(t, bb, ip, hp, proj_bytes,
                                         rec_bytes) > budget_bytes:
        t //= 2
    return max(t, 1)


def _tensorcores_per_chip():
    # Best-effort query; only used to decide whether batch-splitting the serial
    # recurrence across TensorCores (v7x) is worthwhile.  Falls back to 1.
    try:
        info = pltpu.get_tpu_info()
        for attr in ("tensorcores_per_chip", "num_cores", "core_count",
                     "num_tensorcores"):
            v = getattr(info, attr, None)
            if v:
                return int(v)
    except Exception:
        pass
    return 1


# ----------------------------------------------------------------------------
# Wrapper: single-layer unidirectional GRU, torch.nn.GRU semantics (h_0 = 0).
# ----------------------------------------------------------------------------
def gru_forward_pallas(x, packed, *, t_blk=None, batch_blocks=None):
    """x: (T, B, I) float; packed: dict from pack_gru_params().
    Returns (output (T, B, H) f32, h_n (B, H) f32)."""
    f32 = jnp.float32
    T, B, I = x.shape
    H, Hp, Ip = packed["H"], packed["Hp"], packed["Ip"]
    assert I == packed["I"], "input size mismatch with packed params"
    proj_dtype = packed["proj_dtype"]
    rec_dtype = packed["rec_dtype"]
    proj_bytes = jnp.dtype(proj_dtype).itemsize
    rec_bytes = jnp.dtype(rec_dtype).itemsize

    # Batch blocking: >=8 sublanes per block; 2 blocks + the leading "parallel"
    # grid axis lets v7x's second TensorCore run half the serial recurrence.
    if batch_blocks is None:
        batch_blocks = 2 if (B > 8 and _tensorcores_per_chip() >= 2) else 1
    n_b = max(int(batch_blocks), 1)
    Bp = _round_up(max(B, 8 * n_b), 8 * n_b)
    Bb = Bp // n_b

    if t_blk is None:
        t_blk = _choose_t_blk(T, Bb, Ip, Hp, proj_bytes, rec_bytes)
    t_blk = max(min(int(t_blk), max(T, 1)), 1)
    Tp = _round_up(T, t_blk)
    n_t = Tp // t_blk

    # Pad input to (Tp, Bp, Ip) and regroup into per-batch-block row slabs.
    x_pad = jnp.zeros((Tp, Bp, Ip), f32).at[:T, :B, :I].set(x.astype(f32))
    x_blocks = (x_pad.reshape(Tp, n_b, Bb, Ip)
                     .transpose(1, 0, 2, 3)
                     .reshape(n_b, Tp * Bb, Ip))

    unroll = int(min(t_blk, 16))
    vmem_limit = int(min(64 * 1024 * 1024,
                         max(16 * 1024 * 1024,
                             2 * _vmem_estimate_bytes(t_blk, Bb, Ip, Hp,
                                                      proj_bytes, rec_bytes))))

    kernel = functools.partial(
        _gru_fused_kernel, t_blk=t_blk, bb=Bb, hp=Hp, unroll=unroll,
        proj_dtype=proj_dtype, rec_dtype=rec_dtype)

    def const_spec(shape, single_buffer):
        idx = lambda b, t: (0,) * len(shape)
        if single_buffer:
            # Grid-invariant operand: one VMEM buffer instead of two.
            return pl.BlockSpec(shape, idx, pipeline_mode=pl.Buffered(1))
        return pl.BlockSpec(shape, idx)

    def run(single_buffer_weights):
        return pl.pallas_call(
            kernel,
            out_shape=jax.ShapeDtypeStruct((n_b, Tp * Bb, Hp), f32),
            grid_spec=pltpu.PrefetchScalarGridSpec(
                num_scalar_prefetch=0,
                grid=(n_b, n_t),
                in_specs=[
                    pl.BlockSpec((None, t_blk * Bb, Ip), lambda b, t: (b, t, 0)),
                    const_spec((Ip, 3 * Hp), single_buffer_weights),
                    const_spec((1, 3 * Hp), single_buffer_weights),
                    const_spec((Hp, 3 * Hp), single_buffer_weights),
                    const_spec((1, Hp), single_buffer_weights),
                ],
                out_specs=pl.BlockSpec((None, t_blk * Bb, Hp),
                                       lambda b, t: (b, t, 0)),
                scratch_shapes=[
                    pltpu.VMEM((Bb, Hp), jnp.float32),            # h carry
                    pltpu.VMEM((t_blk * Bb, 3 * Hp), jnp.float32),  # fused gi
                ],
            ),
            compiler_params=pltpu.CompilerParams(
                # batch axis parallel (megacore), time axis sequential.
                dimension_semantics=("parallel", "arbitrary"),
                vmem_limit_bytes=vmem_limit),
        )(x_blocks, packed["wih"], packed["bias"], packed["whh"], packed["bhn"])

    try:
        out_blocks = run(True)     # single-buffer grid-invariant weights
    except Exception:
        out_blocks = run(False)    # fallback: default double buffering

    out_full = (out_blocks.reshape(n_b, Tp, Bb, Hp)
                          .transpose(1, 0, 2, 3)
                          .reshape(Tp, Bp, Hp))
    out = out_full[:T, :B, :H]
    h_n = out[-1]
    return out, h_n


# ----------------------------------------------------------------------------
# Module analogue of Feature_Extractor_GRU.
# ----------------------------------------------------------------------------
class FeatureExtractorGRU:
    """Runs the wrapped GRU model and captures the hooked layer's
    output[0].squeeze() into self.features (forward-hook semantics)."""

    def __init__(self, params, layers=("gru",), proj_dtype=jnp.bfloat16,
                 rec_dtype=jnp.float32, t_blk=None, batch_blocks=None):
        # Weight repacking / bias folding hoisted here: done once, not per call.
        self._packed = pack_gru_params(
            params["w_ih"], params["w_hh"], params["b_ih"], params["b_hh"],
            proj_dtype=proj_dtype, rec_dtype=rec_dtype)
        self.layers = layers
        self.features = {}
        self._t_blk = t_blk
        self._batch_blocks = batch_blocks

    def forward(self, x):
        out, h_n = gru_forward_pallas(x, self._packed, t_blk=self._t_blk,
                                      batch_blocks=self._batch_blocks)
        # hook: features[name] = output[0].squeeze()
        # (nn.GRU returns (output, h_n); output[0] is the (T,B,H) sequence).
        for name in self.layers:
            self.features[name] = jnp.squeeze(out)
        return out, h_n


# ----------------------------------------------------------------------------
# Pure-JAX reference matching torch.nn.GRU (gate order r, z, n).
# ----------------------------------------------------------------------------
def _gru_reference(x, w_ih, w_hh, b_ih, b_hh):
    T, B, I = x.shape
    H = w_hh.shape[1]

    def step(h, x_t):
        gi = x_t @ w_ih.T + b_ih
        gh = h @ w_hh.T + b_hh
        i_r, i_z, i_n = gi[:, :H], gi[:, H:2 * H], gi[:, 2 * H:]
        h_r, h_z, h_n = gh[:, :H], gh[:, H:2 * H], gh[:, 2 * H:]
        r = jax.nn.sigmoid(i_r + h_r)
        z = jax.nn.sigmoid(i_z + h_z)
        n = jnp.tanh(i_n + r * h_n)
        h_new = (1.0 - z) * n + z * h
        return h_new, h_new

    h0 = jnp.zeros((B, H), jnp.float32)
    h_n, ys = jax.lax.scan(step, h0, x)
    return ys, h_n


if __name__ == "__main__":
    # Small shapes consistent with a GRU speech model:
    # seq=8 timesteps, batch=2, input_size=16 spectrogram bins, hidden=32.
    T, B, I, H = 8, 2, 16, 32

    key = jax.random.PRNGKey(0)
    kx, k1, k2, k3, k4, kx2, kx3 = jax.random.split(key, 7)

    x = jax.random.normal(kx, (T, B, I), dtype=jnp.float32)
    bound = 1.0 / math.sqrt(H)
    params = {
        "w_ih": jax.random.uniform(k1, (3 * H, I), jnp.float32, -bound, bound),
        "w_hh": jax.random.uniform(k2, (3 * H, H), jnp.float32, -bound, bound),
        "b_ih": jax.random.uniform(k3, (3 * H,), jnp.float32, -bound, bound),
        "b_hh": jax.random.uniform(k4, (3 * H,), jnp.float32, -bound, bound),
    }
    raw = (params["w_ih"], params["w_hh"], params["b_ih"], params["b_hh"])
    ref_out, ref_hn = _gru_reference(x, *raw)

    # --- check 1: all-f32 MXU path, tight tolerance --------------------------
    packed_f32 = pack_gru_params(*raw, proj_dtype=jnp.float32,
                                 rec_dtype=jnp.float32)
    out, h_n = gru_forward_pallas(x, packed_f32)
    out = jax.block_until_ready(out)
    h_n = jax.block_until_ready(h_n)
    assert out.shape == (T, B, H) and h_n.shape == (B, H)
    assert jnp.allclose(out, ref_out, atol=1e-5, rtol=1e-5)
    assert jnp.allclose(h_n, ref_hn, atol=1e-5, rtol=1e-5)

    # --- check 2: multi time-block path (T not a multiple of t_blk) ----------
    T2 = 20
    x2 = jax.random.normal(kx2, (T2, B, I), dtype=jnp.float32)
    ref_out2, ref_hn2 = _gru_reference(x2, *raw)
    out2, hn2 = gru_forward_pallas(x2, packed_f32, t_blk=8)
    out2 = jax.block_until_ready(out2)
    assert jnp.allclose(out2, ref_out2, atol=1e-5, rtol=1e-5)
    assert jnp.allclose(hn2, ref_hn2, atol=1e-5, rtol=1e-5)

    # --- check 3: batch-split path (2 batch blocks; v7x dual-TC layout) ------
    B3 = 16
    x3 = jax.random.normal(kx3, (T, B3, I), dtype=jnp.float32)
    ref_out3, ref_hn3 = _gru_reference(x3, *raw)
    out3, hn3 = gru_forward_pallas(x3, packed_f32, batch_blocks=2)
    out3 = jax.block_until_ready(out3)
    assert jnp.allclose(out3, ref_out3, atol=1e-5, rtol=1e-5)
    assert jnp.allclose(hn3, ref_hn3, atol=1e-5, rtol=1e-5)

    # --- check 4: default extractor (bf16 projection operands, f32 recurrent
    # matmul + f32 gate math/carry, per the correctness feedback) -------------
    extractor = FeatureExtractorGRU(params, layers=("gru",))
    out_d, hn_d = extractor.forward(x)
    out_d = jax.block_until_ready(out_d)
    assert jnp.allclose(out_d, ref_out, atol=2e-2, rtol=2e-2)
    assert jnp.allclose(hn_d, ref_hn, atol=2e-2, rtol=2e-2)
    assert extractor.features["gru"].shape == (T, B, H)

    # --- check 5: full-bf16 MXU operands (v6e/v7x), loose tolerance ----------
    packed_bf = pack_gru_params(*raw, proj_dtype=jnp.bfloat16,
                                rec_dtype=jnp.bfloat16)
    out_bf, hn_bf = gru_forward_pallas(x, packed_bf)
    out_bf = jax.block_until_ready(out_bf)
    assert jnp.allclose(out_bf, ref_out, atol=5e-2, rtol=5e-2)
    assert jnp.allclose(hn_bf, ref_hn, atol=5e-2, rtol=5e-2)

    print("KERNEL_OK")
</pallas_src>

<mosaic_0001>
module attributes {stable_mosaic.version = 11 : i64} {
  func.func @_gru_fused_kernel(%arg0: i32, %arg1: i32, %arg2: memref<1x64x16xf32, #tpu.memory_space<vmem>>, %arg3: memref<16x384xf32, #tpu.memory_space<vmem>>, %arg4: memref<1x384xf32, #tpu.memory_space<vmem>>, %arg5: memref<128x384xf32, #tpu.memory_space<vmem>>, %arg6: memref<1x128xf32, #tpu.memory_space<vmem>>, %arg7: memref<1x64x128xf32, #tpu.memory_space<vmem>>, %arg8: memref<8x128xf32, #tpu.memory_space<vmem>>, %arg9: memref<64x384xf32, #tpu.memory_space<vmem>>) attributes {dimension_semantics = [#tpu.dimension_semantics<parallel>, #tpu.dimension_semantics<arbitrary>], iteration_bounds = array<i64: 1, 1>, scalar_prefetch = 0 : i64, scratch_operands = 2 : i64, tpu.core_type = #tpu.core_type<tc>, window_params = [{transform_indices = @transform_0, window_bounds = array<i64: 1, 64, 16>}, {pipeline_mode = #tpu.pipeline_mode<synchronous>, transform_indices = @transform_1, window_bounds = array<i64: 16, 384>}, {pipeline_mode = #tpu.pipeline_mode<synchronous>, transform_indices = @transform_2, window_bounds = array<i64: 1, 384>}, {pipeline_mode = #tpu.pipeline_mode<synchronous>, transform_indices = @transform_3, window_bounds = array<i64: 128, 384>}, {pipeline_mode = #tpu.pipeline_mode<synchronous>, transform_indices = @transform_4, window_bounds = array<i64: 1, 128>}, {transform_indices = @transform_5, window_bounds = array<i64: 1, 64, 128>}]} {
    %c0_i32 = arith.constant 0 : i32
    %0 = arith.cmpi eq, %arg1, %c0_i32 : i32
    %1 = arith.extui %0 : i1 to i32
    %c0_i32_0 = arith.constant 0 : i32
    %2 = arith.cmpi ne, %1, %c0_i32_0 : i32
    scf.if %2 {
      %cst_82 = arith.constant 0.000000e+00 : f32
      %305 = vector.broadcast %cst_82 : f32 to vector<8x128xf32>
      %c0_83 = arith.constant 0 : index
      %c0_84 = arith.constant 0 : index
      %306 = vector.load %arg8[%c0_83, %c0_84] : memref<8x128xf32, #tpu.memory_space<vmem>>, vector<8x128xf32>
      tpu.vector_store %arg8[%c0_83, %c0_84], %305 {strides = array<i32>} : memref<8x128xf32, #tpu.memory_space<vmem>>, vector<8x128xf32>,
    } else {
    }
    %c0 = arith.constant 0 : index
    %c0_1 = arith.constant 0 : index
    %c0_2 = arith.constant 0 : index
    %3 = vector.load %arg2[%c0, %c0_1, %c0_2] : memref<1x64x16xf32, #tpu.memory_space<vmem>>, vector<1x64x16xf32>
    %4 = vector.shape_cast %3 : vector<1x64x16xf32> to vector<64x16xf32>
    %c0_3 = arith.constant 0 : index
    %c0_4 = arith.constant 0 : index
    %5 = vector.load %arg3[%c0_3, %c0_4] : memref<16x384xf32, #tpu.memory_space<vmem>>, vector<16x384xf32>
    %cst = arith.constant dense<0.000000e+00> : vector<64x384xf32>
    %6 = tpu.matmul %4, %5, %cst {dimension_numbers = #tpu.dot_dimension_numbers<[1], [0], [0], [1], [0, 0, 1, 1], [], []>} : vector<64x16xf32>, vector<16x384xf32>, vector<64x384xf32> -> vector<64x384xf32>
    %c0_5 = arith.constant 0 : index
    %c0_6 = arith.constant 0 : index
    %7 = vector.load %arg4[%c0_5, %c0_6] : memref<1x384xf32, #tpu.memory_space<vmem>>, vector<1x384xf32>
    %8 = vector.broadcast %7 : vector<1x384xf32> to vector<64x384xf32>
    %9 = arith.addf %6, %8 : vector<64x384xf32>
    %c0_7 = arith.constant 0 : index
    %c0_8 = arith.constant 0 : index
    %10 = vector.load %arg9[%c0_7, %c0_8] : memref<64x384xf32, #tpu.memory_space<vmem>>, vector<64x384xf32>
    tpu.vector_store %arg9[%c0_7, %c0_8], %9 {strides = array<i32>} : memref<64x384xf32, #tpu.memory_space<vmem>>, vector<64x384xf32>,
    %c0_9 = arith.constant 0 : index
    %c0_10 = arith.constant 0 : index
    %11 = vector.load %arg6[%c0_9, %c0_10] : memref<1x128xf32, #tpu.memory_space<vmem>>, vector<1x128xf32>
    %12 = vector.shape_cast %11 : vector<1x128xf32> to vector<1x128xf32>
    %13 = vector.broadcast %12 : vector<1x128xf32> to vector<8x128xf32>
    %c0_11 = arith.constant 0 : index
    %c0_12 = arith.constant 0 : index
    %14 = vector.load %arg5[%c0_11, %c0_12] : memref<128x384xf32, #tpu.memory_space<vmem>>, vector<128x384xf32>
    %c0_13 = arith.constant 0 : index
    %c0_14 = arith.constant 0 : index
    %15 = vector.load %arg8[%c0_13, %c0_14] : memref<8x128xf32, #tpu.memory_space<vmem>>, vector<8x128xf32>
    %c0_i32_15 = arith.constant 0 : i32
    %c8_i32 = arith.constant 8 : i32
    %16 = arith.muli %c0_i32_15, %c8_i32 : i32
    %17 = tpu.assume_multiple %16, 8 : i32
    %18 = arith.index_cast %17 : i32 to index
    %c0_16 = arith.constant 0 : index
    %19 = vector.load %arg9[%18, %c0_16] : memref<64x384xf32, #tpu.memory_space<vmem>>, vector<8x384xf32>
    %cst_17 = arith.constant dense<0.000000e+00> : vector<8x384xf32>
    %20 = tpu.matmul %15, %14, %cst_17 {dimension_numbers = #tpu.dot_dimension_numbers<[1], [0], [0], [1], [0, 0, 1, 1], [], []>} : vector<8x128xf32>, vector<128x384xf32>, vector<8x384xf32> -> vector<8x384xf32>
    %21 = vector.extract_strided_slice %19 {offsets = [0, 0], sizes = [8, 128], strides = [1, 1]} : vector<8x384xf32> to vector<8x128xf32>
    %22 = vector.extract_strided_slice %20 {offsets = [0, 0], sizes = [8, 128], strides = [1, 1]} : vector<8x384xf32> to vector<8x128xf32>
    %23 = arith.addf %21, %22 : vector<8x128xf32>
    %24 = arith.negf %23 : vector<8x128xf32>
    %25 = math.exp %24 : vector<8x128xf32>
    %cst_18 = arith.constant 1.000000e+00 : f32
    %26 = vector.broadcast %cst_18 : f32 to vector<8x128xf32>
    %27 = arith.addf %26, %25 : vector<8x128xf32>
    %28 = arith.divf %26, %27 : vector<8x128xf32>
    %29 = vector.extract_strided_slice %19 {offsets = [0, 128], sizes = [8, 128], strides = [1, 1]} : vector<8x384xf32> to vector<8x128xf32>
    %30 = vector.extract_strided_slice %20 {offsets = [0, 128], sizes = [8, 128], strides = [1, 1]} : vector<8x384xf32> to vector<8x128xf32>
    %31 = arith.addf %29, %30 : vector<8x128xf32>
    %32 = arith.negf %31 : vector<8x128xf32>
    %33 = math.exp %32 : vector<8x128xf32>
    %cst_19 = arith.constant 1.000000e+00 : f32
    %34 = vector.broadcast %cst_19 : f32 to vector<8x128xf32>
    %35 = arith.addf %34, %33 : vector<8x128xf32>
    %36 = arith.divf %34, %35 : vector<8x128xf32>
    %37 = vector.extract_strided_slice %19 {offsets = [0, 256], sizes = [8, 128], strides = [1, 1]} : vector<8x384xf32> to vector<8x128xf32>
    %38 = vector.extract_strided_slice %20 {offsets = [0, 256], sizes = [8, 128], strides = [1, 1]} : vector<8x384xf32> to vector<8x128xf32>
    %39 = arith.addf %38, %13 : vector<8x128xf32>
    %40 = arith.mulf %28, %39 : vector<8x128xf32>
    %41 = arith.addf %37, %40 : vector<8x128xf32>
    %42 = math.tanh %41 : vector<8x128xf32>
    %cst_20 = arith.constant 1.000000e+00 : f32
    %43 = vector.broadcast %cst_20 : f32 to vector<8x128xf32>
    %44 = arith.subf %43, %36 : vector<8x128xf32>
    %45 = arith.mulf %44, %42 : vector<8x128xf32>
    %46 = arith.mulf %36, %15 : vector<8x128xf32>
    %47 = arith.addf %45, %46 : vector<8x128xf32>
    %c0_21 = arith.constant 0 : index
    %48 = arith.index_cast %17 : i32 to index
    %c0_22 = arith.constant 0 : index
    %49 = vector.load %arg7[%c0_21, %48, %c0_22] : memref<1x64x128xf32, #tpu.memory_space<vmem>>, vector<1x8x128xf32>
    %50 = vector.shape_cast %49 : vector<1x8x128xf32> to vector<8x128xf32>
    %51 = vector.shape_cast %47 : vector<8x128xf32> to vector<1x8x128xf32>
    tpu.vector_store %arg7[%c0_21, %48, %c0_22], %51 {strides = array<i32>} : memref<1x64x128xf32, #tpu.memory_space<vmem>>, vector<1x8x128xf32>,
    %c1_i32 = arith.constant 1 : i32
    %c8_i32_23 = arith.constant 8 : i32
    %52 = arith.muli %c1_i32, %c8_i32_23 : i32
    %53 = tpu.assume_multiple %52, 8 : i32
    %54 = arith.index_cast %53 : i32 to index
    %c0_24 = arith.constant 0 : index
    %55 = vector.load %arg9[%54, %c0_24] : memref<64x384xf32, #tpu.memory_space<vmem>>, vector<8x384xf32>
    %cst_25 = arith.constant dense<0.000000e+00> : vector<8x384xf32>
    %56 = tpu.matmul %47, %14, %cst_25 {dimension_numbers = #tpu.dot_dimension_numbers<[1], [0], [0], [1], [0, 0, 1, 1], [], []>} : vector<8x128xf32>, vector<128x384xf32>, vector<8x384xf32> -> vector<8x384xf32>
    %57 = vector.extract_strided_slice %55 {offsets = [0, 0], sizes = [8, 128], strides = [1, 1]} : vector<8x384xf32> to vector<8x128xf32>
    %58 = vector.extract_strided_slice %56 {offsets = [0, 0], sizes = [8, 128], strides = [1, 1]} : vector<8x384xf32> to vector<8x128xf32>
    %59 = arith.addf %57, %58 : vector<8x128xf32>
    %60 = arith.negf %59 : vector<8x128xf32>
    %61 = math.exp %60 : vector<8x128xf32>
    %cst_26 = arith.constant 1.000000e+00 : f32
    %62 = vector.broadcast %cst_26 : f32 to vector<8x128xf32>
    %63 = arith.addf %62, %61 : vector<8x128xf32>
    %64 = arith.divf %62, %63 : vector<8x128xf32>
    %65 = vector.extract_strided_slice %55 {offsets = [0, 128], sizes = [8, 128], strides = [1, 1]} : vector<8x384xf32> to vector<8x128xf32>
    %66 = vector.extract_strided_slice %56 {offsets = [0, 128], sizes = [8, 128], strides = [1, 1]} : vector<8x384xf32> to vector<8x128xf32>
    %67 = arith.addf %65, %66 : vector<8x128xf32>
    %68 = arith.negf %67 : vector<8x128xf32>
    %69 = math.exp %68 : vector<8x128xf32>
    %cst_27 = arith.constant 1.000000e+00 : f32
    %70 = vector.broadcast %cst_27 : f32 to vector<8x128xf32>
    %71 = arith.addf %70, %69 : vector<8x128xf32>
    %72 = arith.divf %70, %71 : vector<8x128xf32>
    %73 = vector.extract_strided_slice %55 {offsets = [0, 256], sizes = [8, 128], strides = [1, 1]} : vector<8x384xf32> to vector<8x128xf32>
    %74 = vector.extract_strided_slice %56 {offsets = [0, 256], sizes = [8, 128], strides = [1, 1]} : vector<8x384xf32> to vector<8x128xf32>
    %75 = arith.addf %74, %13 : vector<8x128xf32>
    %76 = arith.mulf %64, %75 : vector<8x128xf32>
    %77 = arith.addf %73, %76 : vector<8x128xf32>
    %78 = math.tanh %77 : vector<8x128xf32>
    %cst_28 = arith.constant 1.000000e+00 : f32
    %79 = vector.broadcast %cst_28 : f32 to vector<8x128xf32>
    %80 = arith.subf %79, %72 : vector<8x128xf32>
    %81 = arith.mulf %80, %78 : vector<8x128xf32>
    %82 = arith.mulf %72, %47 : vector<8x128xf32>
    %83 = arith.addf %81, %82 : vector<8x128xf32>
    %c0_29 = arith.constant 0 : index
    %84 = arith.index_cast %53 : i32 to index
    %c0_30 = arith.constant 0 : index
    %85 = vector.load %arg7[%c0_29, %84, %c0_30] : memref<1x64x128xf32, #tpu.memory_space<vmem>>, vector<1x8x128xf32>
    %86 = vector.shape_cast %85 : vector<1x8x128xf32> to vector<8x128xf32>
    %87 = vector.shape_cast %83 : vector<8x128xf32> to vector<1x8x128xf32>
    tpu.vector_store %arg7[%c0_29, %84, %c0_30], %87 {strides = array<i32>} : memref<1x64x128xf32, #tpu.memory_space<vmem>>, vector<1x8x128xf32>,
    %c2_i32 = arith.constant 2 : i32
    %c8_i32_31 = arith.constant 8 : i32
    %88 = arith.muli %c2_i32, %c8_i32_31 : i32
    %89 = tpu.assume_multiple %88, 8 : i32
    %90 = arith.index_cast %89 : i32 to index
    %c0_32 = arith.constant 0 : index
    %91 = vector.load %arg9[%90, %c0_32] : memref<64x384xf32, #tpu.memory_space<vmem>>, vector<8x384xf32>
    %cst_33 = arith.constant dense<0.000000e+00> : vector<8x384xf32>
    %92 = tpu.matmul %83, %14, %cst_33 {dimension_numbers = #tpu.dot_dimension_numbers<[1], [0], [0], [1], [0, 0, 1, 1], [], []>} : vector<8x128xf32>, vector<128x384xf32>, vector<8x384xf32> -> vector<8x384xf32>
    %93 = vector.extract_strided_slice %91 {offsets = [0, 0], sizes = [8, 128], strides = [1, 1]} : vector<8x384xf32> to vector<8x128xf32>
    %94 = vector.extract_strided_slice %92 {offsets = [0, 0], sizes = [8, 128], strides = [1, 1]} : vector<8x384xf32> to vector<8x128xf32>
    %95 = arith.addf %93, %94 : vector<8x128xf32>
    %96 = arith.negf %95 : vector<8x128xf32>
    %97 = math.exp %96 : vector<8x128xf32>
    %cst_34 = arith.constant 1.000000e+00 : f32
    %98 = vector.broadcast %cst_34 : f32 to vector<8x128xf32>
    %99 = arith.addf %98, %97 : vector<8x128xf32>
    %100 = arith.divf %98, %99 : vector<8x128xf32>
    %101 = vector.extract_strided_slice %91 {offsets = [0, 128], sizes = [8, 128], strides = [1, 1]} : vector<8x384xf32> to vector<8x128xf32>
    %102 = vector.extract_strided_slice %92 {offsets = [0, 128], sizes = [8, 128], strides = [1, 1]} : vector<8x384xf32> to vector<8x128xf32>
    %103 = arith.addf %101, %102 : vector<8x128xf32>
    %104 = arith.negf %103 : vector<8x128xf32>
    %105 = math.exp %104 : vector<8x128xf32>
    %cst_35 = arith.constant 1.000000e+00 : f32
    %106 = vector.broadcast %cst_35 : f32 to vector<8x128xf32>
    %107 = arith.addf %106, %105 : vector<8x128xf32>
    %108 = arith.divf %106, %107 : vector<8x128xf32>
    %109 = vector.extract_strided_slice %91 {offsets = [0, 256], sizes = [8, 128], strides = [1, 1]} : vector<8x384xf32> to vector<8x128xf32>
    %110 = vector.extract_strided_slice %92 {offsets = [0, 256], sizes = [8, 128], strides = [1, 1]} : vector<8x384xf32> to vector<8x128xf32>
    %111 = arith.addf %110, %13 : vector<8x128xf32>
    %112 = arith.mulf %100, %111 : vector<8x128xf32>
    %113 = arith.addf %109, %112 : vector<8x128xf32>
    %114 = math.tanh %113 : vector<8x128xf32>
    %cst_36 = arith.constant 1.000000e+00 : f32
    %115 = vector.broadcast %cst_36 : f32 to vector<8x128xf32>
    %116 = arith.subf %115, %108 : vector<8x128xf32>
    %117 = arith.mulf %116, %114 : vector<8x128xf32>
    %118 = arith.mulf %108, %83 : vector<8x128xf32>
    %119 = arith.addf %117, %118 : vector<8x128xf32>
    %c0_37 = arith.constant 0 : index
    %120 = arith.index_cast %89 : i32 to index
    %c0_38 = arith.constant 0 : index
    %121 = vector.load %arg7[%c0_37, %120, %c0_38] : memref<1x64x128xf32, #tpu.memory_space<vmem>>, vector<1x8x128xf32>
    %122 = vector.shape_cast %121 : vector<1x8x128xf32> to vector<8x128xf32>
    %123 = vector.shape_cast %119 : vector<8x128xf32> to vector<1x8x128xf32>
    tpu.vector_store %arg7[%c0_37, %120, %c0_38], %123 {strides = array<i32>} : memref<1x64x128xf32, #tpu.memory_space<vmem>>, vector<1x8x128xf32>,
    %c3_i32 = arith.constant 3 : i32
    %c8_i32_39 = arith.constant 8 : i32
    %124 = arith.muli %c3_i32, %c8_i32_39 : i32
    %125 = tpu.assume_multiple %124, 8 : i32
    %126 = arith.index_cast %125 : i32 to index
    %c0_40 = arith.constant 0 : index
    %127 = vector.load %arg9[%126, %c0_40] : memref<64x384xf32, #tpu.memory_space<vmem>>, vector<8x384xf32>
    %cst_41 = arith.constant dense<0.000000e+00> : vector<8x384xf32>
    %128 = tpu.matmul %119, %14, %cst_41 {dimension_numbers = #tpu.dot_dimension_numbers<[1], [0], [0], [1], [0, 0, 1, 1], [], []>} : vector<8x128xf32>, vector<128x384xf32>, vector<8x384xf32> -> vector<8x384xf32>
    %129 = vector.extract_strided_slice %127 {offsets = [0, 0], sizes = [8, 128], strides = [1, 1]} : vector<8x384xf32> to vector<8x128xf32>
    %130 = vector.extract_strided_slice %128 {offsets = [0, 0], sizes = [8, 128], strides = [1, 1]} : vector<8x384xf32> to vector<8x128xf32>
    %131 = arith.addf %129, %130 : vector<8x128xf32>
    %132 = arith.negf %131 : vector<8x128xf32>
    %133 = math.exp %132 : vector<8x128xf32>
    %cst_42 = arith.constant 1.000000e+00 : f32
    %134 = vector.broadcast %cst_42 : f32 to vector<8x128xf32>
    %135 = arith.addf %134, %133 : vector<8x128xf32>
    %136 = arith.divf %134, %135 : vector<8x128xf32>
    %137 = vector.extract_strided_slice %127 {offsets = [0, 128], sizes = [8, 128], strides = [1, 1]} : vector<8x384xf32> to vector<8x128xf32>
    %138 = vector.extract_strided_slice %128 {offsets = [0, 128], sizes = [8, 128], strides = [1, 1]} : vector<8x384xf32> to vector<8x128xf32>
    %139 = arith.addf %137, %138 : vector<8x128xf32>
    %140 = arith.negf %139 : vector<8x128xf32>
    %141 = math.exp %140 : vector<8x128xf32>
    %cst_43 = arith.constant 1.000000e+00 : f32
    %142 = vector.broadcast %cst_43 : f32 to vector<8x128xf32>
    %143 = arith.addf %142, %141 : vector<8x128xf32>
    %144 = arith.divf %142, %143 : vector<8x128xf32>
    %145 = vector.extract_strided_slice %127 {offsets = [0, 256], sizes = [8, 128], strides = [1, 1]} : vector<8x384xf32> to vector<8x128xf32>
    %146 = vector.extract_strided_slice %128 {offsets = [0, 256], sizes = [8, 128], strides = [1, 1]} : vector<8x384xf32> to vector<8x128xf32>
    %147 = arith.addf %146, %13 : vector<8x128xf32>
    %148 = arith.mulf %136, %147 : vector<8x128xf32>
    %149 = arith.addf %145, %148 : vector<8x128xf32>
    %150 = math.tanh %149 : vector<8x128xf32>
    %cst_44 = arith.constant 1.000000e+00 : f32
    %151 = vector.broadcast %cst_44 : f32 to vector<8x128xf32>
    %152 = arith.subf %151, %144 : vector<8x128xf32>
    %153 = arith.mulf %152, %150 : vector<8x128xf32>
    %154 = arith.mulf %144, %119 : vector<8x128xf32>
    %155 = arith.addf %153, %154 : vector<8x128xf32>
    %c0_45 = arith.constant 0 : index
    %156 = arith.index_cast %125 : i32 to index
    %c0_46 = arith.constant 0 : index
    %157 = vector.load %arg7[%c0_45, %156, %c0_46] : memref<1x64x128xf32, #tpu.memory_space<vmem>>, vector<1x8x128xf32>
    %158 = vector.shape_cast %157 : vector<1x8x128xf32> to vector<8x128xf32>
    %159 = vector.shape_cast %155 : vector<8x128xf32> to vector<1x8x128xf32>
    tpu.vector_store %arg7[%c0_45, %156, %c0_46], %159 {strides = array<i32>} : memref<1x64x128xf32, #tpu.memory_space<vmem>>, vector<1x8x128xf32>,
    %c4_i32 = arith.constant 4 : i32
    %c8_i32_47 = arith.constant 8 : i32
    %160 = arith.muli %c4_i32, %c8_i32_47 : i32
    %161 = tpu.assume_multiple %160, 8 : i32
    %162 = arith.index_cast %161 : i32 to index
    %c0_48 = arith.constant 0 : index
    %163 = vector.load %arg9[%162, %c0_48] : memref<64x384xf32, #tpu.memory_space<vmem>>, vector<8x384xf32>
    %cst_49 = arith.constant dense<0.000000e+00> : vector<8x384xf32>
    %164 = tpu.matmul %155, %14, %cst_49 {dimension_numbers = #tpu.dot_dimension_numbers<[1], [0], [0], [1], [0, 0, 1, 1], [], []>} : vector<8x128xf32>, vector<128x384xf32>, vector<8x384xf32> -> vector<8x384xf32>
    %165 = vector.extract_strided_slice %163 {offsets = [0, 0], sizes = [8, 128], strides = [1, 1]} : vector<8x384xf32> to vector<8x128xf32>
    %166 = vector.extract_strided_slice %164 {offsets = [0, 0], sizes = [8, 128], strides = [1, 1]} : vector<8x384xf32> to vector<8x128xf32>
    %167 = arith.addf %165, %166 : vector<8x128xf32>
    %168 = arith.negf %167 : vector<8x128xf32>
    %169 = math.exp %168 : vector<8x128xf32>
    %cst_50 = arith.constant 1.000000e+00 : f32
    %170 = vector.broadcast %cst_50 : f32 to vector<8x128xf32>
    %171 = arith.addf %170, %169 : vector<8x128xf32>
    %172 = arith.divf %170, %171 : vector<8x128xf32>
    %173 = vector.extract_strided_slice %163 {offsets = [0, 128], sizes = [8, 128], strides = [1, 1]} : vector<8x384xf32> to vector<8x128xf32>
    %174 = vector.extract_strided_slice %164 {offsets = [0, 128], sizes = [8, 128], strides = [1, 1]} : vector<8x384xf32> to vector<8x128xf32>
    %175 = arith.addf %173, %174 : vector<8x128xf32>
    %176 = arith.negf %175 : vector<8x128xf32>
    %177 = math.exp %176 : vector<8x128xf32>
    %cst_51 = arith.constant 1.000000e+00 : f32
    %178 = vector.broadcast %cst_51 : f32 to vector<8x128xf32>
    %179 = arith.addf %178, %177 : vector<8x128xf32>
    %180 = arith.divf %178, %179 : vector<8x128xf32>
    %181 = vector.extract_strided_slice %163 {offsets = [0, 256], sizes = [8, 128], strides = [1, 1]} : vector<8x384xf32> to vector<8x128xf32>
    %182 = vector.extract_strided_slice %164 {offsets = [0, 256], sizes = [8, 128], strides = [1, 1]} : vector<8x384xf32> to vector<8x128xf32>
    %183 = arith.addf %182, %13 : vector<8x128xf32>
    %184 = arith.mulf %172, %183 : vector<8x128xf32>
    %185 = arith.addf %181, %184 : vector<8x128xf32>
    %186 = math.tanh %185 : vector<8x128xf32>
    %cst_52 = arith.constant 1.000000e+00 : f32
    %187 = vector.broadcast %cst_52 : f32 to vector<8x128xf32>
    %188 = arith.subf %187, %180 : vector<8x128xf32>
    %189 = arith.mulf %188, %186 : vector<8x128xf32>
    %190 = arith.mulf %180, %155 : vector<8x128xf32>
    %191 = arith.addf %189, %190 : vector<8x128xf32>
    %c0_53 = arith.constant 0 : index
    %192 = arith.index_cast %161 : i32 to index
    %c0_54 = arith.constant 0 : index
    %193 = vector.load %arg7[%c0_53, %192, %c0_54] : memref<1x64x128xf32, #tpu.memory_space<vmem>>, vector<1x8x128xf32>
    %194 = vector.shape_cast %193 : vector<1x8x128xf32> to vector<8x128xf32>
    %195 = vector.shape_cast %191 : vector<8x128xf32> to vector<1x8x128xf32>
    tpu.vector_store %arg7[%c0_53, %192, %c0_54], %195 {strides = array<i32>} : memref<1x64x128xf32, #tpu.memory_space<vmem>>, vector<1x8x128xf32>,
    %c5_i32 = arith.constant 5 : i32
    %c8_i32_55 = arith.constant 8 : i32
    %196 = arith.muli %c5_i32, %c8_i32_55 : i32
    %197 = tpu.assume_multiple %196, 8 : i32
    %198 = arith.index_cast %197 : i32 to index
    %c0_56 = arith.constant 0 : index
    %199 = vector.load %arg9[%198, %c0_56] : memref<64x384xf32, #tpu.memory_space<vmem>>, vector<8x384xf32>
    %cst_57 = arith.constant dense<0.000000e+00> : vector<8x384xf32>
    %200 = tpu.matmul %191, %14, %cst_57 {dimension_numbers = #tpu.dot_dimension_numbers<[1], [0], [0], [1], [0, 0, 1, 1], [], []>} : vector<8x128xf32>, vector<128x384xf32>, vector<8x384xf32> -> vector<8x384xf32>
    %201 = vector.extract_strided_slice %199 {offsets = [0, 0], sizes = [8, 128], strides = [1, 1]} : vector<8x384xf32> to vector<8x128xf32>
    %202 = vector.extract_strided_slice %200 {offsets = [0, 0], sizes = [8, 128], strides = [1, 1]} : vector<8x384xf32> to vector<8x128xf32>
    %203 = arith.addf %201, %202 : vector<8x128xf32>
    %204 = arith.negf %203 : vector<8x128xf32>
    %205 = math.exp %204 : vector<8x128xf32>
    %cst_58 = arith.constant 1.000000e+00 : f32
    %206 = vector.broadcast %cst_58 : f32 to vector<8x128xf32>
    %207 = arith.addf %206, %205 : vector<8x128xf32>
    %208 = arith.divf %206, %207 : vector<8x128xf32>
    %209 = vector.extract_strided_slice %199 {offsets = [0, 128], sizes = [8, 128], strides = [1, 1]} : vector<8x384xf32> to vector<8x128xf32>
    %210 = vector.extract_strided_slice %200 {offsets = [0, 128], sizes = [8, 128], strides = [1, 1]} : vector<8x384xf32> to vector<8x128xf32>
    %211 = arith.addf %209, %210 : vector<8x128xf32>
    %212 = arith.negf %211 : vector<8x128xf32>
    %213 = math.exp %212 : vector<8x128xf32>
    %cst_59 = arith.constant 1.000000e+00 : f32
    %214 = vector.broadcast %cst_59 : f32 to vector<8x128xf32>
    %215 = arith.addf %214, %213 : vector<8x128xf32>
    %216 = arith.divf %214, %215 : vector<8x128xf32>
    %217 = vector.extract_strided_slice %199 {offsets = [0, 256], sizes = [8, 128], strides = [1, 1]} : vector<8x384xf32> to vector<8x128xf32>
    %218 = vector.extract_strided_slice %200 {offsets = [0, 256], sizes = [8, 128], strides = [1, 1]} : vector<8x384xf32> to vector<8x128xf32>
    %219 = arith.addf %218, %13 : vector<8x128xf32>
    %220 = arith.mulf %208, %219 : vector<8x128xf32>
    %221 = arith.addf %217, %220 : vector<8x128xf32>
    %222 = math.tanh %221 : vector<8x128xf32>
    %cst_60 = arith.constant 1.000000e+00 : f32
    %223 = vector.broadcast %cst_60 : f32 to vector<8x128xf32>
    %224 = arith.subf %223, %216 : vector<8x128xf32>
    %225 = arith.mulf %224, %222 : vector<8x128xf32>
    %226 = arith.mulf %216, %191 : vector<8x128xf32>
    %227 = arith.addf %225, %226 : vector<8x128xf32>
    %c0_61 = arith.constant 0 : index
    %228 = arith.index_cast %197 : i32 to index
    %c0_62 = arith.constant 0 : index
    %229 = vector.load %arg7[%c0_61, %228, %c0_62] : memref<1x64x128xf32, #tpu.memory_space<vmem>>, vector<1x8x128xf32>
    %230 = vector.shape_cast %229 : vector<1x8x128xf32> to vector<8x128xf32>
    %231 = vector.shape_cast %227 : vector<8x128xf32> to vector<1x8x128xf32>
    tpu.vector_store %arg7[%c0_61, %228, %c0_62], %231 {strides = array<i32>} : memref<1x64x128xf32, #tpu.memory_space<vmem>>, vector<1x8x128xf32>,
    %c6_i32 = arith.constant 6 : i32
    %c8_i32_63 = arith.constant 8 : i32
    %232 = arith.muli %c6_i32, %c8_i32_63 : i32
    %233 = tpu.assume_multiple %232, 8 : i32
    %234 = arith.index_cast %233 : i32 to index
    %c0_64 = arith.constant 0 : index
    %235 = vector.load %arg9[%234, %c0_64] : memref<64x384xf32, #tpu.memory_space<vmem>>, vector<8x384xf32>
    %cst_65 = arith.constant dense<0.000000e+00> : vector<8x384xf32>
    %236 = tpu.matmul %227, %14, %cst_65 {dimension_numbers = #tpu.dot_dimension_numbers<[1], [0], [0], [1], [0, 0, 1, 1], [], []>} : vector<8x128xf32>, vector<128x384xf32>, vector<8x384xf32> -> vector<8x384xf32>
    %237 = vector.extract_strided_slice %235 {offsets = [0, 0], sizes = [8, 128], strides = [1, 1]} : vector<8x384xf32> to vector<8x128xf32>
    %238 = vector.extract_strided_slice %236 {offsets = [0, 0], sizes = [8, 128], strides = [1, 1]} : vector<8x384xf32> to vector<8x128xf32>
    %239 = arith.addf %237, %238 : vector<8x128xf32>
    %240 = arith.negf %239 : vector<8x128xf32>
    %241 = math.exp %240 : vector<8x128xf32>
    %cst_66 = arith.constant 1.000000e+00 : f32
    %242 = vector.broadcast %cst_66 : f32 to vector<8x128xf32>
    %243 = arith.addf %242, %241 : vector<8x128xf32>
    %244 = arith.divf %242, %243 : vector<8x128xf32>
    %245 = vector.extract_strided_slice %235 {offsets = [0, 128], sizes = [8, 128], strides = [1, 1]} : vector<8x384xf32> to vector<8x128xf32>
    %246 = vector.extract_strided_slice %236 {offsets = [0, 128], sizes = [8, 128], strides = [1, 1]} : vector<8x384xf32> to vector<8x128xf32>
    %247 = arith.addf %245, %246 : vector<8x128xf32>
    %248 = arith.negf %247 : vector<8x128xf32>
    %249 = math.exp %248 : vector<8x128xf32>
    %cst_67 = arith.constant 1.000000e+00 : f32
    %250 = vector.broadcast %cst_67 : f32 to vector<8x128xf32>
    %251 = arith.addf %250, %249 : vector<8x128xf32>
    %252 = arith.divf %250, %251 : vector<8x128xf32>
    %253 = vector.extract_strided_slice %235 {offsets = [0, 256], sizes = [8, 128], strides = [1, 1]} : vector<8x384xf32> to vector<8x128xf32>
    %254 = vector.extract_strided_slice %236 {offsets = [0, 256], sizes = [8, 128], strides = [1, 1]} : vector<8x384xf32> to vector<8x128xf32>
    %255 = arith.addf %254, %13 : vector<8x128xf32>
    %256 = arith.mulf %244, %255 : vector<8x128xf32>
    %257 = arith.addf %253, %256 : vector<8x128xf32>
    %258 = math.tanh %257 : vector<8x128xf32>
    %cst_68 = arith.constant 1.000000e+00 : f32
    %259 = vector.broadcast %cst_68 : f32 to vector<8x128xf32>
    %260 = arith.subf %259, %252 : vector<8x128xf32>
    %261 = arith.mulf %260, %258 : vector<8x128xf32>
    %262 = arith.mulf %252, %227 : vector<8x128xf32>
    %263 = arith.addf %261, %262 : vector<8x128xf32>
    %c0_69 = arith.constant 0 : index
    %264 = arith.index_cast %233 : i32 to index
    %c0_70 = arith.constant 0 : index
    %265 = vector.load %arg7[%c0_69, %264, %c0_70] : memref<1x64x128xf32, #tpu.memory_space<vmem>>, vector<1x8x128xf32>
    %266 = vector.shape_cast %265 : vector<1x8x128xf32> to vector<8x128xf32>
    %267 = vector.shape_cast %263 : vector<8x128xf32> to vector<1x8x128xf32>
    tpu.vector_store %arg7[%c0_69, %264, %c0_70], %267 {strides = array<i32>} : memref<1x64x128xf32, #tpu.memory_space<vmem>>, vector<1x8x128xf32>,
    %c7_i32 = arith.constant 7 : i32
    %c8_i32_71 = arith.constant 8 : i32
    %268 = arith.muli %c7_i32, %c8_i32_71 : i32
    %269 = tpu.assume_multiple %268, 8 : i32
    %270 = arith.index_cast %269 : i32 to index
    %c0_72 = arith.constant 0 : index
    %271 = vector.load %arg9[%270, %c0_72] : memref<64x384xf32, #tpu.memory_space<vmem>>, vector<8x384xf32>
    %cst_73 = arith.constant dense<0.000000e+00> : vector<8x384xf32>
    %272 = tpu.matmul %263, %14, %cst_73 {dimension_numbers = #tpu.dot_dimension_numbers<[1], [0], [0], [1], [0, 0, 1, 1], [], []>} : vector<8x128xf32>, vector<128x384xf32>, vector<8x384xf32> -> vector<8x384xf32>
    %273 = vector.extract_strided_slice %271 {offsets = [0, 0], sizes = [8, 128], strides = [1, 1]} : vector<8x384xf32> to vector<8x128xf32>
    %274 = vector.extract_strided_slice %272 {offsets = [0, 0], sizes = [8, 128], strides = [1, 1]} : vector<8x384xf32> to vector<8x128xf32>
    %275 = arith.addf %273, %274 : vector<8x128xf32>
    %276 = arith.negf %275 : vector<8x128xf32>
    %277 = math.exp %276 : vector<8x128xf32>
    %cst_74 = arith.constant 1.000000e+00 : f32
    %278 = vector.broadcast %cst_74 : f32 to vector<8x128xf32>
    %279 = arith.addf %278, %277 : vector<8x128xf32>
    %280 = arith.divf %278, %279 : vector<8x128xf32>
    %281 = vector.extract_strided_slice %271 {offsets = [0, 128], sizes = [8, 128], strides = [1, 1]} : vector<8x384xf32> to vector<8x128xf32>
    %282 = vector.extract_strided_slice %272 {offsets = [0, 128], sizes = [8, 128], strides = [1, 1]} : vector<8x384xf32> to vector<8x128xf32>
    %283 = arith.addf %281, %282 : vector<8x128xf32>
    %284 = arith.negf %283 : vector<8x128xf32>
    %285 = math.exp %284 : vector<8x128xf32>
    %cst_75 = arith.constant 1.000000e+00 : f32
    %286 = vector.broadcast %cst_75 : f32 to vector<8x128xf32>
    %287 = arith.addf %286, %285 : vector<8x128xf32>
    %288 = arith.divf %286, %287 : vector<8x128xf32>
    %289 = vector.extract_strided_slice %271 {offsets = [0, 256], sizes = [8, 128], strides = [1, 1]} : vector<8x384xf32> to vector<8x128xf32>
    %290 = vector.extract_strided_slice %272 {offsets = [0, 256], sizes = [8, 128], strides = [1, 1]} : vector<8x384xf32> to vector<8x128xf32>
    %291 = arith.addf %290, %13 : vector<8x128xf32>
    %292 = arith.mulf %280, %291 : vector<8x128xf32>
    %293 = arith.addf %289, %292 : vector<8x128xf32>
    %294 = math.tanh %293 : vector<8x128xf32>
    %cst_76 = arith.constant 1.000000e+00 : f32
    %295 = vector.broadcast %cst_76 : f32 to vector<8x128xf32>
    %296 = arith.subf %295, %288 : vector<8x128xf32>
    %297 = arith.mulf %296, %294 : vector<8x128xf32>
    %298 = arith.mulf %288, %263 : vector<8x128xf32>
    %299 = arith.addf %297, %298 : vector<8x128xf32>
    %c0_77 = arith.constant 0 : index
    %300 = arith.index_cast %269 : i32 to index
    %c0_78 = arith.constant 0 : index
    %301 = vector.load %arg7[%c0_77, %300, %c0_78] : memref<1x64x128xf32, #tpu.memory_space<vmem>>, vector<1x8x128xf32>
    %302 = vector.shape_cast %301 : vector<1x8x128xf32> to vector<8x128xf32>
    %303 = vector.shape_cast %299 : vector<8x128xf32> to vector<1x8x128xf32>
    tpu.vector_store %arg7[%c0_77, %300, %c0_78], %303 {strides = array<i32>} : memref<1x64x128xf32, #tpu.memory_space<vmem>>, vector<1x8x128xf32>,
    %c8_i32_79 = arith.constant 8 : i32
    %c0_80 = arith.constant 0 : index
    %c0_81 = arith.constant 0 : index
    %304 = vector.load %arg8[%c0_80, %c0_81] : memref<8x128xf32, #tpu.memory_space<vmem>>, vector<8x128xf32>
    tpu.vector_store %arg8[%c0_80, %c0_81], %299 {strides = array<i32>} : memref<8x128xf32, #tpu.memory_space<vmem>>, vector<8x128xf32>,
    return
  }
  func.func @transform_0(%arg0: i32, %arg1: i32) -> (i32, i32, i32) {
    %c0_i32 = arith.constant 0 : i32
    %c0_i32_0 = arith.constant 0 : i32
    return %arg0, %arg1, %c0_i32 : i32, i32, i32
  }
  func.func @transform_1(%arg0: i32, %arg1: i32) -> (i32, i32) {
    %c0_i32 = arith.constant 0 : i32
    %c0_i32_0 = arith.constant 0 : i32
    %c0_i32_1 = arith.constant 0 : i32
    return %c0_i32, %c0_i32_0 : i32, i32
  }
  func.func @transform_2(%arg0: i32, %arg1: i32) -> (i32, i32) {
    %c0_i32 = arith.constant 0 : i32
    %c0_i32_0 = arith.constant 0 : i32
    %c0_i32_1 = arith.constant 0 : i32
    return %c0_i32, %c0_i32_0 : i32, i32
  }
  func.func @transform_3(%arg0: i32, %arg1: i32) -> (i32, i32) {
    %c0_i32 = arith.constant 0 : i32
    %c0_i32_0 = arith.constant 0 : i32
    %c0_i32_1 = arith.constant 0 : i32
    return %c0_i32, %c0_i32_0 : i32, i32
  }
  func.func @transform_4(%arg0: i32, %arg1: i32) -> (i32, i32) {
    %c0_i32 = arith.constant 0 : i32
    %c0_i32_0 = arith.constant 0 : i32
    %c0_i32_1 = arith.constant 0 : i32
    return %c0_i32, %c0_i32_0 : i32, i32
  }
  func.func @transform_5(%arg0: i32, %arg1: i32) -> (i32, i32, i32) {
    %c0_i32 = arith.constant 0 : i32
    %c0_i32_0 = arith.constant 0 : i32
    return %arg0, %arg1, %c0_i32 : i32, i32, i32
  }
}

module attributes {stable_mosaic.version = 11 : i64} {
  func.func @_gru_fused_kernel(%arg0: i32, %arg1: i32, %arg2: memref<1x64x16xf32, #tpu.memory_space<vmem>>, %arg3: memref<16x384xf32, #tpu.memory_space<vmem>>, %arg4: memref<1x384xf32, #tpu.memory_space<vmem>>, %arg5: memref<128x384xf32, #tpu.memory_space<vmem>>, %arg6: memref<1x128xf32, #tpu.memory_space<vmem>>, %arg7: memref<1x64x128xf32, #tpu.memory_space<vmem>>, %arg8: memref<8x128xf32, #tpu.memory_space<vmem>>, %arg9: memref<64x384xf32, #tpu.memory_space<vmem>>) attributes {dimension_semantics = [#tpu.dimension_semantics<parallel>, #tpu.dimension_semantics<arbitrary>], iteration_bounds = array<i64: 1, 1>, scalar_prefetch = 0 : i64, scratch_operands = 2 : i64, tpu.core_type = #tpu.core_type<tc>, window_params = [{transform_indices = @transform_0, window_bounds = array<i64: 1, 64, 16>}, {pipeline_mode = #tpu.pipeline_mode<synchronous>, transform_indices = @transform_1, window_bounds = array<i64: 16, 384>}, {pipeline_mode = #tpu.pipeline_mode<synchronous>, transform_indices = @transform_2, window_bounds = array<i64: 1, 384>}, {pipeline_mode = #tpu.pipeline_mode<synchronous>, transform_indices = @transform_3, window_bounds = array<i64: 128, 384>}, {pipeline_mode = #tpu.pipeline_mode<synchronous>, transform_indices = @transform_4, window_bounds = array<i64: 1, 128>}, {transform_indices = @transform_5, window_bounds = array<i64: 1, 64, 128>}]} {
    %c0_i32 = arith.constant 0 : i32
    %0 = arith.cmpi eq, %arg1, %c0_i32 : i32
    %1 = arith.extui %0 : i1 to i32
    %c0_i32_0 = arith.constant 0 : i32
    %2 = arith.cmpi ne, %1, %c0_i32_0 : i32
    scf.if %2 {
      %cst_82 = arith.constant 0.000000e+00 : f32
      %305 = vector.broadcast %cst_82 : f32 to vector<8x128xf32>
      %c0_83 = arith.constant 0 : index
      %c0_84 = arith.constant 0 : index
      %306 = vector.load %arg8[%c0_83, %c0_84] : memref<8x128xf32, #tpu.memory_space<vmem>>, vector<8x128xf32>
      tpu.vector_store %arg8[%c0_83, %c0_84], %305 {strides = array<i32>} : memref<8x128xf32, #tpu.memory_space<vmem>>, vector<8x128xf32>,
    } else {
    }
    %c0 = arith.constant 0 : index
    %c0_1 = arith.constant 0 : index
    %c0_2 = arith.constant 0 : index
    %3 = vector.load %arg2[%c0, %c0_1, %c0_2] : memref<1x64x16xf32, #tpu.memory_space<vmem>>, vector<1x64x16xf32>
    %4 = vector.shape_cast %3 : vector<1x64x16xf32> to vector<64x16xf32>
    %c0_3 = arith.constant 0 : index
    %c0_4 = arith.constant 0 : index
    %5 = vector.load %arg3[%c0_3, %c0_4] : memref<16x384xf32, #tpu.memory_space<vmem>>, vector<16x384xf32>
    %cst = arith.constant dense<0.000000e+00> : vector<64x384xf32>
    %6 = tpu.matmul %4, %5, %cst {dimension_numbers = #tpu.dot_dimension_numbers<[1], [0], [0], [1], [0, 0, 1, 1], [], []>} : vector<64x16xf32>, vector<16x384xf32>, vector<64x384xf32> -> vector<64x384xf32>
    %c0_5 = arith.constant 0 : index
    %c0_6 = arith.constant 0 : index
    %7 = vector.load %arg4[%c0_5, %c0_6] : memref<1x384xf32, #tpu.memory_space<vmem>>, vector<1x384xf32>
    %8 = vector.broadcast %7 : vector<1x384xf32> to vector<64x384xf32>
    %9 = arith.addf %6, %8 : vector<64x384xf32>
    %c0_7 = arith.constant 0 : index
    %c0_8 = arith.constant 0 : index
    %10 = vector.load %arg9[%c0_7, %c0_8] : memref<64x384xf32, #tpu.memory_space<vmem>>, vector<64x384xf32>
    tpu.vector_store %arg9[%c0_7, %c0_8], %9 {strides = array<i32>} : memref<64x384xf32, #tpu.memory_space<vmem>>, vector<64x384xf32>,
    %c0_9 = arith.constant 0 : index
    %c0_10 = arith.constant 0 : index
    %11 = vector.load %arg6[%c0_9, %c0_10] : memref<1x128xf32, #tpu.memory_space<vmem>>, vector<1x128xf32>
    %12 = vector.shape_cast %11 : vector<1x128xf32> to vector<1x128xf32>
    %13 = vector.broadcast %12 : vector<1x128xf32> to vector<8x128xf32>
    %c0_11 = arith.constant 0 : index
    %c0_12 = arith.constant 0 : index
    %14 = vector.load %arg5[%c0_11, %c0_12] : memref<128x384xf32, #tpu.memory_space<vmem>>, vector<128x384xf32>
    %c0_13 = arith.constant 0 : index
    %c0_14 = arith.constant 0 : index
    %15 = vector.load %arg8[%c0_13, %c0_14] : memref<8x128xf32, #tpu.memory_space<vmem>>, vector<8x128xf32>
    %c0_i32_15 = arith.constant 0 : i32
    %c8_i32 = arith.constant 8 : i32
    %16 = arith.muli %c0_i32_15, %c8_i32 : i32
    %17 = tpu.assume_multiple %16, 8 : i32
    %18 = arith.index_cast %17 : i32 to index
    %c0_16 = arith.constant 0 : index
    %19 = vector.load %arg9[%18, %c0_16] : memref<64x384xf32, #tpu.memory_space<vmem>>, vector<8x384xf32>
    %cst_17 = arith.constant dense<0.000000e+00> : vector<8x384xf32>
    %20 = tpu.matmul %15, %14, %cst_17 {dimension_numbers = #tpu.dot_dimension_numbers<[1], [0], [0], [1], [0, 0, 1, 1], [], []>} : vector<8x128xf32>, vector<128x384xf32>, vector<8x384xf32> -> vector<8x384xf32>
    %21 = vector.extract_strided_slice %19 {offsets = [0, 0], sizes = [8, 128], strides = [1, 1]} : vector<8x384xf32> to vector<8x128xf32>
    %22 = vector.extract_strided_slice %20 {offsets = [0, 0], sizes = [8, 128], strides = [1, 1]} : vector<8x384xf32> to vector<8x128xf32>
    %23 = arith.addf %21, %22 : vector<8x128xf32>
    %24 = arith.negf %23 : vector<8x128xf32>
    %25 = math.exp %24 : vector<8x128xf32>
    %cst_18 = arith.constant 1.000000e+00 : f32
    %26 = vector.broadcast %cst_18 : f32 to vector<8x128xf32>
    %27 = arith.addf %26, %25 : vector<8x128xf32>
    %28 = arith.divf %26, %27 : vector<8x128xf32>
    %29 = vector.extract_strided_slice %19 {offsets = [0, 128], sizes = [8, 128], strides = [1, 1]} : vector<8x384xf32> to vector<8x128xf32>
    %30 = vector.extract_strided_slice %20 {offsets = [0, 128], sizes = [8, 128], strides = [1, 1]} : vector<8x384xf32> to vector<8x128xf32>
    %31 = arith.addf %29, %30 : vector<8x128xf32>
    %32 = arith.negf %31 : vector<8x128xf32>
    %33 = math.exp %32 : vector<8x128xf32>
    %cst_19 = arith.constant 1.000000e+00 : f32
    %34 = vector.broadcast %cst_19 : f32 to vector<8x128xf32>
    %35 = arith.addf %34, %33 : vector<8x128xf32>
    %36 = arith.divf %34, %35 : vector<8x128xf32>
    %37 = vector.extract_strided_slice %19 {offsets = [0, 256], sizes = [8, 128], strides = [1, 1]} : vector<8x384xf32> to vector<8x128xf32>
    %38 = vector.extract_strided_slice %20 {offsets = [0, 256], sizes = [8, 128], strides = [1, 1]} : vector<8x384xf32> to vector<8x128xf32>
    %39 = arith.addf %38, %13 : vector<8x128xf32>
    %40 = arith.mulf %28, %39 : vector<8x128xf32>
    %41 = arith.addf %37, %40 : vector<8x128xf32>
    %42 = math.tanh %41 : vector<8x128xf32>
    %cst_20 = arith.constant 1.000000e+00 : f32
    %43 = vector.broadcast %cst_20 : f32 to vector<8x128xf32>
    %44 = arith.subf %43, %36 : vector<8x128xf32>
    %45 = arith.mulf %44, %42 : vector<8x128xf32>
    %46 = arith.mulf %36, %15 : vector<8x128xf32>
    %47 = arith.addf %45, %46 : vector<8x128xf32>
    %c0_21 = arith.constant 0 : index
    %48 = arith.index_cast %17 : i32 to index
    %c0_22 = arith.constant 0 : index
    %49 = vector.load %arg7[%c0_21, %48, %c0_22] : memref<1x64x128xf32, #tpu.memory_space<vmem>>, vector<1x8x128xf32>
    %50 = vector.shape_cast %49 : vector<1x8x128xf32> to vector<8x128xf32>
    %51 = vector.shape_cast %47 : vector<8x128xf32> to vector<1x8x128xf32>
    tpu.vector_store %arg7[%c0_21, %48, %c0_22], %51 {strides = array<i32>} : memref<1x64x128xf32, #tpu.memory_space<vmem>>, vector<1x8x128xf32>,
    %c1_i32 = arith.constant 1 : i32
    %c8_i32_23 = arith.constant 8 : i32
    %52 = arith.muli %c1_i32, %c8_i32_23 : i32
    %53 = tpu.assume_multiple %52, 8 : i32
    %54 = arith.index_cast %53 : i32 to index
    %c0_24 = arith.constant 0 : index
    %55 = vector.load %arg9[%54, %c0_24] : memref<64x384xf32, #tpu.memory_space<vmem>>, vector<8x384xf32>
    %cst_25 = arith.constant dense<0.000000e+00> : vector<8x384xf32>
    %56 = tpu.matmul %47, %14, %cst_25 {dimension_numbers = #tpu.dot_dimension_numbers<[1], [0], [0], [1], [0, 0, 1, 1], [], []>} : vector<8x128xf32>, vector<128x384xf32>, vector<8x384xf32> -> vector<8x384xf32>
    %57 = vector.extract_strided_slice %55 {offsets = [0, 0], sizes = [8, 128], strides = [1, 1]} : vector<8x384xf32> to vector<8x128xf32>
    %58 = vector.extract_strided_slice %56 {offsets = [0, 0], sizes = [8, 128], strides = [1, 1]} : vector<8x384xf32> to vector<8x128xf32>
    %59 = arith.addf %57, %58 : vector<8x128xf32>
    %60 = arith.negf %59 : vector<8x128xf32>
    %61 = math.exp %60 : vector<8x128xf32>
    %cst_26 = arith.constant 1.000000e+00 : f32
    %62 = vector.broadcast %cst_26 : f32 to vector<8x128xf32>
    %63 = arith.addf %62, %61 : vector<8x128xf32>
    %64 = arith.divf %62, %63 : vector<8x128xf32>
    %65 = vector.extract_strided_slice %55 {offsets = [0, 128], sizes = [8, 128], strides = [1, 1]} : vector<8x384xf32> to vector<8x128xf32>
    %66 = vector.extract_strided_slice %56 {offsets = [0, 128], sizes = [8, 128], strides = [1, 1]} : vector<8x384xf32> to vector<8x128xf32>
    %67 = arith.addf %65, %66 : vector<8x128xf32>
    %68 = arith.negf %67 : vector<8x128xf32>
    %69 = math.exp %68 : vector<8x128xf32>
    %cst_27 = arith.constant 1.000000e+00 : f32
    %70 = vector.broadcast %cst_27 : f32 to vector<8x128xf32>
    %71 = arith.addf %70, %69 : vector<8x128xf32>
    %72 = arith.divf %70, %71 : vector<8x128xf32>
    %73 = vector.extract_strided_slice %55 {offsets = [0, 256], sizes = [8, 128], strides = [1, 1]} : vector<8x384xf32> to vector<8x128xf32>
    %74 = vector.extract_strided_slice %56 {offsets = [0, 256], sizes = [8, 128], strides = [1, 1]} : vector<8x384xf32> to vector<8x128xf32>
    %75 = arith.addf %74, %13 : vector<8x128xf32>
    %76 = arith.mulf %64, %75 : vector<8x128xf32>
    %77 = arith.addf %73, %76 : vector<8x128xf32>
    %78 = math.tanh %77 : vector<8x128xf32>
    %cst_28 = arith.constant 1.000000e+00 : f32
    %79 = vector.broadcast %cst_28 : f32 to vector<8x128xf32>
    %80 = arith.subf %79, %72 : vector<8x128xf32>
    %81 = arith.mulf %80, %78 : vector<8x128xf32>
    %82 = arith.mulf %72, %47 : vector<8x128xf32>
    %83 = arith.addf %81, %82 : vector<8x128xf32>
    %c0_29 = arith.constant 0 : index
    %84 = arith.index_cast %53 : i32 to index
    %c0_30 = arith.constant 0 : index
    %85 = vector.load %arg7[%c0_29, %84, %c0_30] : memref<1x64x128xf32, #tpu.memory_space<vmem>>, vector<1x8x128xf32>
    %86 = vector.shape_cast %85 : vector<1x8x128xf32> to vector<8x128xf32>
    %87 = vector.shape_cast %83 : vector<8x128xf32> to vector<1x8x128xf32>
    tpu.vector_store %arg7[%c0_29, %84, %c0_30], %87 {strides = array<i32>} : memref<1x64x128xf32, #tpu.memory_space<vmem>>, vector<1x8x128xf32>,
    %c2_i32 = arith.constant 2 : i32
    %c8_i32_31 = arith.constant 8 : i32
    %88 = arith.muli %c2_i32, %c8_i32_31 : i32
    %89 = tpu.assume_multiple %88, 8 : i32
    %90 = arith.index_cast %89 : i32 to index
    %c0_32 = arith.constant 0 : index
    %91 = vector.load %arg9[%90, %c0_32] : memref<64x384xf32, #tpu.memory_space<vmem>>, vector<8x384xf32>
    %cst_33 = arith.constant dense<0.000000e+00> : vector<8x384xf32>
    %92 = tpu.matmul %83, %14, %cst_33 {dimension_numbers = #tpu.dot_dimension_numbers<[1], [0], [0], [1], [0, 0, 1, 1], [], []>} : vector<8x128xf32>, vector<128x384xf32>, vector<8x384xf32> -> vector<8x384xf32>
    %93 = vector.extract_strided_slice %91 {offsets = [0, 0], sizes = [8, 128], strides = [1, 1]} : vector<8x384xf32> to vector<8x128xf32>
    %94 = vector.extract_strided_slice %92 {offsets = [0, 0], sizes = [8, 128], strides = [1, 1]} : vector<8x384xf32> to vector<8x128xf32>
    %95 = arith.addf %93, %94 : vector<8x128xf32>
    %96 = arith.negf %95 : vector<8x128xf32>
    %97 = math.exp %96 : vector<8x128xf32>
    %cst_34 = arith.constant 1.000000e+00 : f32
    %98 = vector.broadcast %cst_34 : f32 to vector<8x128xf32>
    %99 = arith.addf %98, %97 : vector<8x128xf32>
    %100 = arith.divf %98, %99 : vector<8x128xf32>
    %101 = vector.extract_strided_slice %91 {offsets = [0, 128], sizes = [8, 128], strides = [1, 1]} : vector<8x384xf32> to vector<8x128xf32>
    %102 = vector.extract_strided_slice %92 {offsets = [0, 128], sizes = [8, 128], strides = [1, 1]} : vector<8x384xf32> to vector<8x128xf32>
    %103 = arith.addf %101, %102 : vector<8x128xf32>
    %104 = arith.negf %103 : vector<8x128xf32>
    %105 = math.exp %104 : vector<8x128xf32>
    %cst_35 = arith.constant 1.000000e+00 : f32
    %106 = vector.broadcast %cst_35 : f32 to vector<8x128xf32>
    %107 = arith.addf %106, %105 : vector<8x128xf32>
    %108 = arith.divf %106, %107 : vector<8x128xf32>
    %109 = vector.extract_strided_slice %91 {offsets = [0, 256], sizes = [8, 128], strides = [1, 1]} : vector<8x384xf32> to vector<8x128xf32>
    %110 = vector.extract_strided_slice %92 {offsets = [0, 256], sizes = [8, 128], strides = [1, 1]} : vector<8x384xf32> to vector<8x128xf32>
    %111 = arith.addf %110, %13 : vector<8x128xf32>
    %112 = arith.mulf %100, %111 : vector<8x128xf32>
    %113 = arith.addf %109, %112 : vector<8x128xf32>
    %114 = math.tanh %113 : vector<8x128xf32>
    %cst_36 = arith.constant 1.000000e+00 : f32
    %115 = vector.broadcast %cst_36 : f32 to vector<8x128xf32>
    %116 = arith.subf %115, %108 : vector<8x128xf32>
    %117 = arith.mulf %116, %114 : vector<8x128xf32>
    %118 = arith.mulf %108, %83 : vector<8x128xf32>
    %119 = arith.addf %117, %118 : vector<8x128xf32>
    %c0_37 = arith.constant 0 : index
    %120 = arith.index_cast %89 : i32 to index
    %c0_38 = arith.constant 0 : index
    %121 = vector.load %arg7[%c0_37, %120, %c0_38] : memref<1x64x128xf32, #tpu.memory_space<vmem>>, vector<1x8x128xf32>
    %122 = vector.shape_cast %121 : vector<1x8x128xf32> to vector<8x128xf32>
    %123 = vector.shape_cast %119 : vector<8x128xf32> to vector<1x8x128xf32>
    tpu.vector_store %arg7[%c0_37, %120, %c0_38], %123 {strides = array<i32>} : memref<1x64x128xf32, #tpu.memory_space<vmem>>, vector<1x8x128xf32>,
    %c3_i32 = arith.constant 3 : i32
    %c8_i32_39 = arith.constant 8 : i32
    %124 = arith.muli %c3_i32, %c8_i32_39 : i32
    %125 = tpu.assume_multiple %124, 8 : i32
    %126 = arith.index_cast %125 : i32 to index
    %c0_40 = arith.constant 0 : index
    %127 = vector.load %arg9[%126, %c0_40] : memref<64x384xf32, #tpu.memory_space<vmem>>, vector<8x384xf32>
    %cst_41 = arith.constant dense<0.000000e+00> : vector<8x384xf32>
    %128 = tpu.matmul %119, %14, %cst_41 {dimension_numbers = #tpu.dot_dimension_numbers<[1], [0], [0], [1], [0, 0, 1, 1], [], []>} : vector<8x128xf32>, vector<128x384xf32>, vector<8x384xf32> -> vector<8x384xf32>
    %129 = vector.extract_strided_slice %127 {offsets = [0, 0], sizes = [8, 128], strides = [1, 1]} : vector<8x384xf32> to vector<8x128xf32>
    %130 = vector.extract_strided_slice %128 {offsets = [0, 0], sizes = [8, 128], strides = [1, 1]} : vector<8x384xf32> to vector<8x128xf32>
    %131 = arith.addf %129, %130 : vector<8x128xf32>
    %132 = arith.negf %131 : vector<8x128xf32>
    %133 = math.exp %132 : vector<8x128xf32>
    %cst_42 = arith.constant 1.000000e+00 : f32
    %134 = vector.broadcast %cst_42 : f32 to vector<8x128xf32>
    %135 = arith.addf %134, %133 : vector<8x128xf32>
    %136 = arith.divf %134, %135 : vector<8x128xf32>
    %137 = vector.extract_strided_slice %127 {offsets = [0, 128], sizes = [8, 128], strides = [1, 1]} : vector<8x384xf32> to vector<8x128xf32>
    %138 = vector.extract_strided_slice %128 {offsets = [0, 128], sizes = [8, 128], strides = [1, 1]} : vector<8x384xf32> to vector<8x128xf32>
    %139 = arith.addf %137, %138 : vector<8x128xf32>
    %140 = arith.negf %139 : vector<8x128xf32>
    %141 = math.exp %140 : vector<8x128xf32>
    %cst_43 = arith.constant 1.000000e+00 : f32
    %142 = vector.broadcast %cst_43 : f32 to vector<8x128xf32>
    %143 = arith.addf %142, %141 : vector<8x128xf32>
    %144 = arith.divf %142, %143 : vector<8x128xf32>
    %145 = vector.extract_strided_slice %127 {offsets = [0, 256], sizes = [8, 128], strides = [1, 1]} : vector<8x384xf32> to vector<8x128xf32>
    %146 = vector.extract_strided_slice %128 {offsets = [0, 256], sizes = [8, 128], strides = [1, 1]} : vector<8x384xf32> to vector<8x128xf32>
    %147 = arith.addf %146, %13 : vector<8x128xf32>
    %148 = arith.mulf %136, %147 : vector<8x128xf32>
    %149 = arith.addf %145, %148 : vector<8x128xf32>
    %150 = math.tanh %149 : vector<8x128xf32>
    %cst_44 = arith.constant 1.000000e+00 : f32
    %151 = vector.broadcast %cst_44 : f32 to vector<8x128xf32>
    %152 = arith.subf %151, %144 : vector<8x128xf32>
    %153 = arith.mulf %152, %150 : vector<8x128xf32>
    %154 = arith.mulf %144, %119 : vector<8x128xf32>
    %155 = arith.addf %153, %154 : vector<8x128xf32>
    %c0_45 = arith.constant 0 : index
    %156 = arith.index_cast %125 : i32 to index
    %c0_46 = arith.constant 0 : index
    %157 = vector.load %arg7[%c0_45, %156, %c0_46] : memref<1x64x128xf32, #tpu.memory_space<vmem>>, vector<1x8x128xf32>
    %158 = vector.shape_cast %157 : vector<1x8x128xf32> to vector<8x128xf32>
    %159 = vector.shape_cast %155 : vector<8x128xf32> to vector<1x8x128xf32>
    tpu.vector_store %arg7[%c0_45, %156, %c0_46], %159 {strides = array<i32>} : memref<1x64x128xf32, #tpu.memory_space<vmem>>, vector<1x8x128xf32>,
    %c4_i32 = arith.constant 4 : i32
    %c8_i32_47 = arith.constant 8 : i32
    %160 = arith.muli %c4_i32, %c8_i32_47 : i32
    %161 = tpu.assume_multiple %160, 8 : i32
    %162 = arith.index_cast %161 : i32 to index
    %c0_48 = arith.constant 0 : index
    %163 = vector.load %arg9[%162, %c0_48] : memref<64x384xf32, #tpu.memory_space<vmem>>, vector<8x384xf32>
    %cst_49 = arith.constant dense<0.000000e+00> : vector<8x384xf32>
    %164 = tpu.matmul %155, %14, %cst_49 {dimension_numbers = #tpu.dot_dimension_numbers<[1], [0], [0], [1], [0, 0, 1, 1], [], []>} : vector<8x128xf32>, vector<128x384xf32>, vector<8x384xf32> -> vector<8x384xf32>
    %165 = vector.extract_strided_slice %163 {offsets = [0, 0], sizes = [8, 128], strides = [1, 1]} : vector<8x384xf32> to vector<8x128xf32>
    %166 = vector.extract_strided_slice %164 {offsets = [0, 0], sizes = [8, 128], strides = [1, 1]} : vector<8x384xf32> to vector<8x128xf32>
    %167 = arith.addf %165, %166 : vector<8x128xf32>
    %168 = arith.negf %167 : vector<8x128xf32>
    %169 = math.exp %168 : vector<8x128xf32>
    %cst_50 = arith.constant 1.000000e+00 : f32
    %170 = vector.broadcast %cst_50 : f32 to vector<8x128xf32>
    %171 = arith.addf %170, %169 : vector<8x128xf32>
    %172 = arith.divf %170, %171 : vector<8x128xf32>
    %173 = vector.extract_strided_slice %163 {offsets = [0, 128], sizes = [8, 128], strides = [1, 1]} : vector<8x384xf32> to vector<8x128xf32>
    %174 = vector.extract_strided_slice %164 {offsets = [0, 128], sizes = [8, 128], strides = [1, 1]} : vector<8x384xf32> to vector<8x128xf32>
    %175 = arith.addf %173, %174 : vector<8x128xf32>
    %176 = arith.negf %175 : vector<8x128xf32>
    %177 = math.exp %176 : vector<8x128xf32>
    %cst_51 = arith.constant 1.000000e+00 : f32
    %178 = vector.broadcast %cst_51 : f32 to vector<8x128xf32>
    %179 = arith.addf %178, %177 : vector<8x128xf32>
    %180 = arith.divf %178, %179 : vector<8x128xf32>
    %181 = vector.extract_strided_slice %163 {offsets = [0, 256], sizes = [8, 128], strides = [1, 1]} : vector<8x384xf32> to vector<8x128xf32>
    %182 = vector.extract_strided_slice %164 {offsets = [0, 256], sizes = [8, 128], strides = [1, 1]} : vector<8x384xf32> to vector<8x128xf32>
    %183 = arith.addf %182, %13 : vector<8x128xf32>
    %184 = arith.mulf %172, %183 : vector<8x128xf32>
    %185 = arith.addf %181, %184 : vector<8x128xf32>
    %186 = math.tanh %185 : vector<8x128xf32>
    %cst_52 = arith.constant 1.000000e+00 : f32
    %187 = vector.broadcast %cst_52 : f32 to vector<8x128xf32>
    %188 = arith.subf %187, %180 : vector<8x128xf32>
    %189 = arith.mulf %188, %186 : vector<8x128xf32>
    %190 = arith.mulf %180, %155 : vector<8x128xf32>
    %191 = arith.addf %189, %190 : vector<8x128xf32>
    %c0_53 = arith.constant 0 : index
    %192 = arith.index_cast %161 : i32 to index
    %c0_54 = arith.constant 0 : index
    %193 = vector.load %arg7[%c0_53, %192, %c0_54] : memref<1x64x128xf32, #tpu.memory_space<vmem>>, vector<1x8x128xf32>
    %194 = vector.shape_cast %193 : vector<1x8x128xf32> to vector<8x128xf32>
    %195 = vector.shape_cast %191 : vector<8x128xf32> to vector<1x8x128xf32>
    tpu.vector_store %arg7[%c0_53, %192, %c0_54], %195 {strides = array<i32>} : memref<1x64x128xf32, #tpu.memory_space<vmem>>, vector<1x8x128xf32>,
    %c5_i32 = arith.constant 5 : i32
    %c8_i32_55 = arith.constant 8 : i32
    %196 = arith.muli %c5_i32, %c8_i32_55 : i32
    %197 = tpu.assume_multiple %196, 8 : i32
    %198 = arith.index_cast %197 : i32 to index
    %c0_56 = arith.constant 0 : index
    %199 = vector.load %arg9[%198, %c0_56] : memref<64x384xf32, #tpu.memory_space<vmem>>, vector<8x384xf32>
    %cst_57 = arith.constant dense<0.000000e+00> : vector<8x384xf32>
    %200 = tpu.matmul %191, %14, %cst_57 {dimension_numbers = #tpu.dot_dimension_numbers<[1], [0], [0], [1], [0, 0, 1, 1], [], []>} : vector<8x128xf32>, vector<128x384xf32>, vector<8x384xf32> -> vector<8x384xf32>
    %201 = vector.extract_strided_slice %199 {offsets = [0, 0], sizes = [8, 128], strides = [1, 1]} : vector<8x384xf32> to vector<8x128xf32>
    %202 = vector.extract_strided_slice %200 {offsets = [0, 0], sizes = [8, 128], strides = [1, 1]} : vector<8x384xf32> to vector<8x128xf32>
    %203 = arith.addf %201, %202 : vector<8x128xf32>
    %204 = arith.negf %203 : vector<8x128xf32>
    %205 = math.exp %204 : vector<8x128xf32>
    %cst_58 = arith.constant 1.000000e+00 : f32
    %206 = vector.broadcast %cst_58 : f32 to vector<8x128xf32>
    %207 = arith.addf %206, %205 : vector<8x128xf32>
    %208 = arith.divf %206, %207 : vector<8x128xf32>
    %209 = vector.extract_strided_slice %199 {offsets = [0, 128], sizes = [8, 128], strides = [1, 1]} : vector<8x384xf32> to vector<8x128xf32>
    %210 = vector.extract_strided_slice %200 {offsets = [0, 128], sizes = [8, 128], strides = [1, 1]} : vector<8x384xf32> to vector<8x128xf32>
    %211 = arith.addf %209, %210 : vector<8x128xf32>
    %212 = arith.negf %211 : vector<8x128xf32>
    %213 = math.exp %212 : vector<8x128xf32>
    %cst_59 = arith.constant 1.000000e+00 : f32
    %214 = vector.broadcast %cst_59 : f32 to vector<8x128xf32>
    %215 = arith.addf %214, %213 : vector<8x128xf32>
    %216 = arith.divf %214, %215 : vector<8x128xf32>
    %217 = vector.extract_strided_slice %199 {offsets = [0, 256], sizes = [8, 128], strides = [1, 1]} : vector<8x384xf32> to vector<8x128xf32>
    %218 = vector.extract_strided_slice %200 {offsets = [0, 256], sizes = [8, 128], strides = [1, 1]} : vector<8x384xf32> to vector<8x128xf32>
    %219 = arith.addf %218, %13 : vector<8x128xf32>
    %220 = arith.mulf %208, %219 : vector<8x128xf32>
    %221 = arith.addf %217, %220 : vector<8x128xf32>
    %222 = math.tanh %221 : vector<8x128xf32>
    %cst_60 = arith.constant 1.000000e+00 : f32
    %223 = vector.broadcast %cst_60 : f32 to vector<8x128xf32>
    %224 = arith.subf %223, %216 : vector<8x128xf32>
    %225 = arith.mulf %224, %222 : vector<8x128xf32>
    %226 = arith.mulf %216, %191 : vector<8x128xf32>
    %227 = arith.addf %225, %226 : vector<8x128xf32>
    %c0_61 = arith.constant 0 : index
    %228 = arith.index_cast %197 : i32 to index
    %c0_62 = arith.constant 0 : index
    %229 = vector.load %arg7[%c0_61, %228, %c0_62] : memref<1x64x128xf32, #tpu.memory_space<vmem>>, vector<1x8x128xf32>
    %230 = vector.shape_cast %229 : vector<1x8x128xf32> to vector<8x128xf32>
    %231 = vector.shape_cast %227 : vector<8x128xf32> to vector<1x8x128xf32>
    tpu.vector_store %arg7[%c0_61, %228, %c0_62], %231 {strides = array<i32>} : memref<1x64x128xf32, #tpu.memory_space<vmem>>, vector<1x8x128xf32>,
    %c6_i32 = arith.constant 6 : i32
    %c8_i32_63 = arith.constant 8 : i32
    %232 = arith.muli %c6_i32, %c8_i32_63 : i32
    %233 = tpu.assume_multiple %232, 8 : i32
    %234 = arith.index_cast %233 : i32 to index
    %c0_64 = arith.constant 0 : index
    %235 = vector.load %arg9[%234, %c0_64] : memref<64x384xf32, #tpu.memory_space<vmem>>, vector<8x384xf32>
    %cst_65 = arith.constant dense<0.000000e+00> : vector<8x384xf32>
    %236 = tpu.matmul %227, %14, %cst_65 {dimension_numbers = #tpu.dot_dimension_numbers<[1], [0], [0], [1], [0, 0, 1, 1], [], []>} : vector<8x128xf32>, vector<128x384xf32>, vector<8x384xf32> -> vector<8x384xf32>
    %237 = vector.extract_strided_slice %235 {offsets = [0, 0], sizes = [8, 128], strides = [1, 1]} : vector<8x384xf32> to vector<8x128xf32>
    %238 = vector.extract_strided_slice %236 {offsets = [0, 0], sizes = [8, 128], strides = [1, 1]} : vector<8x384xf32> to vector<8x128xf32>
    %239 = arith.addf %237, %238 : vector<8x128xf32>
    %240 = arith.negf %239 : vector<8x128xf32>
    %241 = math.exp %240 : vector<8x128xf32>
    %cst_66 = arith.constant 1.000000e+00 : f32
    %242 = vector.broadcast %cst_66 : f32 to vector<8x128xf32>
    %243 = arith.addf %242, %241 : vector<8x128xf32>
    %244 = arith.divf %242, %243 : vector<8x128xf32>
    %245 = vector.extract_strided_slice %235 {offsets = [0, 128], sizes = [8, 128], strides = [1, 1]} : vector<8x384xf32> to vector<8x128xf32>
    %246 = vector.extract_strided_slice %236 {offsets = [0, 128], sizes = [8, 128], strides = [1, 1]} : vector<8x384xf32> to vector<8x128xf32>
    %247 = arith.addf %245, %246 : vector<8x128xf32>
    %248 = arith.negf %247 : vector<8x128xf32>
    %249 = math.exp %248 : vector<8x128xf32>
    %cst_67 = arith.constant 1.000000e+00 : f32
    %250 = vector.broadcast %cst_67 : f32 to vector<8x128xf32>
    %251 = arith.addf %250, %249 : vector<8x128xf32>
    %252 = arith.divf %250, %251 : vector<8x128xf32>
    %253 = vector.extract_strided_slice %235 {offsets = [0, 256], sizes = [8, 128], strides = [1, 1]} : vector<8x384xf32> to vector<8x128xf32>
    %254 = vector.extract_strided_slice %236 {offsets = [0, 256], sizes = [8, 128], strides = [1, 1]} : vector<8x384xf32> to vector<8x128xf32>
    %255 = arith.addf %254, %13 : vector<8x128xf32>
    %256 = arith.mulf %244, %255 : vector<8x128xf32>
    %257 = arith.addf %253, %256 : vector<8x128xf32>
    %258 = math.tanh %257 : vector<8x128xf32>
    %cst_68 = arith.constant 1.000000e+00 : f32
    %259 = vector.broadcast %cst_68 : f32 to vector<8x128xf32>
    %260 = arith.subf %259, %252 : vector<8x128xf32>
    %261 = arith.mulf %260, %258 : vector<8x128xf32>
    %262 = arith.mulf %252, %227 : vector<8x128xf32>
    %263 = arith.addf %261, %262 : vector<8x128xf32>
    %c0_69 = arith.constant 0 : index
    %264 = arith.index_cast %233 : i32 to index
    %c0_70 = arith.constant 0 : index
    %265 = vector.load %arg7[%c0_69, %264, %c0_70] : memref<1x64x128xf32, #tpu.memory_space<vmem>>, vector<1x8x128xf32>
    %266 = vector.shape_cast %265 : vector<1x8x128xf32> to vector<8x128xf32>
    %267 = vector.shape_cast %263 : vector<8x128xf32> to vector<1x8x128xf32>
    tpu.vector_store %arg7[%c0_69, %264, %c0_70], %267 {strides = array<i32>} : memref<1x64x128xf32, #tpu.memory_space<vmem>>, vector<1x8x128xf32>,
    %c7_i32 = arith.constant 7 : i32
    %c8_i32_71 = arith.constant 8 : i32
    %268 = arith.muli %c7_i32, %c8_i32_71 : i32
    %269 = tpu.assume_multiple %268, 8 : i32
    %270 = arith.index_cast %269 : i32 to index
    %c0_72 = arith.constant 0 : index
    %271 = vector.load %arg9[%270, %c0_72] : memref<64x384xf32, #tpu.memory_space<vmem>>, vector<8x384xf32>
    %cst_73 = arith.constant dense<0.000000e+00> : vector<8x384xf32>
    %272 = tpu.matmul %263, %14, %cst_73 {dimension_numbers = #tpu.dot_dimension_numbers<[1], [0], [0], [1], [0, 0, 1, 1], [], []>} : vector<8x128xf32>, vector<128x384xf32>, vector<8x384xf32> -> vector<8x384xf32>
    %273 = vector.extract_strided_slice %271 {offsets = [0, 0], sizes = [8, 128], strides = [1, 1]} : vector<8x384xf32> to vector<8x128xf32>
    %274 = vector.extract_strided_slice %272 {offsets = [0, 0], sizes = [8, 128], strides = [1, 1]} : vector<8x384xf32> to vector<8x128xf32>
    %275 = arith.addf %273, %274 : vector<8x128xf32>
    %276 = arith.negf %275 : vector<8x128xf32>
    %277 = math.exp %276 : vector<8x128xf32>
    %cst_74 = arith.constant 1.000000e+00 : f32
    %278 = vector.broadcast %cst_74 : f32 to vector<8x128xf32>
    %279 = arith.addf %278, %277 : vector<8x128xf32>
    %280 = arith.divf %278, %279 : vector<8x128xf32>
    %281 = vector.extract_strided_slice %271 {offsets = [0, 128], sizes = [8, 128], strides = [1, 1]} : vector<8x384xf32> to vector<8x128xf32>
    %282 = vector.extract_strided_slice %272 {offsets = [0, 128], sizes = [8, 128], strides = [1, 1]} : vector<8x384xf32> to vector<8x128xf32>
    %283 = arith.addf %281, %282 : vector<8x128xf32>
    %284 = arith.negf %283 : vector<8x128xf32>
    %285 = math.exp %284 : vector<8x128xf32>
    %cst_75 = arith.constant 1.000000e+00 : f32
    %286 = vector.broadcast %cst_75 : f32 to vector<8x128xf32>
    %287 = arith.addf %286, %285 : vector<8x128xf32>
    %288 = arith.divf %286, %287 : vector<8x128xf32>
    %289 = vector.extract_strided_slice %271 {offsets = [0, 256], sizes = [8, 128], strides = [1, 1]} : vector<8x384xf32> to vector<8x128xf32>
    %290 = vector.extract_strided_slice %272 {offsets = [0, 256], sizes = [8, 128], strides = [1, 1]} : vector<8x384xf32> to vector<8x128xf32>
    %291 = arith.addf %290, %13 : vector<8x128xf32>
    %292 = arith.mulf %280, %291 : vector<8x128xf32>
    %293 = arith.addf %289, %292 : vector<8x128xf32>
    %294 = math.tanh %293 : vector<8x128xf32>
    %cst_76 = arith.constant 1.000000e+00 : f32
    %295 = vector.broadcast %cst_76 : f32 to vector<8x128xf32>
    %296 = arith.subf %295, %288 : vector<8x128xf32>
    %297 = arith.mulf %296, %294 : vector<8x128xf32>
    %298 = arith.mulf %288, %263 : vector<8x128xf32>
    %299 = arith.addf %297, %298 : vector<8x128xf32>
    %c0_77 = arith.constant 0 : index
    %300 = arith.index_cast %269 : i32 to index
    %c0_78 = arith.constant 0 : index
    %301 = vector.load %arg7[%c0_77, %300, %c0_78] : memref<1x64x128xf32, #tpu.memory_space<vmem>>, vector<1x8x128xf32>
    %302 = vector.shape_cast %301 : vector<1x8x128xf32> to vector<8x128xf32>
    %303 = vector.shape_cast %299 : vector<8x128xf32> to vector<1x8x128xf32>
    tpu.vector_store %arg7[%c0_77, %300, %c0_78], %303 {strides = array<i32>} : memref<1x64x128xf32, #tpu.memory_space<vmem>>, vector<1x8x128xf32>,
    %c8_i32_79 = arith.constant 8 : i32
    %c0_80 = arith.constant 0 : index
    %c0_81 = arith.constant 0 : index
    %304 = vector.load %arg8[%c0_80, %c0_81] : memref<8x128xf32, #tpu.memory_space<vmem>>, vector<8x128xf32>
    tpu.vector_store %arg8[%c0_80, %c0_81], %299 {strides = array<i32>} : memref<8x128xf32, #tpu.memory_space<vmem>>, vector<8x128xf32>,
    return
  }
  func.func @transform_0(%arg0: i32, %arg1: i32) -> (i32, i32, i32) {
    %c0_i32 = arith.constant 0 : i32
    %c0_i32_0 = arith.constant 0 : i32
    return %arg0, %arg1, %c0_i32 : i32, i32, i32
  }
  func.func @transform_1(%arg0: i32, %arg1: i32) -> (i32, i32) {
    %c0_i32 = arith.constant 0 : i32
    %c0_i32_0 = arith.constant 0 : i32
    %c0_i32_1 = arith.constant 0 : i32
    return %c0_i32, %c0_i32_0 : i32, i32
  }
  func.func @transform_2(%arg0: i32, %arg1: i32) -> (i32, i32) {
    %c0_i32 = arith.constant 0 : i32
    %c0_i32_0 = arith.constant 0 : i32
    %c0_i32_1 = arith.constant 0 : i32
    return %c0_i32, %c0_i32_0 : i32, i32
  }
  func.func @transform_3(%arg0: i32, %arg1: i32) -> (i32, i32) {
    %c0_i32 = arith.constant 0 : i32
    %c0_i32_0 = arith.constant 0 : i32
    %c0_i32_1 = arith.constant 0 : i32
    return %c0_i32, %c0_i32_0 : i32, i32
  }
  func.func @transform_4(%arg0: i32, %arg1: i32) -> (i32, i32) {
    %c0_i32 = arith.constant 0 : i32
    %c0_i32_0 = arith.constant 0 : i32
    %c0_i32_1 = arith.constant 0 : i32
    return %c0_i32, %c0_i32_0 : i32, i32
  }
  func.func @transform_5(%arg0: i32, %arg1: i32) -> (i32, i32, i32) {
    %c0_i32 = arith.constant 0 : i32
    %c0_i32_0 = arith.constant 0 : i32
    return %arg0, %arg1, %c0_i32 : i32, i32, i32
  }
}

</mosaic_0001>

<llo_original>
// kernel: tpu_custom_call.1
$region0: #{tpu_custom_call.1}
  #allocation0 [shape = 'u32[]', space=smem, size = 0x4, offset = 0x4, fixed_abs, tag = 'smem constant byte address 0x4 - core index']
  #allocation1 [shape = 'u32[144,128]{1,0:T(1,128)}', space=vmem, size = 0x12000, scoped, tag = 'internal scratch']
  #allocation2 [shape = 'f32[8,128]{1,0:T(8,128)}', space=vmem, size = 0x1000, scoped, tag = 'scratch operand']
  #allocation3 [shape = 'f32[64,384]{1,0:T(8,128)}', space=vmem, size = 0x18000, scoped, tag = 'scratch operand']
  %s0 = inlined_call_operand.vmem [shape: f32[1,64,16], index: 0, kind: input, shape index: {}]
  %s1 = inlined_call_operand.vmem [shape: f32[16,384], index: 1, kind: input, shape index: {}]
  %s2 = inlined_call_operand.vmem [shape: f32[1,384], index: 2, kind: input, shape index: {}]
  %s3 = inlined_call_operand.hbm [shape: f32[128,384], index: 3, kind: input, shape index: {}]
  %s4 = inlined_call_operand.vmem [shape: f32[1,128], index: 4, kind: input, shape index: {}]
  %s5 = inlined_call_operand.hbm [shape: f32[1,64,128], index: 5, kind: output, shape index: {}]
  %s6 = sld [smem:[#allocation0]]
  $region38: #{tpu_custom_call.1} parent=0
    _
  %s8 = ssub.s32 1, %s6
  %s9 = scalar_select 0, %s8, %s6
  $region1: #{tpu_custom_call.1} parent=0
    #allocation4 [shape = 'u8[196608]{0}', space=vmem, size = 0x30000, scoped, tag = 'input window, operand 3, single buffered']
    #allocation5 [shape = 's32[1]{0}', space=sflag, size = 0x4, scoped, tag = 'scoped memory for tpu_custom_call.1']
    #allocation6 [shape = 's32[1]{0}', space=sflag, size = 0x4, scoped, tag = 'scoped memory for tpu_custom_call.1']
    #allocation7 [shape = 'u8[32768]{0}', space=vmem, size = 0x8000, scoped, tag = 'output window, operand 0, single buffered']
    %10 = vsyncpa [#allocation5], 0
    %11 = vsyncpa [#allocation6], 0
    // Predicated region
    $region2: #{tpu_custom_call.1} parent=1 // pred_check
      _
    $region3: #{tpu_custom_call.1} parent=1 // pred_check_branch
      %13 = sbr.rel (0) target = $region5
    $region4: #{tpu_custom_call.1} parent=1 // pred_region
      _
    $region5: #{tpu_custom_call.1} parent=1 // pred_fallthru
      _
    // Predicated region
    $region6: #{tpu_custom_call.1} parent=1 // pred_check
      _
    $region7: #{tpu_custom_call.1} parent=1 // pred_check_branch
      %15 = sbr.rel (0) target = $region9
    $region8: #{tpu_custom_call.1} parent=1 // pred_region
      _
    $region9: #{tpu_custom_call.1} parent=1 // pred_fallthru
      _
    // Predicated region
    $region10: #{tpu_custom_call.1} parent=1 // pred_check
      _
    $region11: #{tpu_custom_call.1} parent=1 // pred_check_branch
      %17 = sbr.rel (0) target = $region13
    $region12: #{tpu_custom_call.1} parent=1 // pred_region
      _
    $region13: #{tpu_custom_call.1} parent=1 // pred_fallthru
      _
    // Predicated region
    $region14: #{tpu_custom_call.1} parent=1 // pred_check
      _
    $region15: #{tpu_custom_call.1} parent=1 // pred_check_branch
      %19 = sbr.rel (0) target = $region17
    $region16: #{tpu_custom_call.1} parent=1 // pred_region
      %s21 = ssub.s32 6144, 6144
      %22 = vsyncadd [#allocation5], %s21
      %s23 = sshll.u32 [#allocation4], 4
      %s24 = int_to_ptr.vmem [resolvable:$true] %s23
      %29 = dma.hbm_to_vmem [thread:$0]  %s3, 6144, %s24, [#allocation5], 384, 384, 24
    $region17: #{tpu_custom_call.1} parent=1 // pred_fallthru
      _
    // Predicated region
    $region18: #{tpu_custom_call.1} parent=1 // pred_check
      _
    $region19: #{tpu_custom_call.1} parent=1 // pred_check_branch
      %31 = sbr.rel (0) target = $region21
    $region20: #{tpu_custom_call.1} parent=1 // pred_region
      _
    $region21: #{tpu_custom_call.1} parent=1 // pred_fallthru
      _
    // Predicated region
    $region22: #{tpu_custom_call.1} parent=1 // pred_check
      _
    $region23: #{tpu_custom_call.1} parent=1 // pred_check_branch
      %33 = sbr.rel (0) target = $region25
    $region24: #{tpu_custom_call.1} parent=1 // pred_region
      %34 = dma.done [#allocation5], 6144
    $region25: #{tpu_custom_call.1} parent=1 // pred_fallthru
      _
    %p35 = scmp.eq.s32.totalorder 0, 0
    // Predicated region
    $region26: #{tpu_custom_call.1} parent=1 // pred_check
      %p36 = pneg %p35
    $region27: #{tpu_custom_call.1} parent=1 // pred_check_branch
      %38 = sbr.rel (%p36) target = $region29
    $region28: #{tpu_custom_call.1} parent=1 // pred_region
      %39 = vst [vmem:[#allocation2] sm:$0xff] 0.0
    $region29: #{tpu_custom_call.1} parent=1 // pred_fallthru
      _
    %v40 = vld [vmem:[%s0] sm:$0xff]
    %v41 = vld [vmem:[%s0 + $0x8] sm:$0xff]
    %v42 = vld [vmem:[%s0 + $0x10] sm:$0xff]
    %v43 = vld [vmem:[%s0 + $0x18] sm:$0xff]
    %v44 = vld [vmem:[%s0 + $0x20] sm:$0xff]
    %v45 = vld [vmem:[%s0 + $0x28] sm:$0xff]
    %v46 = vld [vmem:[%s0 + $0x30] sm:$0xff]
    %v47 = vld [vmem:[%s0 + $0x38] sm:$0xff]
    %v48 = vld [vmem:[%s1] sm:$0xff]
    %v49 = vld [vmem:[%s1 + $0x8] sm:$0xff]
    %v50 = vld [vmem:[%s1 + $0x10] sm:$0xff]
    %v51 = vld [vmem:[%s1 + $0x18] sm:$0xff]
    %v52 = vld [vmem:[%s1 + $0x20] sm:$0xff]
    %v53 = vld [vmem:[%s1 + $0x28] sm:$0xff]
    %v54 = vld [vmem:[%s2] sm:$0x7]
    %v56 = vlaneseq
    %v57 = vshrl.u32 %v56, 7
    %v58 = vsub.s32 0, %v57
    %v59 = vrot.slane %v54, %v58
    %v60 = vlaneseq
    %v61 = vshrl.u32 %v60, 7
    %v62 = vsub.s32 1, %v61
    %v63 = vrot.slane %v54, %v62
    %v64 = vlaneseq
    %v65 = vshrl.u32 %v64, 7
    %v66 = vsub.s32 2, %v65
    %v67 = vrot.slane %v54, %v66
    %vm71 = vcmask 130048
    %v73 = vsel %vm71, %v40, 0
    %v76 = vsel %vm71, %v41, 0
    %v79 = vsel %vm71, %v42, 0
    %v82 = vsel %vm71, %v43, 0
    %v85 = vsel %vm71, %v44, 0
    %v88 = vsel %vm71, %v45, 0
    %v91 = vsel %vm71, %v46, 0
    %v94 = vsel %vm71, %v47, 0
    %96 = vmatprep.subr.mxu0 0.0
    %97 = vmatpush1.msra.mxu0 0.0
    %98 = vmatprep.subr.mxu0 0.0
    %99 = vmatpush1.msra.mxu0 0.0
    %100 = vmatprep.subr.mxu0 0.0
    %101 = vmatpush1.msra.mxu0 0.0
    %102 = vmatprep.subr.mxu0 0.0
    %103 = vmatpush1.msra.mxu0 0.0
    %104 = vmatprep.subr.mxu0 0.0
    %105 = vmatpush1.msra.mxu0 0.0
    %106 = vmatprep.subr.mxu0 0.0
    %107 = vmatpush1.msra.mxu0 0.0
    %108 = vmatprep.subr.mxu0 0.0
    %109 = vmatpush1.msra.mxu0 0.0
    %110 = vmatprep.subr.mxu0 0.0
    %111 = vmatpush1.msra.mxu0 0.0
    %112 = vmatprep.subr.mxu0 0.0
    %113 = vmatpush1.msra.mxu0 0.0
    %114 = vmatprep.subr.mxu0 0.0
    %115 = vmatpush1.msra.mxu0 0.0
    %116 = vmatprep.subr.mxu0 0.0
    %117 = vmatpush1.msra.mxu0 0.0
    %118 = vmatprep.subr.mxu0 0.0
    %119 = vmatpush1.msra.mxu0 0.0
    %120 = vmatprep.subr.mxu0 0.0
    %121 = vmatpush1.msra.mxu0 0.0
    %122 = vmatprep.subr.mxu0 0.0
    %123 = vmatpush1.msra.mxu0 0.0
    %124 = vmatprep.subr.mxu0 %v52
    %125 = vmatpush1.msra.mxu0 %v51
    %126 = vmatprep.subr.mxu0 %v49
    %127 = vmatpush1.msra.mxu0 %v48
    %128 = vmatprep.subr.mxu0 0.0
    %129 = vmatpush2.msra.mxu0 0.0
    %130 = vmatprep.subr.mxu0 0.0
    %131 = vmatpush2.msra.mxu0 0.0
    %132 = vmatprep.subr.mxu0 0.0
    %133 = vmatpush2.msra.mxu0 0.0
    %134 = vmatprep.subr.mxu0 0.0
    %135 = vmatpush2.msra.mxu0 0.0
    %136 = vmatprep.subr.mxu0 0.0
    %137 = vmatpush2.msra.mxu0 0.0
    %138 = vmatprep.subr.mxu0 0.0
    %139 = vmatpush2.msra.mxu0 0.0
    %140 = vmatprep.subr.mxu0 0.0
    %141 = vmatpush2.msra.mxu0 0.0
    %142 = vmatprep.subr.mxu0 0.0
    %143 = vmatpush2.msra.mxu0 0.0
    %144 = vmatprep.subr.mxu0 0.0
    %145 = vmatpush2.msra.mxu0 0.0
    %146 = vmatprep.subr.mxu0 0.0
    %147 = vmatpush2.msra.mxu0 0.0
    %148 = vmatprep.subr.mxu0 0.0
    %149 = vmatpush2.msra.mxu0 0.0
    %150 = vmatprep.subr.mxu0 0.0
    %151 = vmatpush2.msra.mxu0 0.0
    %152 = vmatprep.subr.mxu0 0.0
    %153 = vmatpush2.msra.mxu0 0.0
    %154 = vmatprep.subr.mxu0 0.0
    %155 = vmatpush2.msra.mxu0 0.0
    %156 = vmatprep.subr.mxu0 0.0
    %157 = vmatpush2.msra.mxu0 0.0
    %158 = vmatprep.subr.mxu0 0.0
    %159 = vmatpush2.msra.mxu0 0.0
    %160 = vmatprep.mubr.f32.mxu0 0.0
    %161 = vmatmul.mubr.f32.gmra.mxu0 %v73
    %v162 = vpop.f32.mrf.mxu0
    %v163 = vadd.f32 %v59, %v162
    %v164 = vpop.f32.mrf.mxu0
    %v165 = vadd.f32 %v63, %v164
    %166 = vmatprep.mubr.f32.mxu0 0.0
    %167 = vmatmul.mubr.f32.gmra.mxu0 %v76
    %v168 = vpop.f32.mrf.mxu0
    %v169 = vadd.f32 %v59, %v168
    %v170 = vpop.f32.mrf.mxu0
    %v171 = vadd.f32 %v63, %v170
    %172 = vmatprep.mubr.f32.mxu0 0.0
    %173 = vmatmul.mubr.f32.gmra.mxu0 %v79
    %v174 = vpop.f32.mrf.mxu0
    %v175 = vadd.f32 %v59, %v174
    %v176 = vpop.f32.mrf.mxu0
    %v177 = vadd.f32 %v63, %v176
    %178 = vmatprep.mubr.f32.mxu0 0.0
    %179 = vmatmul.mubr.f32.gmra.mxu0 %v82
    %v180 = vpop.f32.mrf.mxu0
    %v181 = vadd.f32 %v59, %v180
    %v182 = vpop.f32.mrf.mxu0
    %v183 = vadd.f32 %v63, %v182
    %184 = vmatprep.mubr.f32.mxu0 0.0
    %185 = vmatmul.mubr.f32.gmra.mxu0 %v85
    %v186 = vpop.f32.mrf.mxu0
    %v187 = vadd.f32 %v59, %v186
    %v188 = vpop.f32.mrf.mxu0
    %v189 = vadd.f32 %v63, %v188
    %190 = vmatprep.mubr.f32.mxu0 0.0
    %191 = vmatmul.mubr.f32.gmra.mxu0 %v88
    %v192 = vpop.f32.mrf.mxu0
    %v193 = vadd.f32 %v59, %v192
    %v194 = vpop.f32.mrf.mxu0
    %v195 = vadd.f32 %v63, %v194
    %196 = vmatprep.mubr.f32.mxu0 0.0
    %197 = vmatmul.mubr.f32.gmra.mxu0 %v91
    %v198 = vpop.f32.mrf.mxu0
    %v199 = vadd.f32 %v59, %v198
    %v200 = vpop.f32.mrf.mxu0
    %v201 = vadd.f32 %v63, %v200
    %202 = vmatprep.mubr.f32.mxu0 0.0
    %203 = vmatmul.mubr.f32.gmra.mxu0 %v94
    %v204 = vpop.f32.mrf.mxu0
    %v205 = vadd.f32 %v59, %v204
    %v206 = vpop.f32.mrf.mxu0
    %v207 = vadd.f32 %v63, %v206
    %208 = vdwg.mxu0
    %209 = vmatprep.subr.mxu0 0.0
    %210 = vmatpush1.msra.mxu0 0.0
    %211 = vmatprep.subr.mxu0 0.0
    %212 = vmatpush1.msra.mxu0 0.0
    %213 = vmatprep.subr.mxu0 0.0
    %214 = vmatpush1.msra.mxu0 0.0
    %215 = vmatprep.subr.mxu0 0.0
    %216 = vmatpush1.msra.mxu0 0.0
    %217 = vmatprep.subr.mxu0 0.0
    %218 = vmatpush1.msra.mxu0 0.0
    %219 = vmatprep.subr.mxu0 0.0
    %220 = vmatpush1.msra.mxu0 0.0
    %221 = vmatprep.subr.mxu0 0.0
    %222 = vmatpush1.msra.mxu0 0.0
    %223 = vmatprep.subr.mxu0 0.0
    %224 = vmatpush1.msra.mxu0 0.0
    %225 = vmatprep.subr.mxu0 0.0
    %226 = vmatpush1.msra.mxu0 0.0
    %227 = vmatprep.subr.mxu0 0.0
    %228 = vmatpush1.msra.mxu0 0.0
    %229 = vmatprep.subr.mxu0 0.0
    %230 = vmatpush1.msra.mxu0 0.0
    %231 = vmatprep.subr.mxu0 0.0
    %232 = vmatpush1.msra.mxu0 0.0
    %233 = vmatprep.subr.mxu0 0.0
    %234 = vmatpush1.msra.mxu0 0.0
    %235 = vmatprep.subr.mxu0 0.0
    %236 = vmatpush1.msra.mxu0 0.0
    %237 = vmatprep.subr.mxu0 0.0
    %238 = vmatpush1.msra.mxu0 %v53
    %239 = vmatprep.subr.mxu0 0.0
    %240 = vmatpush1.msra.mxu0 %v50
    %241 = vmatprep.subr.mxu0 0.0
    %242 = vmatpush2.msra.mxu0 0.0
    %243 = vmatprep.subr.mxu0 0.0
    %244 = vmatpush2.msra.mxu0 0.0
    %245 = vmatprep.subr.mxu0 0.0
    %246 = vmatpush2.msra.mxu0 0.0
    %247 = vmatprep.subr.mxu0 0.0
    %248 = vmatpush2.msra.mxu0 0.0
    %249 = vmatprep.subr.mxu0 0.0
    %250 = vmatpush2.msra.mxu0 0.0
    %251 = vmatprep.subr.mxu0 0.0
    %252 = vmatpush2.msra.mxu0 0.0
    %253 = vmatprep.subr.mxu0 0.0
    %254 = vmatpush2.msra.mxu0 0.0
    %255 = vmatprep.subr.mxu0 0.0
    %256 = vmatpush2.msra.mxu0 0.0
    %257 = vmatprep.subr.mxu0 0.0
    %258 = vmatpush2.msra.mxu0 0.0
    %259 = vmatprep.subr.mxu0 0.0
    %260 = vmatpush2.msra.mxu0 0.0
    %261 = vmatprep.subr.mxu0 0.0
    %262 = vmatpush2.msra.mxu0 0.0
    %263 = vmatprep.subr.mxu0 0.0
    %264 = vmatpush2.msra.mxu0 0.0
    %265 = vmatprep.subr.mxu0 0.0
    %266 = vmatpush2.msra.mxu0 0.0
    %267 = vmatprep.subr.mxu0 0.0
    %268 = vmatpush2.msra.mxu0 0.0
    %269 = vmatprep.subr.mxu0 0.0
    %270 = vmatpush2.msra.mxu0 0.0
    %271 = vmatprep.subr.mxu0 0.0
    %272 = vmatpush2.msra.mxu0 0.0
    %273 = vmatprep.mubr.f32.mxu0 0.0
    %274 = vmatmul.mubr.f32.gmra.mxu0 %v73
    %v275 = vpop.f32.mrf.mxu0
    %v276 = vadd.f32 %v67, %v275
    %v277 = vpop.f32.mrf.mxu0
    %278 = vmatprep.mubr.f32.mxu0 0.0
    %279 = vmatmul.mubr.f32.gmra.mxu0 %v76
    %v280 = vpop.f32.mrf.mxu0
    %v281 = vadd.f32 %v67, %v280
    %v282 = vpop.f32.mrf.mxu0
    %283 = vmatprep.mubr.f32.mxu0 0.0
    %284 = vmatmul.mubr.f32.gmra.mxu0 %v79
    %v285 = vpop.f32.mrf.mxu0
    %v286 = vadd.f32 %v67, %v285
    %v287 = vpop.f32.mrf.mxu0
    %288 = vmatprep.mubr.f32.mxu0 0.0
    %289 = vmatmul.mubr.f32.gmra.mxu0 %v82
    %v290 = vpop.f32.mrf.mxu0
    %v291 = vadd.f32 %v67, %v290
    %v292 = vpop.f32.mrf.mxu0
    %293 = vmatprep.mubr.f32.mxu0 0.0
    %294 = vmatmul.mubr.f32.gmra.mxu0 %v85
    %v295 = vpop.f32.mrf.mxu0
    %v296 = vadd.f32 %v67, %v295
    %v297 = vpop.f32.mrf.mxu0
    %298 = vmatprep.mubr.f32.mxu0 0.0
    %299 = vmatmul.mubr.f32.gmra.mxu0 %v88
    %v300 = vpop.f32.mrf.mxu0
    %v301 = vadd.f32 %v67, %v300
    %v302 = vpop.f32.mrf.mxu0
    %303 = vmatprep.mubr.f32.mxu0 0.0
    %304 = vmatmul.mubr.f32.gmra.mxu0 %v91
    %v305 = vpop.f32.mrf.mxu0
    %v306 = vadd.f32 %v67, %v305
    %v307 = vpop.f32.mrf.mxu0
    %308 = vmatprep.mubr.f32.mxu0 0.0
    %309 = vmatmul.mubr.f32.gmra.mxu0 %v94
    %v310 = vpop.f32.mrf.mxu0
    %v311 = vadd.f32 %v67, %v310
    %v312 = vpop.f32.mrf.mxu0
    %313 = vdwg.mxu0
    %314 = vst [vmem:[#allocation3] sm:$0xff] %v163
    %315 = vst [vmem:[#allocation3 + $0x8] sm:$0xff] %v165
    %316 = vst [vmem:[#allocation3 + $0x10] sm:$0xff] %v276
    %317 = vst [vmem:[#allocation3 + $0x18] sm:$0xff] %v169
    %318 = vst [vmem:[#allocation3 + $0x20] sm:$0xff] %v171
    %319 = vst [vmem:[#allocation3 + $0x28] sm:$0xff] %v281
    %320 = vst [vmem:[#allocation3 + $0x30] sm:$0xff] %v175
    %321 = vst [vmem:[#allocation3 + $0x38] sm:$0xff] %v177
    %322 = vst [vmem:[#allocation3 + $0x40] sm:$0xff] %v286
    %323 = vst [vmem:[#allocation3 + $0x48] sm:$0xff] %v181
    %324 = vst [vmem:[#allocation3 + $0x50] sm:$0xff] %v183
    %325 = vst [vmem:[#allocation3 + $0x58] sm:$0xff] %v291
    %326 = vst [vmem:[#allocation3 + $0x60] sm:$0xff] %v187
    %327 = vst [vmem:[#allocation3 + $0x68] sm:$0xff] %v189
    %328 = vst [vmem:[#allocation3 + $0x70] sm:$0xff] %v296
    %329 = vst [vmem:[#allocation3 + $0x78] sm:$0xff] %v193
    %330 = vst [vmem:[#allocation3 + $0x80] sm:$0xff] %v195
    %331 = vst [vmem:[#allocation3 + $0x88] sm:$0xff] %v301
    %332 = vst [vmem:[#allocation3 + $0x90] sm:$0xff] %v199
    %333 = vst [vmem:[#allocation3 + $0x98] sm:$0xff] %v201
    %334 = vst [vmem:[#allocation3 + $0xa0] sm:$0xff] %v306
    %335 = vst [vmem:[#allocation3 + $0xa8] sm:$0xff] %v205
    %336 = vst [vmem:[#allocation3 + $0xb0] sm:$0xff] %v207
    %337 = vst [vmem:[#allocation3 + $0xb8] sm:$0xff] %v311
    %v338 = vld [vmem:[%s4] sm:$0x1]
    %v340 = vlaneseq
    %v341 = vshrl.u32 %v340, 7
    %v342 = vsub.s32 0, %v341
    %v343 = vrot.slane %v338, %v342
    %v345 = vld [vmem:[#allocation4] sm:$0xff]
    %v346 = vld [vmem:[#allocation4 + $0x8] sm:$0xff]
    %v347 = vld [vmem:[#allocation4 + $0x10] sm:$0xff]
    %v348 = vld [vmem:[#allocation4 + $0x18] sm:$0xff]
    %v349 = vld [vmem:[#allocation4 + $0x20] sm:$0xff]
    %v350 = vld [vmem:[#allocation4 + $0x28] sm:$0xff]
    %v351 = vld [vmem:[#allocation4 + $0x30] sm:$0xff]
    %v352 = vld [vmem:[#allocation4 + $0x38] sm:$0xff]
    %v353 = vld [vmem:[#allocation4 + $0x40] sm:$0xff]
    %v354 = vld [vmem:[#allocation4 + $0x48] sm:$0xff]
    %v355 = vld [vmem:[#allocation4 + $0x50] sm:$0xff]
    %v356 = vld [vmem:[#allocation4 + $0x58] sm:$0xff]
    %v357 = vld [vmem:[#allocation4 + $0x60] sm:$0xff]
    %v358 = vld [vmem:[#allocation4 + $0x68] sm:$0xff]
    %v359 = vld [vmem:[#allocation4 + $0x70] sm:$0xff]
    %v360 = vld [vmem:[#allocation4 + $0x78] sm:$0xff]
    %v361 = vld [vmem:[#allocation4 + $0x80] sm:$0xff]
    %v362 = vld [vmem:[#allocation4 + $0x88] sm:$0xff]
    %v363 = vld [vmem:[#allocation4 + $0x90] sm:$0xff]
    %v364 = vld [vmem:[#allocation4 + $0x98] sm:$0xff]
    %v365 = vld [vmem:[#allocation4 + $0xa0] sm:$0xff]
    %v366 = vld [vmem:[#allocation4 + $0xa8] sm:$0xff]
    %v367 = vld [vmem:[#allocation4 + $0xb0] sm:$0xff]
    %v368 = vld [vmem:[#allocation4 + $0xb8] sm:$0xff]
    %v369 = vld [vmem:[#allocation4 + $0xc0] sm:$0xff]
    %v370 = vld [vmem:[#allocation4 + $0xc8] sm:$0xff]
    %v371 = vld [vmem:[#allocation4 + $0xd0] sm:$0xff]
    %v372 = vld [vmem:[#allocation4 + $0xd8] sm:$0xff]
    %v373 = vld [vmem:[#allocation4 + $0xe0] sm:$0xff]
    %v374 = vld [vmem:[#allocation4 + $0xe8] sm:$0xff]
    %v375 = vld [vmem:[#allocation4 + $0xf0] sm:$0xff]
    %v376 = vld [vmem:[#allocation4 + $0xf8] sm:$0xff]
    %v377 = vld [vmem:[#allocation4 + $0x100] sm:$0xff]
    %v378 = vld [vmem:[#allocation4 + $0x108] sm:$0xff]
    %v379 = vld [vmem:[#allocation4 + $0x110] sm:$0xff]
    %v380 = vld [vmem:[#allocation4 + $0x118] sm:$0xff]
    %v381 = vld [vmem:[#allocation4 + $0x120] sm:$0xff]
    %v382 = vld [vmem:[#allocation4 + $0x128] sm:$0xff]
    %v383 = vld [vmem:[#allocation4 + $0x130] sm:$0xff]
    %v384 = vld [vmem:[#allocation4 + $0x138] sm:$0xff]
    %v385 = vld [vmem:[#allocation4 + $0x140] sm:$0xff]
    %v386 = vld [vmem:[#allocation4 + $0x148] sm:$0xff]
    %v387 = vld [vmem:[#allocation4 + $0x150] sm:$0xff]
    %v388 = vld [vmem:[#allocation4 + $0x158] sm:$0xff]
    %v389 = vld [vmem:[#allocation4 + $0x160] sm:$0xff]
    %v390 = vld [vmem:[#allocation4 + $0x168] sm:$0xff]
    %v391 = vld [vmem:[#allocation4 + $0x170] sm:$0xff]
    %v392 = vld [vmem:[#allocation4 + $0x178] sm:$0xff]
    %v393 = vld [vmem:[#allocation2] sm:$0xff]
    %s394 = smul.u32 0, 3
    %s395 = smul.addr %s394, 8
    %s396 = scalar_lea.vmem [#allocation3], %s395
    %v397 = vld [vmem:[%s396] sm:$0xff]
    %v398 = vld [vmem:[%s396 + $0x8] sm:$0xff]
    %v399 = vld [vmem:[%s396 + $0x10] sm:$0xff]
    %400 = vmatprep.subr.mxu0 %v391
    %401 = vmatpush1.msra.mxu0 %v390
    %402 = vmatprep.subr.mxu0 %v388
    %403 = vmatpush1.msra.mxu0 %v387
    %404 = vmatprep.subr.mxu0 %v385
    %405 = vmatpush1.msra.mxu0 %v384
    %406 = vmatprep.subr.mxu0 %v382
    %407 = vmatpush1.msra.mxu0 %v381
    %408 = vmatprep.subr.mxu0 %v379
    %409 = vmatpush1.msra.mxu0 %v378
    %410 = vmatprep.subr.mxu0 %v376
    %411 = vmatpush1.msra.mxu0 %v375
    %412 = vmatprep.subr.mxu0 %v373
    %413 = vmatpush1.msra.mxu0 %v372
    %414 = vmatprep.subr.mxu0 %v370
    %415 = vmatpush1.msra.mxu0 %v369
    %416 = vmatprep.subr.mxu0 %v367
    %417 = vmatpush1.msra.mxu0 %v366
    %418 = vmatprep.subr.mxu0 %v364
    %419 = vmatpush1.msra.mxu0 %v363
    %420 = vmatprep.subr.mxu0 %v361
    %421 = vmatpush1.msra.mxu0 %v360
    %422 = vmatprep.subr.mxu0 %v358
    %423 = vmatpush1.msra.mxu0 %v357
    %424 = vmatprep.subr.mxu0 %v355
    %425 = vmatpush1.msra.mxu0 %v354
    %426 = vmatprep.subr.mxu0 %v352
    %427 = vmatpush1.msra.mxu0 %v351
    %428 = vmatprep.subr.mxu0 %v349
    %429 = vmatpush1.msra.mxu0 %v348
    %430 = vmatprep.subr.mxu0 %v346
    %431 = vmatpush1.msra.mxu0 %v345
    %432 = vmatprep.subr.mxu0 0.0
    %433 = vmatpush2.msra.mxu0 0.0
    %434 = vmatprep.subr.mxu0 0.0
    %435 = vmatpush2.msra.mxu0 0.0
    %436 = vmatprep.subr.mxu0 0.0
    %437 = vmatpush2.msra.mxu0 0.0
    %438 = vmatprep.subr.mxu0 0.0
    %439 = vmatpush2.msra.mxu0 0.0
    %440 = vmatprep.subr.mxu0 0.0
    %441 = vmatpush2.msra.mxu0 0.0
    %442 = vmatprep.subr.mxu0 0.0
    %443 = vmatpush2.msra.mxu0 0.0
    %444 = vmatprep.subr.mxu0 0.0
    %445 = vmatpush2.msra.mxu0 0.0
    %446 = vmatprep.subr.mxu0 0.0
    %447 = vmatpush2.msra.mxu0 0.0
    %448 = vmatprep.subr.mxu0 0.0
    %449 = vmatpush2.msra.mxu0 0.0
    %450 = vmatprep.subr.mxu0 0.0
    %451 = vmatpush2.msra.mxu0 0.0
    %452 = vmatprep.subr.mxu0 0.0
    %453 = vmatpush2.msra.mxu0 0.0
    %454 = vmatprep.subr.mxu0 0.0
    %455 = vmatpush2.msra.mxu0 0.0
    %456 = vmatprep.subr.mxu0 0.0
    %457 = vmatpush2.msra.mxu0 0.0
    %458 = vmatprep.subr.mxu0 0.0
    %459 = vmatpush2.msra.mxu0 0.0
    %460 = vmatprep.subr.mxu0 0.0
    %461 = vmatpush2.msra.mxu0 0.0
    %462 = vmatprep.subr.mxu0 0.0
    %463 = vmatpush2.msra.mxu0 0.0
    %464 = vmatprep.mubr.f32.mxu0 0.0
    %465 = vmatmul.mubr.f32.gmra.mxu0 %v393
    %v466 = vpop.f32.mrf.mxu0
    %v467 = vadd.f32 0.0, %v466
    %v468 = vpop.f32.mrf.mxu0
    %v469 = vadd.f32 0.0, %v468
    %470 = vdwg.mxu0
    %471 = vmatprep.subr.mxu0 0.0
    %472 = vmatpush1.msra.mxu0 %v392
    %473 = vmatprep.subr.mxu0 0.0
    %474 = vmatpush1.msra.mxu0 %v389
    %475 = vmatprep.subr.mxu0 0.0
    %476 = vmatpush1.msra.mxu0 %v386
    %477 = vmatprep.subr.mxu0 0.0
    %478 = vmatpush1.msra.mxu0 %v383
    %479 = vmatprep.subr.mxu0 0.0
    %480 = vmatpush1.msra.mxu0 %v380
    %481 = vmatprep.subr.mxu0 0.0
    %482 = vmatpush1.msra.mxu0 %v377
    %483 = vmatprep.subr.mxu0 0.0
    %484 = vmatpush1.msra.mxu0 %v374
    %485 = vmatprep.subr.mxu0 0.0
    %486 = vmatpush1.msra.mxu0 %v371
    %487 = vmatprep.subr.mxu0 0.0
    %488 = vmatpush1.msra.mxu0 %v368
    %489 = vmatprep.subr.mxu0 0.0
    %490 = vmatpush1.msra.mxu0 %v365
    %491 = vmatprep.subr.mxu0 0.0
    %492 = vmatpush1.msra.mxu0 %v362
    %493 = vmatprep.subr.mxu0 0.0
    %494 = vmatpush1.msra.mxu0 %v359
    %495 = vmatprep.subr.mxu0 0.0
    %496 = vmatpush1.msra.mxu0 %v356
    %497 = vmatprep.subr.mxu0 0.0
    %498 = vmatpush1.msra.mxu0 %v353
    %499 = vmatprep.subr.mxu0 0.0
    %500 = vmatpush1.msra.mxu0 %v350
    %501 = vmatprep.subr.mxu0 0.0
    %502 = vmatpush1.msra.mxu0 %v347
    %503 = vmatprep.subr.mxu0 0.0
    %504 = vmatpush2.msra.mxu0 0.0
    %505 = vmatprep.subr.mxu0 0.0
    %506 = vmatpush2.msra.mxu0 0.0
    %507 = vmatprep.subr.mxu0 0.0
    %508 = vmatpush2.msra.mxu0 0.0
    %509 = vmatprep.subr.mxu0 0.0
    %510 = vmatpush2.msra.mxu0 0.0
    %511 = vmatprep.subr.mxu0 0.0
    %512 = vmatpush2.msra.mxu0 0.0
    %513 = vmatprep.subr.mxu0 0.0
    %514 = vmatpush2.msra.mxu0 0.0
    %515 = vmatprep.subr.mxu0 0.0
    %516 = vmatpush2.msra.mxu0 0.0
    %517 = vmatprep.subr.mxu0 0.0
    %518 = vmatpush2.msra.mxu0 0.0
    %519 = vmatprep.subr.mxu0 0.0
    %520 = vmatpush2.msra.mxu0 0.0
    %521 = vmatprep.subr.mxu0 0.0
    %522 = vmatpush2.msra.mxu0 0.0
    %523 = vmatprep.subr.mxu0 0.0
    %524 = vmatpush2.msra.mxu0 0.0
    %525 = vmatprep.subr.mxu0 0.0
    %526 = vmatpush2.msra.mxu0 0.0
    %527 = vmatprep.subr.mxu0 0.0
    %528 = vmatpush2.msra.mxu0 0.0
    %529 = vmatprep.subr.mxu0 0.0
    %530 = vmatpush2.msra.mxu0 0.0
    %531 = vmatprep.subr.mxu0 0.0
    %532 = vmatpush2.msra.mxu0 0.0
    %533 = vmatprep.subr.mxu0 0.0
    %534 = vmatpush2.msra.mxu0 0.0
    %535 = vmatprep.mubr.f32.mxu0 0.0
    %536 = vmatmul.mubr.f32.gmra.mxu0 %v393
    %v537 = vpop.f32.mrf.mxu0
    %v538 = vadd.f32 0.0, %v537
    %v539 = vpop.f32.mrf.mxu0
    %540 = vdwg.mxu0
    %v541 = vadd.f32 %v397, %v467
    %v542 = vxor.u32 %v541, 2147483648
    %v543 = vmul.f32 %v542, 1.442695
    %v544 = vpow.pop %v543
    %v545 = vadd.f32 %v544, 1.0
    %v546 = vrcp.pop %v545
    %v547 = vmul.f32 1.0, %v546
    %v548 = vadd.f32 %v398, %v469
    %v549 = vxor.u32 %v548, 2147483648
    %v550 = vmul.f32 %v549, 1.442695
    %v551 = vpow.pop %v550
    %v552 = vadd.f32 %v551, 1.0
    %v553 = vrcp.pop %v552
    %v554 = vmul.f32 1.0, %v553
    %v555 = vadd.f32 %v538, %v343
    %v556 = vmul.f32 %v547, %v555
    %v557 = vadd.f32 %v399, %v556
    %v558 = vtanh.pop %v557
    %v559 = vsub.f32 1.0, %v554
    %v560 = vmul.f32 %v559, %v558
    %v561 = vmul.f32 %v554, %v393
    %v562 = vadd.f32 %v560, %v561
    %563 = vst [vmem:[#allocation7] sm:$0xff] %v562
    %s564 = smul.u32 1, 3
    %s565 = smul.addr %s564, 8
    %s566 = scalar_lea.vmem [#allocation3], %s565
    %v567 = vld [vmem:[%s566] sm:$0xff]
    %v568 = vld [vmem:[%s566 + $0x8] sm:$0xff]
    %v569 = vld [vmem:[%s566 + $0x10] sm:$0xff]
    %570 = vmatprep.subr.mxu0 %v391
    %571 = vmatpush1.msra.mxu0 %v390
    %572 = vmatprep.subr.mxu0 %v388
    %573 = vmatpush1.msra.mxu0 %v387
    %574 = vmatprep.subr.mxu0 %v385
    %575 = vmatpush1.msra.mxu0 %v384
    %576 = vmatprep.subr.mxu0 %v382
    %577 = vmatpush1.msra.mxu0 %v381
    %578 = vmatprep.subr.mxu0 %v379
    %579 = vmatpush1.msra.mxu0 %v378
    %580 = vmatprep.subr.mxu0 %v376
    %581 = vmatpush1.msra.mxu0 %v375
    %582 = vmatprep.subr.mxu0 %v373
    %583 = vmatpush1.msra.mxu0 %v372
    %584 = vmatprep.subr.mxu0 %v370
    %585 = vmatpush1.msra.mxu0 %v369
    %586 = vmatprep.subr.mxu0 %v367
    %587 = vmatpush1.msra.mxu0 %v366
    %588 = vmatprep.subr.mxu0 %v364
    %589 = vmatpush1.msra.mxu0 %v363
    %590 = vmatprep.subr.mxu0 %v361
    %591 = vmatpush1.msra.mxu0 %v360
    %592 = vmatprep.subr.mxu0 %v358
    %593 = vmatpush1.msra.mxu0 %v357
    %594 = vmatprep.subr.mxu0 %v355
    %595 = vmatpush1.msra.mxu0 %v354
    %596 = vmatprep.subr.mxu0 %v352
    %597 = vmatpush1.msra.mxu0 %v351
    %598 = vmatprep.subr.mxu0 %v349
    %599 = vmatpush1.msra.mxu0 %v348
    %600 = vmatprep.subr.mxu0 %v346
    %601 = vmatpush1.msra.mxu0 %v345
    %602 = vmatprep.subr.mxu0 0.0
    %603 = vmatpush2.msra.mxu0 0.0
    %604 = vmatprep.subr.mxu0 0.0
    %605 = vmatpush2.msra.mxu0 0.0
    %606 = vmatprep.subr.mxu0 0.0
    %607 = vmatpush2.msra.mxu0 0.0
    %608 = vmatprep.subr.mxu0 0.0
    %609 = vmatpush2.msra.mxu0 0.0
    %610 = vmatprep.subr.mxu0 0.0
    %611 = vmatpush2.msra.mxu0 0.0
    %612 = vmatprep.subr.mxu0 0.0
    %613 = vmatpush2.msra.mxu0 0.0
    %614 = vmatprep.subr.mxu0 0.0
    %615 = vmatpush2.msra.mxu0 0.0
    %616 = vmatprep.subr.mxu0 0.0
    %617 = vmatpush2.msra.mxu0 0.0
    %618 = vmatprep.subr.mxu0 0.0
    %619 = vmatpush2.msra.mxu0 0.0
    %620 = vmatprep.subr.mxu0 0.0
    %621 = vmatpush2.msra.mxu0 0.0
    %622 = vmatprep.subr.mxu0 0.0
    %623 = vmatpush2.msra.mxu0 0.0
    %624 = vmatprep.subr.mxu0 0.0
    %625 = vmatpush2.msra.mxu0 0.0
    %626 = vmatprep.subr.mxu0 0.0
    %627 = vmatpush2.msra.mxu0 0.0
    %628 = vmatprep.subr.mxu0 0.0
    %629 = vmatpush2.msra.mxu0 0.0
    %630 = vmatprep.subr.mxu0 0.0
    %631 = vmatpush2.msra.mxu0 0.0
    %632 = vmatprep.subr.mxu0 0.0
    %633 = vmatpush2.msra.mxu0 0.0
    %634 = vmatprep.mubr.f32.mxu0 0.0
    %635 = vmatmul.mubr.f32.gmra.mxu0 %v562
    %v636 = vpop.f32.mrf.mxu0
    %v637 = vadd.f32 0.0, %v636
    %v638 = vpop.f32.mrf.mxu0
    %v639 = vadd.f32 0.0, %v638
    %640 = vdwg.mxu0
    %641 = vmatprep.subr.mxu0 0.0
    %642 = vmatpush1.msra.mxu0 %v392
    %643 = vmatprep.subr.mxu0 0.0
    %644 = vmatpush1.msra.mxu0 %v389
    %645 = vmatprep.subr.mxu0 0.0
    %646 = vmatpush1.msra.mxu0 %v386
    %647 = vmatprep.subr.mxu0 0.0
    %648 = vmatpush1.msra.mxu0 %v383
    %649 = vmatprep.subr.mxu0 0.0
    %650 = vmatpush1.msra.mxu0 %v380
    %651 = vmatprep.subr.mxu0 0.0
    %652 = vmatpush1.msra.mxu0 %v377
    %653 = vmatprep.subr.mxu0 0.0
    %654 = vmatpush1.msra.mxu0 %v374
    %655 = vmatprep.subr.mxu0 0.0
    %656 = vmatpush1.msra.mxu0 %v371
    %657 = vmatprep.subr.mxu0 0.0
    %658 = vmatpush1.msra.mxu0 %v368
    %659 = vmatprep.subr.mxu0 0.0
    %660 = vmatpush1.msra.mxu0 %v365
    %661 = vmatprep.subr.mxu0 0.0
    %662 = vmatpush1.msra.mxu0 %v362
    %663 = vmatprep.subr.mxu0 0.0
    %664 = vmatpush1.msra.mxu0 %v359
    %665 = vmatprep.subr.mxu0 0.0
    %666 = vmatpush1.msra.mxu0 %v356
    %667 = vmatprep.subr.mxu0 0.0
    %668 = vmatpush1.msra.mxu0 %v353
    %669 = vmatprep.subr.mxu0 0.0
    %670 = vmatpush1.msra.mxu0 %v350
    %671 = vmatprep.subr.mxu0 0.0
    %672 = vmatpush1.msra.mxu0 %v347
    %673 = vmatprep.subr.mxu0 0.0
    %674 = vmatpush2.msra.mxu0 0.0
    %675 = vmatprep.subr.mxu0 0.0
    %676 = vmatpush2.msra.mxu0 0.0
    %677 = vmatprep.subr.mxu0 0.0
    %678 = vmatpush2.msra.mxu0 0.0
    %679 = vmatprep.subr.mxu0 0.0
    %680 = vmatpush2.msra.mxu0 0.0
    %681 = vmatprep.subr.mxu0 0.0
    %682 = vmatpush2.msra.mxu0 0.0
    %683 = vmatprep.subr.mxu0 0.0
    %684 = vmatpush2.msra.mxu0 0.0
    %685 = vmatprep.subr.mxu0 0.0
    %686 = vmatpush2.msra.mxu0 0.0
    %687 = vmatprep.subr.mxu0 0.0
    %688 = vmatpush2.msra.mxu0 0.0
    %689 = vmatprep.subr.mxu0 0.0
    %690 = vmatpush2.msra.mxu0 0.0
    %691 = vmatprep.subr.mxu0 0.0
    %692 = vmatpush2.msra.mxu0 0.0
    %693 = vmatprep.subr.mxu0 0.0
    %694 = vmatpush2.msra.mxu0 0.0
    %695 = vmatprep.subr.mxu0 0.0
    %696 = vmatpush2.msra.mxu0 0.0
    %697 = vmatprep.subr.mxu0 0.0
    %698 = vmatpush2.msra.mxu0 0.0
    %699 = vmatprep.subr.mxu0 0.0
    %700 = vmatpush2.msra.mxu0 0.0
    %701 = vmatprep.subr.mxu0 0.0
    %702 = vmatpush2.msra.mxu0 0.0
    %703 = vmatprep.subr.mxu0 0.0
    %704 = vmatpush2.msra.mxu0 0.0
    %705 = vmatprep.mubr.f32.mxu0 0.0
    %706 = vmatmul.mubr.f32.gmra.mxu0 %v562
    %v707 = vpop.f32.mrf.mxu0
    %v708 = vadd.f32 0.0, %v707
    %v709 = vpop.f32.mrf.mxu0
    %710 = vdwg.mxu0
    %v711 = vadd.f32 %v567, %v637
    %v712 = vxor.u32 %v711, 2147483648
    %v713 = vmul.f32 %v712, 1.442695
    %v714 = vpow.pop %v713
    %v715 = vadd.f32 %v714, 1.0
    %v716 = vrcp.pop %v715
    %v717 = vmul.f32 1.0, %v716
    %v718 = vadd.f32 %v568, %v639
    %v719 = vxor.u32 %v718, 2147483648
    %v720 = vmul.f32 %v719, 1.442695
    %v721 = vpow.pop %v720
    %v722 = vadd.f32 %v721, 1.0
    %v723 = vrcp.pop %v722
    %v724 = vmul.f32 1.0, %v723
    %v725 = vadd.f32 %v708, %v343
    %v726 = vmul.f32 %v717, %v725
    %v727 = vadd.f32 %v569, %v726
    %v728 = vtanh.pop %v727
    %v729 = vsub.f32 1.0, %v724
    %v730 = vmul.f32 %v729, %v728
    %v731 = vmul.f32 %v724, %v562
    %v732 = vadd.f32 %v730, %v731
    %s733 = scalar_lea.vmem [#allocation7], 8
    %734 = vst [vmem:[%s733] sm:$0xff] %v732
    %s735 = smul.u32 2, 3
    %s736 = smul.addr %s735, 8
    %s737 = scalar_lea.vmem [#allocation3], %s736
    %v738 = vld [vmem:[%s737] sm:$0xff]
    %v739 = vld [vmem:[%s737 + $0x8] sm:$0xff]
    %v740 = vld [vmem:[%s737 + $0x10] sm:$0xff]
    %741 = vmatprep.subr.mxu0 %v391
    %742 = vmatpush1.msra.mxu0 %v390
    %743 = vmatprep.subr.mxu0 %v388
    %744 = vmatpush1.msra.mxu0 %v387
    %745 = vmatprep.subr.mxu0 %v385
    %746 = vmatpush1.msra.mxu0 %v384
    %747 = vmatprep.subr.mxu0 %v382
    %748 = vmatpush1.msra.mxu0 %v381
    %749 = vmatprep.subr.mxu0 %v379
    %750 = vmatpush1.msra.mxu0 %v378
    %751 = vmatprep.subr.mxu0 %v376
    %752 = vmatpush1.msra.mxu0 %v375
    %753 = vmatprep.subr.mxu0 %v373
    %754 = vmatpush1.msra.mxu0 %v372
    %755 = vmatprep.subr.mxu0 %v370
    %756 = vmatpush1.msra.mxu0 %v369
    %757 = vmatprep.subr.mxu0 %v367
    %758 = vmatpush1.msra.mxu0 %v366
    %759 = vmatprep.subr.mxu0 %v364
    %760 = vmatpush1.msra.mxu0 %v363
    %761 = vmatprep.subr.mxu0 %v361
    %762 = vmatpush1.msra.mxu0 %v360
    %763 = vmatprep.subr.mxu0 %v358
    %764 = vmatpush1.msra.mxu0 %v357
    %765 = vmatprep.subr.mxu0 %v355
    %766 = vmatpush1.msra.mxu0 %v354
    %767 = vmatprep.subr.mxu0 %v352
    %768 = vmatpush1.msra.mxu0 %v351
    %769 = vmatprep.subr.mxu0 %v349
    %770 = vmatpush1.msra.mxu0 %v348
    %771 = vmatprep.subr.mxu0 %v346
    %772 = vmatpush1.msra.mxu0 %v345
    %773 = vmatprep.subr.mxu0 0.0
    %774 = vmatpush2.msra.mxu0 0.0
    %775 = vmatprep.subr.mxu0 0.0
    %776 = vmatpush2.msra.mxu0 0.0
    %777 = vmatprep.subr.mxu0 0.0
    %778 = vmatpush2.msra.mxu0 0.0
    %779 = vmatprep.subr.mxu0 0.0
    %780 = vmatpush2.msra.mxu0 0.0
    %781 = vmatprep.subr.mxu0 0.0
    %782 = vmatpush2.msra.mxu0 0.0
    %783 = vmatprep.subr.mxu0 0.0
    %784 = vmatpush2.msra.mxu0 0.0
    %785 = vmatprep.subr.mxu0 0.0
    %786 = vmatpush2.msra.mxu0 0.0
    %787 = vmatprep.subr.mxu0 0.0
    %788 = vmatpush2.msra.mxu0 0.0
    %789 = vmatprep.subr.mxu0 0.0
    %790 = vmatpush2.msra.mxu0 0.0
    %791 = vmatprep.subr.mxu0 0.0
    %792 = vmatpush2.msra.mxu0 0.0
    %793 = vmatprep.subr.mxu0 0.0
    %794 = vmatpush2.msra.mxu0 0.0
    %795 = vmatprep.subr.mxu0 0.0
    %796 = vmatpush2.msra.mxu0 0.0
    %797 = vmatprep.subr.mxu0 0.0
    %798 = vmatpush2.msra.mxu0 0.0
    %799 = vmatprep.subr.mxu0 0.0
    %800 = vmatpush2.msra.mxu0 0.0
    %801 = vmatprep.subr.mxu0 0.0
    %802 = vmatpush2.msra.mxu0 0.0
    %803 = vmatprep.subr.mxu0 0.0
    %804 = vmatpush2.msra.mxu0 0.0
    %805 = vmatprep.mubr.f32.mxu0 0.0
    %806 = vmatmul.mubr.f32.gmra.mxu0 %v732
    %v807 = vpop.f32.mrf.mxu0
    %v808 = vadd.f32 0.0, %v807
    %v809 = vpop.f32.mrf.mxu0
    %v810 = vadd.f32 0.0, %v809
    %811 = vdwg.mxu0
    %812 = vmatprep.subr.mxu0 0.0
    %813 = vmatpush1.msra.mxu0 %v392
    %814 = vmatprep.subr.mxu0 0.0
    %815 = vmatpush1.msra.mxu0 %v389
    %816 = vmatprep.subr.mxu0 0.0
    %817 = vmatpush1.msra.mxu0 %v386
    %818 = vmatprep.subr.mxu0 0.0
    %819 = vmatpush1.msra.mxu0 %v383
    %820 = vmatprep.subr.mxu0 0.0
    %821 = vmatpush1.msra.mxu0 %v380
    %822 = vmatprep.subr.mxu0 0.0
    %823 = vmatpush1.msra.mxu0 %v377
    %824 = vmatprep.subr.mxu0 0.0
    %825 = vmatpush1.msra.mxu0 %v374
    %826 = vmatprep.subr.mxu0 0.0
    %827 = vmatpush1.msra.mxu0 %v371
    %828 = vmatprep.subr.mxu0 0.0
    %829 = vmatpush1.msra.mxu0 %v368
    %830 = vmatprep.subr.mxu0 0.0
    %831 = vmatpush1.msra.mxu0 %v365
    %832 = vmatprep.subr.mxu0 0.0
    %833 = vmatpush1.msra.mxu0 %v362
    %834 = vmatprep.subr.mxu0 0.0
    %835 = vmatpush1.msra.mxu0 %v359
    %836 = vmatprep.subr.mxu0 0.0
    %837 = vmatpush1.msra.mxu0 %v356
    %838 = vmatprep.subr.mxu0 0.0
    %839 = vmatpush1.msra.mxu0 %v353
    %840 = vmatprep.subr.mxu0 0.0
    %841 = vmatpush1.msra.mxu0 %v350
    %842 = vmatprep.subr.mxu0 0.0
    %843 = vmatpush1.msra.mxu0 %v347
    %844 = vmatprep.subr.mxu0 0.0
    %845 = vmatpush2.msra.mxu0 0.0
    %846 = vmatprep.subr.mxu0 0.0
    %847 = vmatpush2.msra.mxu0 0.0
    %848 = vmatprep.subr.mxu0 0.0
    %849 = vmatpush2.msra.mxu0 0.0
    %850 = vmatprep.subr.mxu0 0.0
    %851 = vmatpush2.msra.mxu0 0.0
    %852 = vmatprep.subr.mxu0 0.0
    %853 = vmatpush2.msra.mxu0 0.0
    %854 = vmatprep.subr.mxu0 0.0
    %855 = vmatpush2.msra.mxu0 0.0
    %856 = vmatprep.subr.mxu0 0.0
    %857 = vmatpush2.msra.mxu0 0.0
    %858 = vmatprep.subr.mxu0 0.0
    %859 = vmatpush2.msra.mxu0 0.0
    %860 = vmatprep.subr.mxu0 0.0
    %861 = vmatpush2.msra.mxu0 0.0
    %862 = vmatprep.subr.mxu0 0.0
    %863 = vmatpush2.msra.mxu0 0.0
    %864 = vmatprep.subr.mxu0 0.0
    %865 = vmatpush2.msra.mxu0 0.0
    %866 = vmatprep.subr.mxu0 0.0
    %867 = vmatpush2.msra.mxu0 0.0
    %868 = vmatprep.subr.mxu0 0.0
    %869 = vmatpush2.msra.mxu0 0.0
    %870 = vmatprep.subr.mxu0 0.0
    %871 = vmatpush2.msra.mxu0 0.0
    %872 = vmatprep.subr.mxu0 0.0
    %873 = vmatpush2.msra.mxu0 0.0
    %874 = vmatprep.subr.mxu0 0.0
    %875 = vmatpush2.msra.mxu0 0.0
    %876 = vmatprep.mubr.f32.mxu0 0.0
    %877 = vmatmul.mubr.f32.gmra.mxu0 %v732
    %v878 = vpop.f32.mrf.mxu0
    %v879 = vadd.f32 0.0, %v878
    %v880 = vpop.f32.mrf.mxu0
    %881 = vdwg.mxu0
    %v882 = vadd.f32 %v738, %v808
    %v883 = vxor.u32 %v882, 2147483648
    %v884 = vmul.f32 %v883, 1.442695
    %v885 = vpow.pop %v884
    %v886 = vadd.f32 %v885, 1.0
    %v887 = vrcp.pop %v886
    %v888 = vmul.f32 1.0, %v887
    %v889 = vadd.f32 %v739, %v810
    %v890 = vxor.u32 %v889, 2147483648
    %v891 = vmul.f32 %v890, 1.442695
    %v892 = vpow.pop %v891
    %v893 = vadd.f32 %v892, 1.0
    %v894 = vrcp.pop %v893
    %v895 = vmul.f32 1.0, %v894
    %v896 = vadd.f32 %v879, %v343
    %v897 = vmul.f32 %v888, %v896
    %v898 = vadd.f32 %v740, %v897
    %v899 = vtanh.pop %v898
    %v900 = vsub.f32 1.0, %v895
    %v901 = vmul.f32 %v900, %v899
    %v902 = vmul.f32 %v895, %v732
    %v903 = vadd.f32 %v901, %v902
    %s904 = scalar_lea.vmem [#allocation7], 16
    %905 = vst [vmem:[%s904] sm:$0xff] %v903
    %s906 = smul.u32 3, 3
    %s907 = smul.addr %s906, 8
    %s908 = scalar_lea.vmem [#allocation3], %s907
    %v909 = vld [vmem:[%s908] sm:$0xff]
    %v910 = vld [vmem:[%s908 + $0x8] sm:$0xff]
    %v911 = vld [vmem:[%s908 + $0x10] sm:$0xff]
    %912 = vmatprep.subr.mxu0 %v391
    %913 = vmatpush1.msra.mxu0 %v390
    %914 = vmatprep.subr.mxu0 %v388
    %915 = vmatpush1.msra.mxu0 %v387
    %916 = vmatprep.subr.mxu0 %v385
    %917 = vmatpush1.msra.mxu0 %v384
    %918 = vmatprep.subr.mxu0 %v382
    %919 = vmatpush1.msra.mxu0 %v381
    %920 = vmatprep.subr.mxu0 %v379
    %921 = vmatpush1.msra.mxu0 %v378
    %922 = vmatprep.subr.mxu0 %v376
    %923 = vmatpush1.msra.mxu0 %v375
    %924 = vmatprep.subr.mxu0 %v373
    %925 = vmatpush1.msra.mxu0 %v372
    %926 = vmatprep.subr.mxu0 %v370
    %927 = vmatpush1.msra.mxu0 %v369
    %928 = vmatprep.subr.mxu0 %v367
    %929 = vmatpush1.msra.mxu0 %v366
    %930 = vmatprep.subr.mxu0 %v364
    %931 = vmatpush1.msra.mxu0 %v363
    %932 = vmatprep.subr.mxu0 %v361
    %933 = vmatpush1.msra.mxu0 %v360
    %934 = vmatprep.subr.mxu0 %v358
    %935 = vmatpush1.msra.mxu0 %v357
    %936 = vmatprep.subr.mxu0 %v355
    %937 = vmatpush1.msra.mxu0 %v354
    %938 = vmatprep.subr.mxu0 %v352
    %939 = vmatpush1.msra.mxu0 %v351
    %940 = vmatprep.subr.mxu0 %v349
    %941 = vmatpush1.msra.mxu0 %v348
    %942 = vmatprep.subr.mxu0 %v346
    %943 = vmatpush1.msra.mxu0 %v345
    %944 = vmatprep.subr.mxu0 0.0
    %945 = vmatpush2.msra.mxu0 0.0
    %946 = vmatprep.subr.mxu0 0.0
    %947 = vmatpush2.msra.mxu0 0.0
    %948 = vmatprep.subr.mxu0 0.0
    %949 = vmatpush2.msra.mxu0 0.0
    %950 = vmatprep.subr.mxu0 0.0
    %951 = vmatpush2.msra.mxu0 0.0
    %952 = vmatprep.subr.mxu0 0.0
    %953 = vmatpush2.msra.mxu0 0.0
    %954 = vmatprep.subr.mxu0 0.0
    %955 = vmatpush2.msra.mxu0 0.0
    %956 = vmatprep.subr.mxu0 0.0
    %957 = vmatpush2.msra.mxu0 0.0
    %958 = vmatprep.subr.mxu0 0.0
    %959 = vmatpush2.msra.mxu0 0.0
    %960 = vmatprep.subr.mxu0 0.0
    %961 = vmatpush2.msra.mxu0 0.0
    %962 = vmatprep.subr.mxu0 0.0
    %963 = vmatpush2.msra.mxu0 0.0
    %964 = vmatprep.subr.mxu0 0.0
    %965 = vmatpush2.msra.mxu0 0.0
    %966 = vmatprep.subr.mxu0 0.0
    %967 = vmatpush2.msra.mxu0 0.0
    %968 = vmatprep.subr.mxu0 0.0
    %969 = vmatpush2.msra.mxu0 0.0
    %970 = vmatprep.subr.mxu0 0.0
    %971 = vmatpush2.msra.mxu0 0.0
    %972 = vmatprep.subr.mxu0 0.0
    %973 = vmatpush2.msra.mxu0 0.0
    %974 = vmatprep.subr.mxu0 0.0
    %975 = vmatpush2.msra.mxu0 0.0
    %976 = vmatprep.mubr.f32.mxu0 0.0
    %977 = vmatmul.mubr.f32.gmra.mxu0 %v903
    %v978 = vpop.f32.mrf.mxu0
    %v979 = vadd.f32 0.0, %v978
    %v980 = vpop.f32.mrf.mxu0
    %v981 = vadd.f32 0.0, %v980
    %982 = vdwg.mxu0
    %983 = vmatprep.subr.mxu0 0.0
    %984 = vmatpush1.msra.mxu0 %v392
    %985 = vmatprep.subr.mxu0 0.0
    %986 = vmatpush1.msra.mxu0 %v389
    %987 = vmatprep.subr.mxu0 0.0
    %988 = vmatpush1.msra.mxu0 %v386
    %989 = vmatprep.subr.mxu0 0.0
    %990 = vmatpush1.msra.mxu0 %v383
    %991 = vmatprep.subr.mxu0 0.0
    %992 = vmatpush1.msra.mxu0 %v380
    %993 = vmatprep.subr.mxu0 0.0
    %994 = vmatpush1.msra.mxu0 %v377
    %995 = vmatprep.subr.mxu0 0.0
    %996 = vmatpush1.msra.mxu0 %v374
    %997 = vmatprep.subr.mxu0 0.0
    %998 = vmatpush1.msra.mxu0 %v371
    %999 = vmatprep.subr.mxu0 0.0
    %1000 = vmatpush1.msra.mxu0 %v368
    %1001 = vmatprep.subr.mxu0 0.0
    %1002 = vmatpush1.msra.mxu0 %v365
    %1003 = vmatprep.subr.mxu0 0.0
    %1004 = vmatpush1.msra.mxu0 %v362
    %1005 = vmatprep.subr.mxu0 0.0
    %1006 = vmatpush1.msra.mxu0 %v359
    %1007 = vmatprep.subr.mxu0 0.0
    %1008 = vmatpush1.msra.mxu0 %v356
    %1009 = vmatprep.subr.mxu0 0.0
    %1010 = vmatpush1.msra.mxu0 %v353
    %1011 = vmatprep.subr.mxu0 0.0
    %1012 = vmatpush1.msra.mxu0 %v350
    %1013 = vmatprep.subr.mxu0 0.0
    %1014 = vmatpush1.msra.mxu0 %v347
    %1015 = vmatprep.subr.mxu0 0.0
    %1016 = vmatpush2.msra.mxu0 0.0
    %1017 = vmatprep.subr.mxu0 0.0
    %1018 = vmatpush2.msra.mxu0 0.0
    %1019 = vmatprep.subr.mxu0 0.0
    %1020 = vmatpush2.msra.mxu0 0.0
    %1021 = vmatprep.subr.mxu0 0.0
    %1022 = vmatpush2.msra.mxu0 0.0
    %1023 = vmatprep.subr.mxu0 0.0
    %1024 = vmatpush2.msra.mxu0 0.0
    %1025 = vmatprep.subr.mxu0 0.0
    %1026 = vmatpush2.msra.mxu0 0.0
    %1027 = vmatprep.subr.mxu0 0.0
    %1028 = vmatpush2.msra.mxu0 0.0
    %1029 = vmatprep.subr.mxu0 0.0
    %1030 = vmatpush2.msra.mxu0 0.0
    %1031 = vmatprep.subr.mxu0 0.0
    %1032 = vmatpush2.msra.mxu0 0.0
    %1033 = vmatprep.subr.mxu0 0.0
    %1034 = vmatpush2.msra.mxu0 0.0
    %1035 = vmatprep.subr.mxu0 0.0
    %1036 = vmatpush2.msra.mxu0 0.0
    %1037 = vmatprep.subr.mxu0 0.0
    %1038 = vmatpush2.msra.mxu0 0.0
    %1039 = vmatprep.subr.mxu0 0.0
    %1040 = vmatpush2.msra.mxu0 0.0
    %1041 = vmatprep.subr.mxu0 0.0
    %1042 = vmatpush2.msra.mxu0 0.0
    %1043 = vmatprep.subr.mxu0 0.0
    %1044 = vmatpush2.msra.mxu0 0.0
    %1045 = vmatprep.subr.mxu0 0.0
    %1046 = vmatpush2.msra.mxu0 0.0
    %1047 = vmatprep.mubr.f32.mxu0 0.0
    %1048 = vmatmul.mubr.f32.gmra.mxu0 %v903
    %v1049 = vpop.f32.mrf.mxu0
    %v1050 = vadd.f32 0.0, %v1049
    %v1051 = vpop.f32.mrf.mxu0
    %1052 = vdwg.mxu0
    %v1053 = vadd.f32 %v909, %v979
    %v1054 = vxor.u32 %v1053, 2147483648
    %v1055 = vmul.f32 %v1054, 1.442695
    %v1056 = vpow.pop %v1055
    %v1057 = vadd.f32 %v1056, 1.0
    %v1058 = vrcp.pop %v1057
    %v1059 = vmul.f32 1.0, %v1058
    %v1060 = vadd.f32 %v910, %v981
    %v1061 = vxor.u32 %v1060, 2147483648
    %v1062 = vmul.f32 %v1061, 1.442695
    %v1063 = vpow.pop %v1062
    %v1064 = vadd.f32 %v1063, 1.0
    %v1065 = vrcp.pop %v1064
    %v1066 = vmul.f32 1.0, %v1065
    %v1067 = vadd.f32 %v1050, %v343
    %v1068 = vmul.f32 %v1059, %v1067
    %v1069 = vadd.f32 %v911, %v1068
    %v1070 = vtanh.pop %v1069
    %v1071 = vsub.f32 1.0, %v1066
    %v1072 = vmul.f32 %v1071, %v1070
    %v1073 = vmul.f32 %v1066, %v903
    %v1074 = vadd.f32 %v1072, %v1073
    %s1075 = scalar_lea.vmem [#allocation7], 24
    %1076 = vst [vmem:[%s1075] sm:$0xff] %v1074
    %s1077 = smul.u32 4, 3
    %s1078 = smul.addr %s1077, 8
    %s1079 = scalar_lea.vmem [#allocation3], %s1078
    %v1080 = vld [vmem:[%s1079] sm:$0xff]
    %v1081 = vld [vmem:[%s1079 + $0x8] sm:$0xff]
    %v1082 = vld [vmem:[%s1079 + $0x10] sm:$0xff]
    %1083 = vmatprep.subr.mxu0 %v391
    %1084 = vmatpush1.msra.mxu0 %v390
    %1085 = vmatprep.subr.mxu0 %v388
    %1086 = vmatpush1.msra.mxu0 %v387
    %1087 = vmatprep.subr.mxu0 %v385
    %1088 = vmatpush1.msra.mxu0 %v384
    %1089 = vmatprep.subr.mxu0 %v382
    %1090 = vmatpush1.msra.mxu0 %v381
    %1091 = vmatprep.subr.mxu0 %v379
    %1092 = vmatpush1.msra.mxu0 %v378
    %1093 = vmatprep.subr.mxu0 %v376
    %1094 = vmatpush1.msra.mxu0 %v375
    %1095 = vmatprep.subr.mxu0 %v373
    %1096 = vmatpush1.msra.mxu0 %v372
    %1097 = vmatprep.subr.mxu0 %v370
    %1098 = vmatpush1.msra.mxu0 %v369
    %1099 = vmatprep.subr.mxu0 %v367
    %1100 = vmatpush1.msra.mxu0 %v366
    %1101 = vmatprep.subr.mxu0 %v364
    %1102 = vmatpush1.msra.mxu0 %v363
    %1103 = vmatprep.subr.mxu0 %v361
    %1104 = vmatpush1.msra.mxu0 %v360
    %1105 = vmatprep.subr.mxu0 %v358
    %1106 = vmatpush1.msra.mxu0 %v357
    %1107 = vmatprep.subr.mxu0 %v355
    %1108 = vmatpush1.msra.mxu0 %v354
    %1109 = vmatprep.subr.mxu0 %v352
    %1110 = vmatpush1.msra.mxu0 %v351
    %1111 = vmatprep.subr.mxu0 %v349
    %1112 = vmatpush1.msra.mxu0 %v348
    %1113 = vmatprep.subr.mxu0 %v346
    %1114 = vmatpush1.msra.mxu0 %v345
    %1115 = vmatprep.subr.mxu0 0.0
    %1116 = vmatpush2.msra.mxu0 0.0
    %1117 = vmatprep.subr.mxu0 0.0
    %1118 = vmatpush2.msra.mxu0 0.0
    %1119 = vmatprep.subr.mxu0 0.0
    %1120 = vmatpush2.msra.mxu0 0.0
    %1121 = vmatprep.subr.mxu0 0.0
    %1122 = vmatpush2.msra.mxu0 0.0
    %1123 = vmatprep.subr.mxu0 0.0
    %1124 = vmatpush2.msra.mxu0 0.0
    %1125 = vmatprep.subr.mxu0 0.0
    %1126 = vmatpush2.msra.mxu0 0.0
    %1127 = vmatprep.subr.mxu0 0.0
    %1128 = vmatpush2.msra.mxu0 0.0
    %1129 = vmatprep.subr.mxu0 0.0
    %1130 = vmatpush2.msra.mxu0 0.0
    %1131 = vmatprep.subr.mxu0 0.0
    %1132 = vmatpush2.msra.mxu0 0.0
    %1133 = vmatprep.subr.mxu0 0.0
    %1134 = vmatpush2.msra.mxu0 0.0
    %1135 = vmatprep.subr.mxu0 0.0
    %1136 = vmatpush2.msra.mxu0 0.0
    %1137 = vmatprep.subr.mxu0 0.0
    %1138 = vmatpush2.msra.mxu0 0.0
    %1139 = vmatprep.subr.mxu0 0.0
    %1140 = vmatpush2.msra.mxu0 0.0
    %1141 = vmatprep.subr.mxu0 0.0
    %1142 = vmatpush2.msra.mxu0 0.0
    %1143 = vmatprep.subr.mxu0 0.0
    %1144 = vmatpush2.msra.mxu0 0.0
    %1145 = vmatprep.subr.mxu0 0.0
    %1146 = vmatpush2.msra.mxu0 0.0
    %1147 = vmatprep.mubr.f32.mxu0 0.0
    %1148 = vmatmul.mubr.f32.gmra.mxu0 %v1074
    %v1149 = vpop.f32.mrf.mxu0
    %v1150 = vadd.f32 0.0, %v1149
    %v1151 = vpop.f32.mrf.mxu0
    %v1152 = vadd.f32 0.0, %v1151
    %1153 = vdwg.mxu0
    %1154 = vmatprep.subr.mxu0 0.0
    %1155 = vmatpush1.msra.mxu0 %v392
    %1156 = vmatprep.subr.mxu0 0.0
    %1157 = vmatpush1.msra.mxu0 %v389
    %1158 = vmatprep.subr.mxu0 0.0
    %1159 = vmatpush1.msra.mxu0 %v386
    %1160 = vmatprep.subr.mxu0 0.0
    %1161 = vmatpush1.msra.mxu0 %v383
    %1162 = vmatprep.subr.mxu0 0.0
    %1163 = vmatpush1.msra.mxu0 %v380
    %1164 = vmatprep.subr.mxu0 0.0
    %1165 = vmatpush1.msra.mxu0 %v377
    %1166 = vmatprep.subr.mxu0 0.0
    %1167 = vmatpush1.msra.mxu0 %v374
    %1168 = vmatprep.subr.mxu0 0.0
    %1169 = vmatpush1.msra.mxu0 %v371
    %1170 = vmatprep.subr.mxu0 0.0
    %1171 = vmatpush1.msra.mxu0 %v368
    %1172 = vmatprep.subr.mxu0 0.0
    %1173 = vmatpush1.msra.mxu0 %v365
    %1174 = vmatprep.subr.mxu0 0.0
    %1175 = vmatpush1.msra.mxu0 %v362
    %1176 = vmatprep.subr.mxu0 0.0
    %1177 = vmatpush1.msra.mxu0 %v359
    %1178 = vmatprep.subr.mxu0 0.0
    %1179 = vmatpush1.msra.mxu0 %v356
    %1180 = vmatprep.subr.mxu0 0.0
    %1181 = vmatpush1.msra.mxu0 %v353
    %1182 = vmatprep.subr.mxu0 0.0
    %1183 = vmatpush1.msra.mxu0 %v350
    %1184 = vmatprep.subr.mxu0 0.0
    %1185 = vmatpush1.msra.mxu0 %v347
    %1186 = vmatprep.subr.mxu0 0.0
    %1187 = vmatpush2.msra.mxu0 0.0
    %1188 = vmatprep.subr.mxu0 0.0
    %1189 = vmatpush2.msra.mxu0 0.0
    %1190 = vmatprep.subr.mxu0 0.0
    %1191 = vmatpush2.msra.mxu0 0.0
    %1192 = vmatprep.subr.mxu0 0.0
    %1193 = vmatpush2.msra.mxu0 0.0
    %1194 = vmatprep.subr.mxu0 0.0
    %1195 = vmatpush2.msra.mxu0 0.0
    %1196 = vmatprep.subr.mxu0 0.0
    %1197 = vmatpush2.msra.mxu0 0.0
    %1198 = vmatprep.subr.mxu0 0.0
    %1199 = vmatpush2.msra.mxu0 0.0
    %1200 = vmatprep.subr.mxu0 0.0
    %1201 = vmatpush2.msra.mxu0 0.0
    %1202 = vmatprep.subr.mxu0 0.0
    %1203 = vmatpush2.msra.mxu0 0.0
    %1204 = vmatprep.subr.mxu0 0.0
    %1205 = vmatpush2.msra.mxu0 0.0
    %1206 = vmatprep.subr.mxu0 0.0
    %1207 = vmatpush2.msra.mxu0 0.0
    %1208 = vmatprep.subr.mxu0 0.0
    %1209 = vmatpush2.msra.mxu0 0.0
    %1210 = vmatprep.subr.mxu0 0.0
    %1211 = vmatpush2.msra.mxu0 0.0
    %1212 = vmatprep.subr.mxu0 0.0
    %1213 = vmatpush2.msra.mxu0 0.0
    %1214 = vmatprep.subr.mxu0 0.0
    %1215 = vmatpush2.msra.mxu0 0.0
    %1216 = vmatprep.subr.mxu0 0.0
    %1217 = vmatpush2.msra.mxu0 0.0
    %1218 = vmatprep.mubr.f32.mxu0 0.0
    %1219 = vmatmul.mubr.f32.gmra.mxu0 %v1074
    %v1220 = vpop.f32.mrf.mxu0
    %v1221 = vadd.f32 0.0, %v1220
    %v1222 = vpop.f32.mrf.mxu0
    %1223 = vdwg.mxu0
    %v1224 = vadd.f32 %v1080, %v1150
    %v1225 = vxor.u32 %v1224, 2147483648
    %v1226 = vmul.f32 %v1225, 1.442695
    %v1227 = vpow.pop %v1226
    %v1228 = vadd.f32 %v1227, 1.0
    %v1229 = vrcp.pop %v1228
    %v1230 = vmul.f32 1.0, %v1229
    %v1231 = vadd.f32 %v1081, %v1152
    %v1232 = vxor.u32 %v1231, 2147483648
    %v1233 = vmul.f32 %v1232, 1.442695
    %v1234 = vpow.pop %v1233
    %v1235 = vadd.f32 %v1234, 1.0
    %v1236 = vrcp.pop %v1235
    %v1237 = vmul.f32 1.0, %v1236
    %v1238 = vadd.f32 %v1221, %v343
    %v1239 = vmul.f32 %v1230, %v1238
    %v1240 = vadd.f32 %v1082, %v1239
    %v1241 = vtanh.pop %v1240
    %v1242 = vsub.f32 1.0, %v1237
    %v1243 = vmul.f32 %v1242, %v1241
    %v1244 = vmul.f32 %v1237, %v1074
    %v1245 = vadd.f32 %v1243, %v1244
    %s1246 = scalar_lea.vmem [#allocation7], 32
    %1247 = vst [vmem:[%s1246] sm:$0xff] %v1245
    %s1248 = smul.u32 5, 3
    %s1249 = smul.addr %s1248, 8
    %s1250 = scalar_lea.vmem [#allocation3], %s1249
    %v1251 = vld [vmem:[%s1250] sm:$0xff]
    %v1252 = vld [vmem:[%s1250 + $0x8] sm:$0xff]
    %v1253 = vld [vmem:[%s1250 + $0x10] sm:$0xff]
    %1254 = vmatprep.subr.mxu0 %v391
    %1255 = vmatpush1.msra.mxu0 %v390
    %1256 = vmatprep.subr.mxu0 %v388
    %1257 = vmatpush1.msra.mxu0 %v387
    %1258 = vmatprep.subr.mxu0 %v385
    %1259 = vmatpush1.msra.mxu0 %v384
    %1260 = vmatprep.subr.mxu0 %v382
    %1261 = vmatpush1.msra.mxu0 %v381
    %1262 = vmatprep.subr.mxu0 %v379
    %1263 = vmatpush1.msra.mxu0 %v378
    %1264 = vmatprep.subr.mxu0 %v376
    %1265 = vmatpush1.msra.mxu0 %v375
    %1266 = vmatprep.subr.mxu0 %v373
    %1267 = vmatpush1.msra.mxu0 %v372
    %1268 = vmatprep.subr.mxu0 %v370
    %1269 = vmatpush1.msra.mxu0 %v369
    %1270 = vmatprep.subr.mxu0 %v367
    %1271 = vmatpush1.msra.mxu0 %v366
    %1272 = vmatprep.subr.mxu0 %v364
    %1273 = vmatpush1.msra.mxu0 %v363
    %1274 = vmatprep.subr.mxu0 %v361
    %1275 = vmatpush1.msra.mxu0 %v360
    %1276 = vmatprep.subr.mxu0 %v358
    %1277 = vmatpush1.msra.mxu0 %v357
    %1278 = vmatprep.subr.mxu0 %v355
    %1279 = vmatpush1.msra.mxu0 %v354
    %1280 = vmatprep.subr.mxu0 %v352
    %1281 = vmatpush1.msra.mxu0 %v351
    %1282 = vmatprep.subr.mxu0 %v349
    %1283 = vmatpush1.msra.mxu0 %v348
    %1284 = vmatprep.subr.mxu0 %v346
    %1285 = vmatpush1.msra.mxu0 %v345
    %1286 = vmatprep.subr.mxu0 0.0
    %1287 = vmatpush2.msra.mxu0 0.0
    %1288 = vmatprep.subr.mxu0 0.0
    %1289 = vmatpush2.msra.mxu0 0.0
    %1290 = vmatprep.subr.mxu0 0.0
    %1291 = vmatpush2.msra.mxu0 0.0
    %1292 = vmatprep.subr.mxu0 0.0
    %1293 = vmatpush2.msra.mxu0 0.0
    %1294 = vmatprep.subr.mxu0 0.0
    %1295 = vmatpush2.msra.mxu0 0.0
    %1296 = vmatprep.subr.mxu0 0.0
    %1297 = vmatpush2.msra.mxu0 0.0
    %1298 = vmatprep.subr.mxu0 0.0
    %1299 = vmatpush2.msra.mxu0 0.0
    %1300 = vmatprep.subr.mxu0 0.0
    %1301 = vmatpush2.msra.mxu0 0.0
    %1302 = vmatprep.subr.mxu0 0.0
    %1303 = vmatpush2.msra.mxu0 0.0
    %1304 = vmatprep.subr.mxu0 0.0
    %1305 = vmatpush2.msra.mxu0 0.0
    %1306 = vmatprep.subr.mxu0 0.0
    %1307 = vmatpush2.msra.mxu0 0.0
    %1308 = vmatprep.subr.mxu0 0.0
    %1309 = vmatpush2.msra.mxu0 0.0
    %1310 = vmatprep.subr.mxu0 0.0
    %1311 = vmatpush2.msra.mxu0 0.0
    %1312 = vmatprep.subr.mxu0 0.0
    %1313 = vmatpush2.msra.mxu0 0.0
    %1314 = vmatprep.subr.mxu0 0.0
    %1315 = vmatpush2.msra.mxu0 0.0
    %1316 = vmatprep.subr.mxu0 0.0
    %1317 = vmatpush2.msra.mxu0 0.0
    %1318 = vmatprep.mubr.f32.mxu0 0.0
    %1319 = vmatmul.mubr.f32.gmra.mxu0 %v1245
    %v1320 = vpop.f32.mrf.mxu0
    %v1321 = vadd.f32 0.0, %v1320
    %v1322 = vpop.f32.mrf.mxu0
    %v1323 = vadd.f32 0.0, %v1322
    %1324 = vdwg.mxu0
    %1325 = vmatprep.subr.mxu0 0.0
    %1326 = vmatpush1.msra.mxu0 %v392
    %1327 = vmatprep.subr.mxu0 0.0
    %1328 = vmatpush1.msra.mxu0 %v389
    %1329 = vmatprep.subr.mxu0 0.0
    %1330 = vmatpush1.msra.mxu0 %v386
    %1331 = vmatprep.subr.mxu0 0.0
    %1332 = vmatpush1.msra.mxu0 %v383
    %1333 = vmatprep.subr.mxu0 0.0
    %1334 = vmatpush1.msra.mxu0 %v380
    %1335 = vmatprep.subr.mxu0 0.0
    %1336 = vmatpush1.msra.mxu0 %v377
    %1337 = vmatprep.subr.mxu0 0.0
    %1338 = vmatpush1.msra.mxu0 %v374
    %1339 = vmatprep.subr.mxu0 0.0
    %1340 = vmatpush1.msra.mxu0 %v371
    %1341 = vmatprep.subr.mxu0 0.0
    %1342 = vmatpush1.msra.mxu0 %v368
    %1343 = vmatprep.subr.mxu0 0.0
    %1344 = vmatpush1.msra.mxu0 %v365
    %1345 = vmatprep.subr.mxu0 0.0
    %1346 = vmatpush1.msra.mxu0 %v362
    %1347 = vmatprep.subr.mxu0 0.0
    %1348 = vmatpush1.msra.mxu0 %v359
    %1349 = vmatprep.subr.mxu0 0.0
    %1350 = vmatpush1.msra.mxu0 %v356
    %1351 = vmatprep.subr.mxu0 0.0
    %1352 = vmatpush1.msra.mxu0 %v353
    %1353 = vmatprep.subr.mxu0 0.0
    %1354 = vmatpush1.msra.mxu0 %v350
    %1355 = vmatprep.subr.mxu0 0.0
    %1356 = vmatpush1.msra.mxu0 %v347
    %1357 = vmatprep.subr.mxu0 0.0
    %1358 = vmatpush2.msra.mxu0 0.0
    %1359 = vmatprep.subr.mxu0 0.0
    %1360 = vmatpush2.msra.mxu0 0.0
    %1361 = vmatprep.subr.mxu0 0.0
    %1362 = vmatpush2.msra.mxu0 0.0
    %1363 = vmatprep.subr.mxu0 0.0
    %1364 = vmatpush2.msra.mxu0 0.0
    %1365 = vmatprep.subr.mxu0 0.0
    %1366 = vmatpush2.msra.mxu0 0.0
    %1367 = vmatprep.subr.mxu0 0.0
    %1368 = vmatpush2.msra.mxu0 0.0
    %1369 = vmatprep.subr.mxu0 0.0
    %1370 = vmatpush2.msra.mxu0 0.0
    %1371 = vmatprep.subr.mxu0 0.0
    %1372 = vmatpush2.msra.mxu0 0.0
    %1373 = vmatprep.subr.mxu0 0.0
    %1374 = vmatpush2.msra.mxu0 0.0
    %1375 = vmatprep.subr.mxu0 0.0
    %1376 = vmatpush2.msra.mxu0 0.0
    %1377 = vmatprep.subr.mxu0 0.0
    %1378 = vmatpush2.msra.mxu0 0.0
    %1379 = vmatprep.subr.mxu0 0.0
    %1380 = vmatpush2.msra.mxu0 0.0
    %1381 = vmatprep.subr.mxu0 0.0
    %1382 = vmatpush2.msra.mxu0 0.0
    %1383 = vmatprep.subr.mxu0 0.0
    %1384 = vmatpush2.msra.mxu0 0.0
    %1385 = vmatprep.subr.mxu0 0.0
    %1386 = vmatpush2.msra.mxu0 0.0
    %1387 = vmatprep.subr.mxu0 0.0
    %1388 = vmatpush2.msra.mxu0 0.0
    %1389 = vmatprep.mubr.f32.mxu0 0.0
    %1390 = vmatmul.mubr.f32.gmra.mxu0 %v1245
    %v1391 = vpop.f32.mrf.mxu0
    %v1392 = vadd.f32 0.0, %v1391
    %v1393 = vpop.f32.mrf.mxu0
    %1394 = vdwg.mxu0
    %v1395 = vadd.f32 %v1251, %v1321
    %v1396 = vxor.u32 %v1395, 2147483648
    %v1397 = vmul.f32 %v1396, 1.442695
    %v1398 = vpow.pop %v1397
    %v1399 = vadd.f32 %v1398, 1.0
    %v1400 = vrcp.pop %v1399
    %v1401 = vmul.f32 1.0, %v1400
    %v1402 = vadd.f32 %v1252, %v1323
    %v1403 = vxor.u32 %v1402, 2147483648
    %v1404 = vmul.f32 %v1403, 1.442695
    %v1405 = vpow.pop %v1404
    %v1406 = vadd.f32 %v1405, 1.0
    %v1407 = vrcp.pop %v1406
    %v1408 = vmul.f32 1.0, %v1407
    %v1409 = vadd.f32 %v1392, %v343
    %v1410 = vmul.f32 %v1401, %v1409
    %v1411 = vadd.f32 %v1253, %v1410
    %v1412 = vtanh.pop %v1411
    %v1413 = vsub.f32 1.0, %v1408
    %v1414 = vmul.f32 %v1413, %v1412
    %v1415 = vmul.f32 %v1408, %v1245
    %v1416 = vadd.f32 %v1414, %v1415
    %s1417 = scalar_lea.vmem [#allocation7], 40
    %1418 = vst [vmem:[%s1417] sm:$0xff] %v1416
    %s1419 = smul.u32 6, 3
    %s1420 = smul.addr %s1419, 8
    %s1421 = scalar_lea.vmem [#allocation3], %s1420
    %v1422 = vld [vmem:[%s1421] sm:$0xff]
    %v1423 = vld [vmem:[%s1421 + $0x8] sm:$0xff]
    %v1424 = vld [vmem:[%s1421 + $0x10] sm:$0xff]
    %1425 = vmatprep.subr.mxu0 %v391
    %1426 = vmatpush1.msra.mxu0 %v390
    %1427 = vmatprep.subr.mxu0 %v388
    %1428 = vmatpush1.msra.mxu0 %v387
    %1429 = vmatprep.subr.mxu0 %v385
    %1430 = vmatpush1.msra.mxu0 %v384
    %1431 = vmatprep.subr.mxu0 %v382
    %1432 = vmatpush1.msra.mxu0 %v381
    %1433 = vmatprep.subr.mxu0 %v379
    %1434 = vmatpush1.msra.mxu0 %v378
    %1435 = vmatprep.subr.mxu0 %v376
    %1436 = vmatpush1.msra.mxu0 %v375
    %1437 = vmatprep.subr.mxu0 %v373
    %1438 = vmatpush1.msra.mxu0 %v372
    %1439 = vmatprep.subr.mxu0 %v370
    %1440 = vmatpush1.msra.mxu0 %v369
    %1441 = vmatprep.subr.mxu0 %v367
    %1442 = vmatpush1.msra.mxu0 %v366
    %1443 = vmatprep.subr.mxu0 %v364
    %1444 = vmatpush1.msra.mxu0 %v363
    %1445 = vmatprep.subr.mxu0 %v361
    %1446 = vmatpush1.msra.mxu0 %v360
    %1447 = vmatprep.subr.mxu0 %v358
    %1448 = vmatpush1.msra.mxu0 %v357
    %1449 = vmatprep.subr.mxu0 %v355
    %1450 = vmatpush1.msra.mxu0 %v354
    %1451 = vmatprep.subr.mxu0 %v352
    %1452 = vmatpush1.msra.mxu0 %v351
    %1453 = vmatprep.subr.mxu0 %v349
    %1454 = vmatpush1.msra.mxu0 %v348
    %1455 = vmatprep.subr.mxu0 %v346
    %1456 = vmatpush1.msra.mxu0 %v345
    %1457 = vmatprep.subr.mxu0 0.0
    %1458 = vmatpush2.msra.mxu0 0.0
    %1459 = vmatprep.subr.mxu0 0.0
    %1460 = vmatpush2.msra.mxu0 0.0
    %1461 = vmatprep.subr.mxu0 0.0
    %1462 = vmatpush2.msra.mxu0 0.0
    %1463 = vmatprep.subr.mxu0 0.0
    %1464 = vmatpush2.msra.mxu0 0.0
    %1465 = vmatprep.subr.mxu0 0.0
    %1466 = vmatpush2.msra.mxu0 0.0
    %1467 = vmatprep.subr.mxu0 0.0
    %1468 = vmatpush2.msra.mxu0 0.0
    %1469 = vmatprep.subr.mxu0 0.0
    %1470 = vmatpush2.msra.mxu0 0.0
    %1471 = vmatprep.subr.mxu0 0.0
    %1472 = vmatpush2.msra.mxu0 0.0
    %1473 = vmatprep.subr.mxu0 0.0
    %1474 = vmatpush2.msra.mxu0 0.0
    %1475 = vmatprep.subr.mxu0 0.0
    %1476 = vmatpush2.msra.mxu0 0.0
    %1477 = vmatprep.subr.mxu0 0.0
    %1478 = vmatpush2.msra.mxu0 0.0
    %1479 = vmatprep.subr.mxu0 0.0
    %1480 = vmatpush2.msra.mxu0 0.0
    %1481 = vmatprep.subr.mxu0 0.0
    %1482 = vmatpush2.msra.mxu0 0.0
    %1483 = vmatprep.subr.mxu0 0.0
    %1484 = vmatpush2.msra.mxu0 0.0
    %1485 = vmatprep.subr.mxu0 0.0
    %1486 = vmatpush2.msra.mxu0 0.0
    %1487 = vmatprep.subr.mxu0 0.0
    %1488 = vmatpush2.msra.mxu0 0.0
    %1489 = vmatprep.mubr.f32.mxu0 0.0
    %1490 = vmatmul.mubr.f32.gmra.mxu0 %v1416
    %v1491 = vpop.f32.mrf.mxu0
    %v1492 = vadd.f32 0.0, %v1491
    %v1493 = vpop.f32.mrf.mxu0
    %v1494 = vadd.f32 0.0, %v1493
    %1495 = vdwg.mxu0
    %1496 = vmatprep.subr.mxu0 0.0
    %1497 = vmatpush1.msra.mxu0 %v392
    %1498 = vmatprep.subr.mxu0 0.0
    %1499 = vmatpush1.msra.mxu0 %v389
    %1500 = vmatprep.subr.mxu0 0.0
    %1501 = vmatpush1.msra.mxu0 %v386
    %1502 = vmatprep.subr.mxu0 0.0
    %1503 = vmatpush1.msra.mxu0 %v383
    %1504 = vmatprep.subr.mxu0 0.0
    %1505 = vmatpush1.msra.mxu0 %v380
    %1506 = vmatprep.subr.mxu0 0.0
    %1507 = vmatpush1.msra.mxu0 %v377
    %1508 = vmatprep.subr.mxu0 0.0
    %1509 = vmatpush1.msra.mxu0 %v374
    %1510 = vmatprep.subr.mxu0 0.0
    %1511 = vmatpush1.msra.mxu0 %v371
    %1512 = vmatprep.subr.mxu0 0.0
    %1513 = vmatpush1.msra.mxu0 %v368
    %1514 = vmatprep.subr.mxu0 0.0
    %1515 = vmatpush1.msra.mxu0 %v365
    %1516 = vmatprep.subr.mxu0 0.0
    %1517 = vmatpush1.msra.mxu0 %v362
    %1518 = vmatprep.subr.mxu0 0.0
    %1519 = vmatpush1.msra.mxu0 %v359
    %1520 = vmatprep.subr.mxu0 0.0
    %1521 = vmatpush1.msra.mxu0 %v356
    %1522 = vmatprep.subr.mxu0 0.0
    %1523 = vmatpush1.msra.mxu0 %v353
    %1524 = vmatprep.subr.mxu0 0.0
    %1525 = vmatpush1.msra.mxu0 %v350
    %1526 = vmatprep.subr.mxu0 0.0
    %1527 = vmatpush1.msra.mxu0 %v347
    %1528 = vmatprep.subr.mxu0 0.0
    %1529 = vmatpush2.msra.mxu0 0.0
    %1530 = vmatprep.subr.mxu0 0.0
    %1531 = vmatpush2.msra.mxu0 0.0
    %1532 = vmatprep.subr.mxu0 0.0
    %1533 = vmatpush2.msra.mxu0 0.0
    %1534 = vmatprep.subr.mxu0 0.0
    %1535 = vmatpush2.msra.mxu0 0.0
    %1536 = vmatprep.subr.mxu0 0.0
    %1537 = vmatpush2.msra.mxu0 0.0
    %1538 = vmatprep.subr.mxu0 0.0
    %1539 = vmatpush2.msra.mxu0 0.0
    %1540 = vmatprep.subr.mxu0 0.0
    %1541 = vmatpush2.msra.mxu0 0.0
    %1542 = vmatprep.subr.mxu0 0.0
    %1543 = vmatpush2.msra.mxu0 0.0
    %1544 = vmatprep.subr.mxu0 0.0
    %1545 = vmatpush2.msra.mxu0 0.0
    %1546 = vmatprep.subr.mxu0 0.0
    %1547 = vmatpush2.msra.mxu0 0.0
    %1548 = vmatprep.subr.mxu0 0.0
    %1549 = vmatpush2.msra.mxu0 0.0
    %1550 = vmatprep.subr.mxu0 0.0
    %1551 = vmatpush2.msra.mxu0 0.0
    %1552 = vmatprep.subr.mxu0 0.0
    %1553 = vmatpush2.msra.mxu0 0.0
    %1554 = vmatprep.subr.mxu0 0.0
    %1555 = vmatpush2.msra.mxu0 0.0
    %1556 = vmatprep.subr.mxu0 0.0
    %1557 = vmatpush2.msra.mxu0 0.0
    %1558 = vmatprep.subr.mxu0 0.0
    %1559 = vmatpush2.msra.mxu0 0.0
    %1560 = vmatprep.mubr.f32.mxu0 0.0
    %1561 = vmatmul.mubr.f32.gmra.mxu0 %v1416
    %v1562 = vpop.f32.mrf.mxu0
    %v1563 = vadd.f32 0.0, %v1562
    %v1564 = vpop.f32.mrf.mxu0
    %1565 = vdwg.mxu0
    %v1566 = vadd.f32 %v1422, %v1492
    %v1567 = vxor.u32 %v1566, 2147483648
    %v1568 = vmul.f32 %v1567, 1.442695
    %v1569 = vpow.pop %v1568
    %v1570 = vadd.f32 %v1569, 1.0
    %v1571 = vrcp.pop %v1570
    %v1572 = vmul.f32 1.0, %v1571
    %v1573 = vadd.f32 %v1423, %v1494
    %v1574 = vxor.u32 %v1573, 2147483648
    %v1575 = vmul.f32 %v1574, 1.442695
    %v1576 = vpow.pop %v1575
    %v1577 = vadd.f32 %v1576, 1.0
    %v1578 = vrcp.pop %v1577
    %v1579 = vmul.f32 1.0, %v1578
    %v1580 = vadd.f32 %v1563, %v343
    %v1581 = vmul.f32 %v1572, %v1580
    %v1582 = vadd.f32 %v1424, %v1581
    %v1583 = vtanh.pop %v1582
    %v1584 = vsub.f32 1.0, %v1579
    %v1585 = vmul.f32 %v1584, %v1583
    %v1586 = vmul.f32 %v1579, %v1416
    %v1587 = vadd.f32 %v1585, %v1586
    %s1588 = scalar_lea.vmem [#allocation7], 48
    %1589 = vst [vmem:[%s1588] sm:$0xff] %v1587
    %s1590 = smul.u32 7, 3
    %s1591 = smul.addr %s1590, 8
    %s1592 = scalar_lea.vmem [#allocation3], %s1591
    %v1593 = vld [vmem:[%s1592] sm:$0xff]
    %v1594 = vld [vmem:[%s1592 + $0x8] sm:$0xff]
    %v1595 = vld [vmem:[%s1592 + $0x10] sm:$0xff]
    %1596 = vmatprep.subr.mxu0 %v391
    %1597 = vmatpush1.msra.mxu0 %v390
    %1598 = vmatprep.subr.mxu0 %v388
    %1599 = vmatpush1.msra.mxu0 %v387
    %1600 = vmatprep.subr.mxu0 %v385
    %1601 = vmatpush1.msra.mxu0 %v384
    %1602 = vmatprep.subr.mxu0 %v382
    %1603 = vmatpush1.msra.mxu0 %v381
    %1604 = vmatprep.subr.mxu0 %v379
    %1605 = vmatpush1.msra.mxu0 %v378
    %1606 = vmatprep.subr.mxu0 %v376
    %1607 = vmatpush1.msra.mxu0 %v375
    %1608 = vmatprep.subr.mxu0 %v373
    %1609 = vmatpush1.msra.mxu0 %v372
    %1610 = vmatprep.subr.mxu0 %v370
    %1611 = vmatpush1.msra.mxu0 %v369
    %1612 = vmatprep.subr.mxu0 %v367
    %1613 = vmatpush1.msra.mxu0 %v366
    %1614 = vmatprep.subr.mxu0 %v364
    %1615 = vmatpush1.msra.mxu0 %v363
    %1616 = vmatprep.subr.mxu0 %v361
    %1617 = vmatpush1.msra.mxu0 %v360
    %1618 = vmatprep.subr.mxu0 %v358
    %1619 = vmatpush1.msra.mxu0 %v357
    %1620 = vmatprep.subr.mxu0 %v355
    %1621 = vmatpush1.msra.mxu0 %v354
    %1622 = vmatprep.subr.mxu0 %v352
    %1623 = vmatpush1.msra.mxu0 %v351
    %1624 = vmatprep.subr.mxu0 %v349
    %1625 = vmatpush1.msra.mxu0 %v348
    %1626 = vmatprep.subr.mxu0 %v346
    %1627 = vmatpush1.msra.mxu0 %v345
    %1628 = vmatprep.subr.mxu0 0.0
    %1629 = vmatpush2.msra.mxu0 0.0
    %1630 = vmatprep.subr.mxu0 0.0
    %1631 = vmatpush2.msra.mxu0 0.0
    %1632 = vmatprep.subr.mxu0 0.0
    %1633 = vmatpush2.msra.mxu0 0.0
    %1634 = vmatprep.subr.mxu0 0.0
    %1635 = vmatpush2.msra.mxu0 0.0
    %1636 = vmatprep.subr.mxu0 0.0
    %1637 = vmatpush2.msra.mxu0 0.0
    %1638 = vmatprep.subr.mxu0 0.0
    %1639 = vmatpush2.msra.mxu0 0.0
    %1640 = vmatprep.subr.mxu0 0.0
    %1641 = vmatpush2.msra.mxu0 0.0
    %1642 = vmatprep.subr.mxu0 0.0
    %1643 = vmatpush2.msra.mxu0 0.0
    %1644 = vmatprep.subr.mxu0 0.0
    %1645 = vmatpush2.msra.mxu0 0.0
    %1646 = vmatprep.subr.mxu0 0.0
    %1647 = vmatpush2.msra.mxu0 0.0
    %1648 = vmatprep.subr.mxu0 0.0
    %1649 = vmatpush2.msra.mxu0 0.0
    %1650 = vmatprep.subr.mxu0 0.0
    %1651 = vmatpush2.msra.mxu0 0.0
    %1652 = vmatprep.subr.mxu0 0.0
    %1653 = vmatpush2.msra.mxu0 0.0
    %1654 = vmatprep.subr.mxu0 0.0
    %1655 = vmatpush2.msra.mxu0 0.0
    %1656 = vmatprep.subr.mxu0 0.0
    %1657 = vmatpush2.msra.mxu0 0.0
    %1658 = vmatprep.subr.mxu0 0.0
    %1659 = vmatpush2.msra.mxu0 0.0
    %1660 = vmatprep.mubr.f32.mxu0 0.0
    %1661 = vmatmul.mubr.f32.gmra.mxu0 %v1587
    %v1662 = vpop.f32.mrf.mxu0
    %v1663 = vadd.f32 0.0, %v1662
    %v1664 = vpop.f32.mrf.mxu0
    %v1665 = vadd.f32 0.0, %v1664
    %1666 = vdwg.mxu0
    %1667 = vmatprep.subr.mxu0 0.0
    %1668 = vmatpush1.msra.mxu0 %v392
    %1669 = vmatprep.subr.mxu0 0.0
    %1670 = vmatpush1.msra.mxu0 %v389
    %1671 = vmatprep.subr.mxu0 0.0
    %1672 = vmatpush1.msra.mxu0 %v386
    %1673 = vmatprep.subr.mxu0 0.0
    %1674 = vmatpush1.msra.mxu0 %v383
    %1675 = vmatprep.subr.mxu0 0.0
    %1676 = vmatpush1.msra.mxu0 %v380
    %1677 = vmatprep.subr.mxu0 0.0
    %1678 = vmatpush1.msra.mxu0 %v377
    %1679 = vmatprep.subr.mxu0 0.0
    %1680 = vmatpush1.msra.mxu0 %v374
    %1681 = vmatprep.subr.mxu0 0.0
    %1682 = vmatpush1.msra.mxu0 %v371
    %1683 = vmatprep.subr.mxu0 0.0
    %1684 = vmatpush1.msra.mxu0 %v368
    %1685 = vmatprep.subr.mxu0 0.0
    %1686 = vmatpush1.msra.mxu0 %v365
    %1687 = vmatprep.subr.mxu0 0.0
    %1688 = vmatpush1.msra.mxu0 %v362
    %1689 = vmatprep.subr.mxu0 0.0
    %1690 = vmatpush1.msra.mxu0 %v359
    %1691 = vmatprep.subr.mxu0 0.0
    %1692 = vmatpush1.msra.mxu0 %v356
    %1693 = vmatprep.subr.mxu0 0.0
    %1694 = vmatpush1.msra.mxu0 %v353
    %1695 = vmatprep.subr.mxu0 0.0
    %1696 = vmatpush1.msra.mxu0 %v350
    %1697 = vmatprep.subr.mxu0 0.0
    %1698 = vmatpush1.msra.mxu0 %v347
    %1699 = vmatprep.subr.mxu0 0.0
    %1700 = vmatpush2.msra.mxu0 0.0
    %1701 = vmatprep.subr.mxu0 0.0
    %1702 = vmatpush2.msra.mxu0 0.0
    %1703 = vmatprep.subr.mxu0 0.0
    %1704 = vmatpush2.msra.mxu0 0.0
    %1705 = vmatprep.subr.mxu0 0.0
    %1706 = vmatpush2.msra.mxu0 0.0
    %1707 = vmatprep.subr.mxu0 0.0
    %1708 = vmatpush2.msra.mxu0 0.0
    %1709 = vmatprep.subr.mxu0 0.0
    %1710 = vmatpush2.msra.mxu0 0.0
    %1711 = vmatprep.subr.mxu0 0.0
    %1712 = vmatpush2.msra.mxu0 0.0
    %1713 = vmatprep.subr.mxu0 0.0
    %1714 = vmatpush2.msra.mxu0 0.0
    %1715 = vmatprep.subr.mxu0 0.0
    %1716 = vmatpush2.msra.mxu0 0.0
    %1717 = vmatprep.subr.mxu0 0.0
    %1718 = vmatpush2.msra.mxu0 0.0
    %1719 = vmatprep.subr.mxu0 0.0
    %1720 = vmatpush2.msra.mxu0 0.0
    %1721 = vmatprep.subr.mxu0 0.0
    %1722 = vmatpush2.msra.mxu0 0.0
    %1723 = vmatprep.subr.mxu0 0.0
    %1724 = vmatpush2.msra.mxu0 0.0
    %1725 = vmatprep.subr.mxu0 0.0
    %1726 = vmatpush2.msra.mxu0 0.0
    %1727 = vmatprep.subr.mxu0 0.0
    %1728 = vmatpush2.msra.mxu0 0.0
    %1729 = vmatprep.subr.mxu0 0.0
    %1730 = vmatpush2.msra.mxu0 0.0
    %1731 = vmatprep.mubr.f32.mxu0 0.0
    %1732 = vmatmul.mubr.f32.gmra.mxu0 %v1587
    %v1733 = vpop.f32.mrf.mxu0
    %v1734 = vadd.f32 0.0, %v1733
    %v1735 = vpop.f32.mrf.mxu0
    %1736 = vdwg.mxu0
    %v1737 = vadd.f32 %v1593, %v1663
    %v1738 = vxor.u32 %v1737, 2147483648
    %v1739 = vmul.f32 %v1738, 1.442695
    %v1740 = vpow.pop %v1739
    %v1741 = vadd.f32 %v1740, 1.0
    %v1742 = vrcp.pop %v1741
    %v1743 = vmul.f32 1.0, %v1742
    %v1744 = vadd.f32 %v1594, %v1665
    %v1745 = vxor.u32 %v1744, 2147483648
    %v1746 = vmul.f32 %v1745, 1.442695
    %v1747 = vpow.pop %v1746
    %v1748 = vadd.f32 %v1747, 1.0
    %v1749 = vrcp.pop %v1748
    %v1750 = vmul.f32 1.0, %v1749
    %v1751 = vadd.f32 %v1734, %v343
    %v1752 = vmul.f32 %v1743, %v1751
    %v1753 = vadd.f32 %v1595, %v1752
    %v1754 = vtanh.pop %v1753
    %v1755 = vsub.f32 1.0, %v1750
    %v1756 = vmul.f32 %v1755, %v1754
    %v1757 = vmul.f32 %v1750, %v1587
    %v1758 = vadd.f32 %v1756, %v1757
    %s1759 = scalar_lea.vmem [#allocation7], 56
    %1760 = vst [vmem:[%s1759] sm:$0xff] %v1758
    %1761 = vst [vmem:[#allocation2] sm:$0xff] %v1758
    // Predicated region
    $region30: #{tpu_custom_call.1} parent=1 // pred_check
      _
    $region31: #{tpu_custom_call.1} parent=1 // pred_check_branch
      %1763 = sbr.rel (0) target = $region33
    $region32: #{tpu_custom_call.1} parent=1 // pred_region
      %s1765 = ssub.s32 1024, 1024
      %1766 = vsyncadd [#allocation6], %s1765
      %s1767 = sshll.u32 [#allocation7], 4
      %s1768 = int_to_ptr.vmem [resolvable:$true] %s1767
      %1773 = dma.vmem_to_hbm [thread:$0]  %s1768, 1024, %s5, [#allocation6], 128, 128, 8
    $region33: #{tpu_custom_call.1} parent=1 // pred_fallthru
      _
    // Predicated region
    $region34: #{tpu_custom_call.1} parent=1 // pred_check
      _
    $region35: #{tpu_custom_call.1} parent=1 // pred_check_branch
      %1775 = sbr.rel (0) target = $region37
    $region36: #{tpu_custom_call.1} parent=1 // pred_region
      %1776 = dma.done [#allocation6], 1024
    $region37: #{tpu_custom_call.1} parent=1 // pred_fallthru
      _
    %1777 = vsyncpa [#allocation5], 1
    %1778 = vsyncpa [#allocation6], 1

// kernel: tpu_custom_call.1
$region0: #{tpu_custom_call.1}
  #allocation0 [shape = 'u32[]', space=smem, size = 0x4, offset = 0x4, fixed_abs, tag = 'smem constant byte address 0x4 - core index']
  #allocation1 [shape = 'u32[144,128]{1,0:T(1,128)}', space=vmem, size = 0x12000, scoped, tag = 'internal scratch']
  #allocation2 [shape = 'f32[8,128]{1,0:T(8,128)}', space=vmem, size = 0x1000, scoped, tag = 'scratch operand']
  #allocation3 [shape = 'f32[64,384]{1,0:T(8,128)}', space=vmem, size = 0x18000, scoped, tag = 'scratch operand']
  %s0 = inlined_call_operand.vmem [shape: f32[1,64,16], index: 0, kind: input, shape index: {}]
  %s1 = inlined_call_operand.vmem [shape: f32[16,384], index: 1, kind: input, shape index: {}]
  %s2 = inlined_call_operand.vmem [shape: f32[1,384], index: 2, kind: input, shape index: {}]
  %s3 = inlined_call_operand.hbm [shape: f32[128,384], index: 3, kind: input, shape index: {}]
  %s4 = inlined_call_operand.vmem [shape: f32[1,128], index: 4, kind: input, shape index: {}]
  %s5 = inlined_call_operand.hbm [shape: f32[1,64,128], index: 5, kind: output, shape index: {}]
  %s6 = sld [smem:[#allocation0]]
  $region38: #{tpu_custom_call.1} parent=0
    _
  %s8 = ssub.s32 1, %s6
  %s9 = scalar_select 0, %s8, %s6
  $region1: #{tpu_custom_call.1} parent=0
    #allocation4 [shape = 'u8[196608]{0}', space=vmem, size = 0x30000, scoped, tag = 'input window, operand 3, single buffered']
    #allocation5 [shape = 's32[1]{0}', space=sflag, size = 0x4, scoped, tag = 'scoped memory for tpu_custom_call.1']
    #allocation6 [shape = 's32[1]{0}', space=sflag, size = 0x4, scoped, tag = 'scoped memory for tpu_custom_call.1']
    #allocation7 [shape = 'u8[32768]{0}', space=vmem, size = 0x8000, scoped, tag = 'output window, operand 0, single buffered']
    %10 = vsyncpa [#allocation5], 0
    %11 = vsyncpa [#allocation6], 0
    // Predicated region
    $region2: #{tpu_custom_call.1} parent=1 // pred_check
      _
    $region3: #{tpu_custom_call.1} parent=1 // pred_check_branch
      %13 = sbr.rel (0) target = $region5
    $region4: #{tpu_custom_call.1} parent=1 // pred_region
      _
    $region5: #{tpu_custom_call.1} parent=1 // pred_fallthru
      _
    // Predicated region
    $region6: #{tpu_custom_call.1} parent=1 // pred_check
      _
    $region7: #{tpu_custom_call.1} parent=1 // pred_check_branch
      %15 = sbr.rel (0) target = $region9
    $region8: #{tpu_custom_call.1} parent=1 // pred_region
      _
    $region9: #{tpu_custom_call.1} parent=1 // pred_fallthru
      _
    // Predicated region
    $region10: #{tpu_custom_call.1} parent=1 // pred_check
      _
    $region11: #{tpu_custom_call.1} parent=1 // pred_check_branch
      %17 = sbr.rel (0) target = $region13
    $region12: #{tpu_custom_call.1} parent=1 // pred_region
      _
    $region13: #{tpu_custom_call.1} parent=1 // pred_fallthru
      _
    // Predicated region
    $region14: #{tpu_custom_call.1} parent=1 // pred_check
      _
    $region15: #{tpu_custom_call.1} parent=1 // pred_check_branch
      %19 = sbr.rel (0) target = $region17
    $region16: #{tpu_custom_call.1} parent=1 // pred_region
      %s21 = ssub.s32 6144, 6144
      %22 = vsyncadd [#allocation5], %s21
      %s23 = sshll.u32 [#allocation4], 4
      %s24 = int_to_ptr.vmem [resolvable:$true] %s23
      %29 = dma.hbm_to_vmem [thread:$0]  %s3, 6144, %s24, [#allocation5], 384, 384, 24
    $region17: #{tpu_custom_call.1} parent=1 // pred_fallthru
      _
    // Predicated region
    $region18: #{tpu_custom_call.1} parent=1 // pred_check
      _
    $region19: #{tpu_custom_call.1} parent=1 // pred_check_branch
      %31 = sbr.rel (0) target = $region21
    $region20: #{tpu_custom_call.1} parent=1 // pred_region
      _
    $region21: #{tpu_custom_call.1} parent=1 // pred_fallthru
      _
    // Predicated region
    $region22: #{tpu_custom_call.1} parent=1 // pred_check
      _
    $region23: #{tpu_custom_call.1} parent=1 // pred_check_branch
      %33 = sbr.rel (0) target = $region25
    $region24: #{tpu_custom_call.1} parent=1 // pred_region
      %34 = dma.done [#allocation5], 6144
    $region25: #{tpu_custom_call.1} parent=1 // pred_fallthru
      _
    %p35 = scmp.eq.s32.totalorder 0, 0
    // Predicated region
    $region26: #{tpu_custom_call.1} parent=1 // pred_check
      %p36 = pneg %p35
    $region27: #{tpu_custom_call.1} parent=1 // pred_check_branch
      %38 = sbr.rel (%p36) target = $region29
    $region28: #{tpu_custom_call.1} parent=1 // pred_region
      %39 = vst [vmem:[#allocation2] sm:$0xff] 0.0
    $region29: #{tpu_custom_call.1} parent=1 // pred_fallthru
      _
    %v40 = vld [vmem:[%s0] sm:$0xff]
    %v41 = vld [vmem:[%s0 + $0x8] sm:$0xff]
    %v42 = vld [vmem:[%s0 + $0x10] sm:$0xff]
    %v43 = vld [vmem:[%s0 + $0x18] sm:$0xff]
    %v44 = vld [vmem:[%s0 + $0x20] sm:$0xff]
    %v45 = vld [vmem:[%s0 + $0x28] sm:$0xff]
    %v46 = vld [vmem:[%s0 + $0x30] sm:$0xff]
    %v47 = vld [vmem:[%s0 + $0x38] sm:$0xff]
    %v48 = vld [vmem:[%s1] sm:$0xff]
    %v49 = vld [vmem:[%s1 + $0x8] sm:$0xff]
    %v50 = vld [vmem:[%s1 + $0x10] sm:$0xff]
    %v51 = vld [vmem:[%s1 + $0x18] sm:$0xff]
    %v52 = vld [vmem:[%s1 + $0x20] sm:$0xff]
    %v53 = vld [vmem:[%s1 + $0x28] sm:$0xff]
    %v54 = vld [vmem:[%s2] sm:$0x7]
    %v56 = vlaneseq
    %v57 = vshrl.u32 %v56, 7
    %v58 = vsub.s32 0, %v57
    %v59 = vrot.slane %v54, %v58
    %v60 = vlaneseq
    %v61 = vshrl.u32 %v60, 7
    %v62 = vsub.s32 1, %v61
    %v63 = vrot.slane %v54, %v62
    %v64 = vlaneseq
    %v65 = vshrl.u32 %v64, 7
    %v66 = vsub.s32 2, %v65
    %v67 = vrot.slane %v54, %v66
    %vm71 = vcmask 130048
    %v73 = vsel %vm71, %v40, 0
    %v76 = vsel %vm71, %v41, 0
    %v79 = vsel %vm71, %v42, 0
    %v82 = vsel %vm71, %v43, 0
    %v85 = vsel %vm71, %v44, 0
    %v88 = vsel %vm71, %v45, 0
    %v91 = vsel %vm71, %v46, 0
    %v94 = vsel %vm71, %v47, 0
    %96 = vmatprep.subr.mxu0 0.0
    %97 = vmatpush1.msra.mxu0 0.0
    %98 = vmatprep.subr.mxu0 0.0
    %99 = vmatpush1.msra.mxu0 0.0
    %100 = vmatprep.subr.mxu0 0.0
    %101 = vmatpush1.msra.mxu0 0.0
    %102 = vmatprep.subr.mxu0 0.0
    %103 = vmatpush1.msra.mxu0 0.0
    %104 = vmatprep.subr.mxu0 0.0
    %105 = vmatpush1.msra.mxu0 0.0
    %106 = vmatprep.subr.mxu0 0.0
    %107 = vmatpush1.msra.mxu0 0.0
    %108 = vmatprep.subr.mxu0 0.0
    %109 = vmatpush1.msra.mxu0 0.0
    %110 = vmatprep.subr.mxu0 0.0
    %111 = vmatpush1.msra.mxu0 0.0
    %112 = vmatprep.subr.mxu0 0.0
    %113 = vmatpush1.msra.mxu0 0.0
    %114 = vmatprep.subr.mxu0 0.0
    %115 = vmatpush1.msra.mxu0 0.0
    %116 = vmatprep.subr.mxu0 0.0
    %117 = vmatpush1.msra.mxu0 0.0
    %118 = vmatprep.subr.mxu0 0.0
    %119 = vmatpush1.msra.mxu0 0.0
    %120 = vmatprep.subr.mxu0 0.0
    %121 = vmatpush1.msra.mxu0 0.0
    %122 = vmatprep.subr.mxu0 0.0
    %123 = vmatpush1.msra.mxu0 0.0
    %124 = vmatprep.subr.mxu0 %v52
    %125 = vmatpush1.msra.mxu0 %v51
    %126 = vmatprep.subr.mxu0 %v49
    %127 = vmatpush1.msra.mxu0 %v48
    %128 = vmatprep.subr.mxu0 0.0
    %129 = vmatpush2.msra.mxu0 0.0
    %130 = vmatprep.subr.mxu0 0.0
    %131 = vmatpush2.msra.mxu0 0.0
    %132 = vmatprep.subr.mxu0 0.0
    %133 = vmatpush2.msra.mxu0 0.0
    %134 = vmatprep.subr.mxu0 0.0
    %135 = vmatpush2.msra.mxu0 0.0
    %136 = vmatprep.subr.mxu0 0.0
    %137 = vmatpush2.msra.mxu0 0.0
    %138 = vmatprep.subr.mxu0 0.0
    %139 = vmatpush2.msra.mxu0 0.0
    %140 = vmatprep.subr.mxu0 0.0
    %141 = vmatpush2.msra.mxu0 0.0
    %142 = vmatprep.subr.mxu0 0.0
    %143 = vmatpush2.msra.mxu0 0.0
    %144 = vmatprep.subr.mxu0 0.0
    %145 = vmatpush2.msra.mxu0 0.0
    %146 = vmatprep.subr.mxu0 0.0
    %147 = vmatpush2.msra.mxu0 0.0
    %148 = vmatprep.subr.mxu0 0.0
    %149 = vmatpush2.msra.mxu0 0.0
    %150 = vmatprep.subr.mxu0 0.0
    %151 = vmatpush2.msra.mxu0 0.0
    %152 = vmatprep.subr.mxu0 0.0
    %153 = vmatpush2.msra.mxu0 0.0
    %154 = vmatprep.subr.mxu0 0.0
    %155 = vmatpush2.msra.mxu0 0.0
    %156 = vmatprep.subr.mxu0 0.0
    %157 = vmatpush2.msra.mxu0 0.0
    %158 = vmatprep.subr.mxu0 0.0
    %159 = vmatpush2.msra.mxu0 0.0
    %160 = vmatprep.mubr.f32.mxu0 0.0
    %161 = vmatmul.mubr.f32.gmra.mxu0 %v73
    %v162 = vpop.f32.mrf.mxu0
    %v163 = vadd.f32 %v59, %v162
    %v164 = vpop.f32.mrf.mxu0
    %v165 = vadd.f32 %v63, %v164
    %166 = vmatprep.mubr.f32.mxu0 0.0
    %167 = vmatmul.mubr.f32.gmra.mxu0 %v76
    %v168 = vpop.f32.mrf.mxu0
    %v169 = vadd.f32 %v59, %v168
    %v170 = vpop.f32.mrf.mxu0
    %v171 = vadd.f32 %v63, %v170
    %172 = vmatprep.mubr.f32.mxu0 0.0
    %173 = vmatmul.mubr.f32.gmra.mxu0 %v79
    %v174 = vpop.f32.mrf.mxu0
    %v175 = vadd.f32 %v59, %v174
    %v176 = vpop.f32.mrf.mxu0
    %v177 = vadd.f32 %v63, %v176
    %178 = vmatprep.mubr.f32.mxu0 0.0
    %179 = vmatmul.mubr.f32.gmra.mxu0 %v82
    %v180 = vpop.f32.mrf.mxu0
    %v181 = vadd.f32 %v59, %v180
    %v182 = vpop.f32.mrf.mxu0
    %v183 = vadd.f32 %v63, %v182
    %184 = vmatprep.mubr.f32.mxu0 0.0
    %185 = vmatmul.mubr.f32.gmra.mxu0 %v85
    %v186 = vpop.f32.mrf.mxu0
    %v187 = vadd.f32 %v59, %v186
    %v188 = vpop.f32.mrf.mxu0
    %v189 = vadd.f32 %v63, %v188
    %190 = vmatprep.mubr.f32.mxu0 0.0
    %191 = vmatmul.mubr.f32.gmra.mxu0 %v88
    %v192 = vpop.f32.mrf.mxu0
    %v193 = vadd.f32 %v59, %v192
    %v194 = vpop.f32.mrf.mxu0
    %v195 = vadd.f32 %v63, %v194
    %196 = vmatprep.mubr.f32.mxu0 0.0
    %197 = vmatmul.mubr.f32.gmra.mxu0 %v91
    %v198 = vpop.f32.mrf.mxu0
    %v199 = vadd.f32 %v59, %v198
    %v200 = vpop.f32.mrf.mxu0
    %v201 = vadd.f32 %v63, %v200
    %202 = vmatprep.mubr.f32.mxu0 0.0
    %203 = vmatmul.mubr.f32.gmra.mxu0 %v94
    %v204 = vpop.f32.mrf.mxu0
    %v205 = vadd.f32 %v59, %v204
    %v206 = vpop.f32.mrf.mxu0
    %v207 = vadd.f32 %v63, %v206
    %208 = vdwg.mxu0
    %209 = vmatprep.subr.mxu0 0.0
    %210 = vmatpush1.msra.mxu0 0.0
    %211 = vmatprep.subr.mxu0 0.0
    %212 = vmatpush1.msra.mxu0 0.0
    %213 = vmatprep.subr.mxu0 0.0
    %214 = vmatpush1.msra.mxu0 0.0
    %215 = vmatprep.subr.mxu0 0.0
    %216 = vmatpush1.msra.mxu0 0.0
    %217 = vmatprep.subr.mxu0 0.0
    %218 = vmatpush1.msra.mxu0 0.0
    %219 = vmatprep.subr.mxu0 0.0
    %220 = vmatpush1.msra.mxu0 0.0
    %221 = vmatprep.subr.mxu0 0.0
    %222 = vmatpush1.msra.mxu0 0.0
    %223 = vmatprep.subr.mxu0 0.0
    %224 = vmatpush1.msra.mxu0 0.0
    %225 = vmatprep.subr.mxu0 0.0
    %226 = vmatpush1.msra.mxu0 0.0
    %227 = vmatprep.subr.mxu0 0.0
    %228 = vmatpush1.msra.mxu0 0.0
    %229 = vmatprep.subr.mxu0 0.0
    %230 = vmatpush1.msra.mxu0 0.0
    %231 = vmatprep.subr.mxu0 0.0
    %232 = vmatpush1.msra.mxu0 0.0
    %233 = vmatprep.subr.mxu0 0.0
    %234 = vmatpush1.msra.mxu0 0.0
    %235 = vmatprep.subr.mxu0 0.0
    %236 = vmatpush1.msra.mxu0 0.0
    %237 = vmatprep.subr.mxu0 0.0
    %238 = vmatpush1.msra.mxu0 %v53
    %239 = vmatprep.subr.mxu0 0.0
    %240 = vmatpush1.msra.mxu0 %v50
    %241 = vmatprep.subr.mxu0 0.0
    %242 = vmatpush2.msra.mxu0 0.0
    %243 = vmatprep.subr.mxu0 0.0
    %244 = vmatpush2.msra.mxu0 0.0
    %245 = vmatprep.subr.mxu0 0.0
    %246 = vmatpush2.msra.mxu0 0.0
    %247 = vmatprep.subr.mxu0 0.0
    %248 = vmatpush2.msra.mxu0 0.0
    %249 = vmatprep.subr.mxu0 0.0
    %250 = vmatpush2.msra.mxu0 0.0
    %251 = vmatprep.subr.mxu0 0.0
    %252 = vmatpush2.msra.mxu0 0.0
    %253 = vmatprep.subr.mxu0 0.0
    %254 = vmatpush2.msra.mxu0 0.0
    %255 = vmatprep.subr.mxu0 0.0
    %256 = vmatpush2.msra.mxu0 0.0
    %257 = vmatprep.subr.mxu0 0.0
    %258 = vmatpush2.msra.mxu0 0.0
    %259 = vmatprep.subr.mxu0 0.0
    %260 = vmatpush2.msra.mxu0 0.0
    %261 = vmatprep.subr.mxu0 0.0
    %262 = vmatpush2.msra.mxu0 0.0
    %263 = vmatprep.subr.mxu0 0.0
    %264 = vmatpush2.msra.mxu0 0.0
    %265 = vmatprep.subr.mxu0 0.0
    %266 = vmatpush2.msra.mxu0 0.0
    %267 = vmatprep.subr.mxu0 0.0
    %268 = vmatpush2.msra.mxu0 0.0
    %269 = vmatprep.subr.mxu0 0.0
    %270 = vmatpush2.msra.mxu0 0.0
    %271 = vmatprep.subr.mxu0 0.0
    %272 = vmatpush2.msra.mxu0 0.0
    %273 = vmatprep.mubr.f32.mxu0 0.0
    %274 = vmatmul.mubr.f32.gmra.mxu0 %v73
    %v275 = vpop.f32.mrf.mxu0
    %v276 = vadd.f32 %v67, %v275
    %v277 = vpop.f32.mrf.mxu0
    %278 = vmatprep.mubr.f32.mxu0 0.0
    %279 = vmatmul.mubr.f32.gmra.mxu0 %v76
    %v280 = vpop.f32.mrf.mxu0
    %v281 = vadd.f32 %v67, %v280
    %v282 = vpop.f32.mrf.mxu0
    %283 = vmatprep.mubr.f32.mxu0 0.0
    %284 = vmatmul.mubr.f32.gmra.mxu0 %v79
    %v285 = vpop.f32.mrf.mxu0
    %v286 = vadd.f32 %v67, %v285
    %v287 = vpop.f32.mrf.mxu0
    %288 = vmatprep.mubr.f32.mxu0 0.0
    %289 = vmatmul.mubr.f32.gmra.mxu0 %v82
    %v290 = vpop.f32.mrf.mxu0
    %v291 = vadd.f32 %v67, %v290
    %v292 = vpop.f32.mrf.mxu0
    %293 = vmatprep.mubr.f32.mxu0 0.0
    %294 = vmatmul.mubr.f32.gmra.mxu0 %v85
    %v295 = vpop.f32.mrf.mxu0
    %v296 = vadd.f32 %v67, %v295
    %v297 = vpop.f32.mrf.mxu0
    %298 = vmatprep.mubr.f32.mxu0 0.0
    %299 = vmatmul.mubr.f32.gmra.mxu0 %v88
    %v300 = vpop.f32.mrf.mxu0
    %v301 = vadd.f32 %v67, %v300
    %v302 = vpop.f32.mrf.mxu0
    %303 = vmatprep.mubr.f32.mxu0 0.0
    %304 = vmatmul.mubr.f32.gmra.mxu0 %v91
    %v305 = vpop.f32.mrf.mxu0
    %v306 = vadd.f32 %v67, %v305
    %v307 = vpop.f32.mrf.mxu0
    %308 = vmatprep.mubr.f32.mxu0 0.0
    %309 = vmatmul.mubr.f32.gmra.mxu0 %v94
    %v310 = vpop.f32.mrf.mxu0
    %v311 = vadd.f32 %v67, %v310
    %v312 = vpop.f32.mrf.mxu0
    %313 = vdwg.mxu0
    %314 = vst [vmem:[#allocation3] sm:$0xff] %v163
    %315 = vst [vmem:[#allocation3 + $0x8] sm:$0xff] %v165
    %316 = vst [vmem:[#allocation3 + $0x10] sm:$0xff] %v276
    %317 = vst [vmem:[#allocation3 + $0x18] sm:$0xff] %v169
    %318 = vst [vmem:[#allocation3 + $0x20] sm:$0xff] %v171
    %319 = vst [vmem:[#allocation3 + $0x28] sm:$0xff] %v281
    %320 = vst [vmem:[#allocation3 + $0x30] sm:$0xff] %v175
    %321 = vst [vmem:[#allocation3 + $0x38] sm:$0xff] %v177
    %322 = vst [vmem:[#allocation3 + $0x40] sm:$0xff] %v286
    %323 = vst [vmem:[#allocation3 + $0x48] sm:$0xff] %v181
    %324 = vst [vmem:[#allocation3 + $0x50] sm:$0xff] %v183
    %325 = vst [vmem:[#allocation3 + $0x58] sm:$0xff] %v291
    %326 = vst [vmem:[#allocation3 + $0x60] sm:$0xff] %v187
    %327 = vst [vmem:[#allocation3 + $0x68] sm:$0xff] %v189
    %328 = vst [vmem:[#allocation3 + $0x70] sm:$0xff] %v296
    %329 = vst [vmem:[#allocation3 + $0x78] sm:$0xff] %v193
    %330 = vst [vmem:[#allocation3 + $0x80] sm:$0xff] %v195
    %331 = vst [vmem:[#allocation3 + $0x88] sm:$0xff] %v301
    %332 = vst [vmem:[#allocation3 + $0x90] sm:$0xff] %v199
    %333 = vst [vmem:[#allocation3 + $0x98] sm:$0xff] %v201
    %334 = vst [vmem:[#allocation3 + $0xa0] sm:$0xff] %v306
    %335 = vst [vmem:[#allocation3 + $0xa8] sm:$0xff] %v205
    %336 = vst [vmem:[#allocation3 + $0xb0] sm:$0xff] %v207
    %337 = vst [vmem:[#allocation3 + $0xb8] sm:$0xff] %v311
    %v338 = vld [vmem:[%s4] sm:$0x1]
    %v340 = vlaneseq
    %v341 = vshrl.u32 %v340, 7
    %v342 = vsub.s32 0, %v341
    %v343 = vrot.slane %v338, %v342
    %v345 = vld [vmem:[#allocation4] sm:$0xff]
    %v346 = vld [vmem:[#allocation4 + $0x8] sm:$0xff]
    %v347 = vld [vmem:[#allocation4 + $0x10] sm:$0xff]
    %v348 = vld [vmem:[#allocation4 + $0x18] sm:$0xff]
    %v349 = vld [vmem:[#allocation4 + $0x20] sm:$0xff]
    %v350 = vld [vmem:[#allocation4 + $0x28] sm:$0xff]
    %v351 = vld [vmem:[#allocation4 + $0x30] sm:$0xff]
    %v352 = vld [vmem:[#allocation4 + $0x38] sm:$0xff]
    %v353 = vld [vmem:[#allocation4 + $0x40] sm:$0xff]
    %v354 = vld [vmem:[#allocation4 + $0x48] sm:$0xff]
    %v355 = vld [vmem:[#allocation4 + $0x50] sm:$0xff]
    %v356 = vld [vmem:[#allocation4 + $0x58] sm:$0xff]
    %v357 = vld [vmem:[#allocation4 + $0x60] sm:$0xff]
    %v358 = vld [vmem:[#allocation4 + $0x68] sm:$0xff]
    %v359 = vld [vmem:[#allocation4 + $0x70] sm:$0xff]
    %v360 = vld [vmem:[#allocation4 + $0x78] sm:$0xff]
    %v361 = vld [vmem:[#allocation4 + $0x80] sm:$0xff]
    %v362 = vld [vmem:[#allocation4 + $0x88] sm:$0xff]
    %v363 = vld [vmem:[#allocation4 + $0x90] sm:$0xff]
    %v364 = vld [vmem:[#allocation4 + $0x98] sm:$0xff]
    %v365 = vld [vmem:[#allocation4 + $0xa0] sm:$0xff]
    %v366 = vld [vmem:[#allocation4 + $0xa8] sm:$0xff]
    %v367 = vld [vmem:[#allocation4 + $0xb0] sm:$0xff]
    %v368 = vld [vmem:[#allocation4 + $0xb8] sm:$0xff]
    %v369 = vld [vmem:[#allocation4 + $0xc0] sm:$0xff]
    %v370 = vld [vmem:[#allocation4 + $0xc8] sm:$0xff]
    %v371 = vld [vmem:[#allocation4 + $0xd0] sm:$0xff]
    %v372 = vld [vmem:[#allocation4 + $0xd8] sm:$0xff]
    %v373 = vld [vmem:[#allocation4 + $0xe0] sm:$0xff]
    %v374 = vld [vmem:[#allocation4 + $0xe8] sm:$0xff]
    %v375 = vld [vmem:[#allocation4 + $0xf0] sm:$0xff]
    %v376 = vld [vmem:[#allocation4 + $0xf8] sm:$0xff]
    %v377 = vld [vmem:[#allocation4 + $0x100] sm:$0xff]
    %v378 = vld [vmem:[#allocation4 + $0x108] sm:$0xff]
    %v379 = vld [vmem:[#allocation4 + $0x110] sm:$0xff]
    %v380 = vld [vmem:[#allocation4 + $0x118] sm:$0xff]
    %v381 = vld [vmem:[#allocation4 + $0x120] sm:$0xff]
    %v382 = vld [vmem:[#allocation4 + $0x128] sm:$0xff]
    %v383 = vld [vmem:[#allocation4 + $0x130] sm:$0xff]
    %v384 = vld [vmem:[#allocation4 + $0x138] sm:$0xff]
    %v385 = vld [vmem:[#allocation4 + $0x140] sm:$0xff]
    %v386 = vld [vmem:[#allocation4 + $0x148] sm:$0xff]
    %v387 = vld [vmem:[#allocation4 + $0x150] sm:$0xff]
    %v388 = vld [vmem:[#allocation4 + $0x158] sm:$0xff]
    %v389 = vld [vmem:[#allocation4 + $0x160] sm:$0xff]
    %v390 = vld [vmem:[#allocation4 + $0x168] sm:$0xff]
    %v391 = vld [vmem:[#allocation4 + $0x170] sm:$0xff]
    %v392 = vld [vmem:[#allocation4 + $0x178] sm:$0xff]
    %v393 = vld [vmem:[#allocation2] sm:$0xff]
    %s394 = smul.u32 0, 3
    %s395 = smul.addr %s394, 8
    %s396 = scalar_lea.vmem [#allocation3], %s395
    %v397 = vld [vmem:[%s396] sm:$0xff]
    %v398 = vld [vmem:[%s396 + $0x8] sm:$0xff]
    %v399 = vld [vmem:[%s396 + $0x10] sm:$0xff]
    %400 = vmatprep.subr.mxu0 %v391
    %401 = vmatpush1.msra.mxu0 %v390
    %402 = vmatprep.subr.mxu0 %v388
    %403 = vmatpush1.msra.mxu0 %v387
    %404 = vmatprep.subr.mxu0 %v385
    %405 = vmatpush1.msra.mxu0 %v384
    %406 = vmatprep.subr.mxu0 %v382
    %407 = vmatpush1.msra.mxu0 %v381
    %408 = vmatprep.subr.mxu0 %v379
    %409 = vmatpush1.msra.mxu0 %v378
    %410 = vmatprep.subr.mxu0 %v376
    %411 = vmatpush1.msra.mxu0 %v375
    %412 = vmatprep.subr.mxu0 %v373
    %413 = vmatpush1.msra.mxu0 %v372
    %414 = vmatprep.subr.mxu0 %v370
    %415 = vmatpush1.msra.mxu0 %v369
    %416 = vmatprep.subr.mxu0 %v367
    %417 = vmatpush1.msra.mxu0 %v366
    %418 = vmatprep.subr.mxu0 %v364
    %419 = vmatpush1.msra.mxu0 %v363
    %420 = vmatprep.subr.mxu0 %v361
    %421 = vmatpush1.msra.mxu0 %v360
    %422 = vmatprep.subr.mxu0 %v358
    %423 = vmatpush1.msra.mxu0 %v357
    %424 = vmatprep.subr.mxu0 %v355
    %425 = vmatpush1.msra.mxu0 %v354
    %426 = vmatprep.subr.mxu0 %v352
    %427 = vmatpush1.msra.mxu0 %v351
    %428 = vmatprep.subr.mxu0 %v349
    %429 = vmatpush1.msra.mxu0 %v348
    %430 = vmatprep.subr.mxu0 %v346
    %431 = vmatpush1.msra.mxu0 %v345
    %432 = vmatprep.subr.mxu0 0.0
    %433 = vmatpush2.msra.mxu0 0.0
    %434 = vmatprep.subr.mxu0 0.0
    %435 = vmatpush2.msra.mxu0 0.0
    %436 = vmatprep.subr.mxu0 0.0
    %437 = vmatpush2.msra.mxu0 0.0
    %438 = vmatprep.subr.mxu0 0.0
    %439 = vmatpush2.msra.mxu0 0.0
    %440 = vmatprep.subr.mxu0 0.0
    %441 = vmatpush2.msra.mxu0 0.0
    %442 = vmatprep.subr.mxu0 0.0
    %443 = vmatpush2.msra.mxu0 0.0
    %444 = vmatprep.subr.mxu0 0.0
    %445 = vmatpush2.msra.mxu0 0.0
    %446 = vmatprep.subr.mxu0 0.0
    %447 = vmatpush2.msra.mxu0 0.0
    %448 = vmatprep.subr.mxu0 0.0
    %449 = vmatpush2.msra.mxu0 0.0
    %450 = vmatprep.subr.mxu0 0.0
    %451 = vmatpush2.msra.mxu0 0.0
    %452 = vmatprep.subr.mxu0 0.0
    %453 = vmatpush2.msra.mxu0 0.0
    %454 = vmatprep.subr.mxu0 0.0
    %455 = vmatpush2.msra.mxu0 0.0
    %456 = vmatprep.subr.mxu0 0.0
    %457 = vmatpush2.msra.mxu0 0.0
    %458 = vmatprep.subr.mxu0 0.0
    %459 = vmatpush2.msra.mxu0 0.0
    %460 = vmatprep.subr.mxu0 0.0
    %461 = vmatpush2.msra.mxu0 0.0
    %462 = vmatprep.subr.mxu0 0.0
    %463 = vmatpush2.msra.mxu0 0.0
    %464 = vmatprep.mubr.f32.mxu0 0.0
    %465 = vmatmul.mubr.f32.gmra.mxu0 %v393
    %v466 = vpop.f32.mrf.mxu0
    %v467 = vadd.f32 0.0, %v466
    %v468 = vpop.f32.mrf.mxu0
    %v469 = vadd.f32 0.0, %v468
    %470 = vdwg.mxu0
    %471 = vmatprep.subr.mxu0 0.0
    %472 = vmatpush1.msra.mxu0 %v392
    %473 = vmatprep.subr.mxu0 0.0
    %474 = vmatpush1.msra.mxu0 %v389
    %475 = vmatprep.subr.mxu0 0.0
    %476 = vmatpush1.msra.mxu0 %v386
    %477 = vmatprep.subr.mxu0 0.0
    %478 = vmatpush1.msra.mxu0 %v383
    %479 = vmatprep.subr.mxu0 0.0
    %480 = vmatpush1.msra.mxu0 %v380
    %481 = vmatprep.subr.mxu0 0.0
    %482 = vmatpush1.msra.mxu0 %v377
    %483 = vmatprep.subr.mxu0 0.0
    %484 = vmatpush1.msra.mxu0 %v374
    %485 = vmatprep.subr.mxu0 0.0
    %486 = vmatpush1.msra.mxu0 %v371
    %487 = vmatprep.subr.mxu0 0.0
    %488 = vmatpush1.msra.mxu0 %v368
    %489 = vmatprep.subr.mxu0 0.0
    %490 = vmatpush1.msra.mxu0 %v365
    %491 = vmatprep.subr.mxu0 0.0
    %492 = vmatpush1.msra.mxu0 %v362
    %493 = vmatprep.subr.mxu0 0.0
    %494 = vmatpush1.msra.mxu0 %v359
    %495 = vmatprep.subr.mxu0 0.0
    %496 = vmatpush1.msra.mxu0 %v356
    %497 = vmatprep.subr.mxu0 0.0
    %498 = vmatpush1.msra.mxu0 %v353
    %499 = vmatprep.subr.mxu0 0.0
    %500 = vmatpush1.msra.mxu0 %v350
    %501 = vmatprep.subr.mxu0 0.0
    %502 = vmatpush1.msra.mxu0 %v347
    %503 = vmatprep.subr.mxu0 0.0
    %504 = vmatpush2.msra.mxu0 0.0
    %505 = vmatprep.subr.mxu0 0.0
    %506 = vmatpush2.msra.mxu0 0.0
    %507 = vmatprep.subr.mxu0 0.0
    %508 = vmatpush2.msra.mxu0 0.0
    %509 = vmatprep.subr.mxu0 0.0
    %510 = vmatpush2.msra.mxu0 0.0
    %511 = vmatprep.subr.mxu0 0.0
    %512 = vmatpush2.msra.mxu0 0.0
    %513 = vmatprep.subr.mxu0 0.0
    %514 = vmatpush2.msra.mxu0 0.0
    %515 = vmatprep.subr.mxu0 0.0
    %516 = vmatpush2.msra.mxu0 0.0
    %517 = vmatprep.subr.mxu0 0.0
    %518 = vmatpush2.msra.mxu0 0.0
    %519 = vmatprep.subr.mxu0 0.0
    %520 = vmatpush2.msra.mxu0 0.0
    %521 = vmatprep.subr.mxu0 0.0
    %522 = vmatpush2.msra.mxu0 0.0
    %523 = vmatprep.subr.mxu0 0.0
    %524 = vmatpush2.msra.mxu0 0.0
    %525 = vmatprep.subr.mxu0 0.0
    %526 = vmatpush2.msra.mxu0 0.0
    %527 = vmatprep.subr.mxu0 0.0
    %528 = vmatpush2.msra.mxu0 0.0
    %529 = vmatprep.subr.mxu0 0.0
    %530 = vmatpush2.msra.mxu0 0.0
    %531 = vmatprep.subr.mxu0 0.0
    %532 = vmatpush2.msra.mxu0 0.0
    %533 = vmatprep.subr.mxu0 0.0
    %534 = vmatpush2.msra.mxu0 0.0
    %535 = vmatprep.mubr.f32.mxu0 0.0
    %536 = vmatmul.mubr.f32.gmra.mxu0 %v393
    %v537 = vpop.f32.mrf.mxu0
    %v538 = vadd.f32 0.0, %v537
    %v539 = vpop.f32.mrf.mxu0
    %540 = vdwg.mxu0
    %v541 = vadd.f32 %v397, %v467
    %v542 = vxor.u32 %v541, 2147483648
    %v543 = vmul.f32 %v542, 1.442695
    %v544 = vpow.pop %v543
    %v545 = vadd.f32 %v544, 1.0
    %v546 = vrcp.pop %v545
    %v547 = vmul.f32 1.0, %v546
    %v548 = vadd.f32 %v398, %v469
    %v549 = vxor.u32 %v548, 2147483648
    %v550 = vmul.f32 %v549, 1.442695
    %v551 = vpow.pop %v550
    %v552 = vadd.f32 %v551, 1.0
    %v553 = vrcp.pop %v552
    %v554 = vmul.f32 1.0, %v553
    %v555 = vadd.f32 %v538, %v343
    %v556 = vmul.f32 %v547, %v555
    %v557 = vadd.f32 %v399, %v556
    %v558 = vtanh.pop %v557
    %v559 = vsub.f32 1.0, %v554
    %v560 = vmul.f32 %v559, %v558
    %v561 = vmul.f32 %v554, %v393
    %v562 = vadd.f32 %v560, %v561
    %563 = vst [vmem:[#allocation7] sm:$0xff] %v562
    %s564 = smul.u32 1, 3
    %s565 = smul.addr %s564, 8
    %s566 = scalar_lea.vmem [#allocation3], %s565
    %v567 = vld [vmem:[%s566] sm:$0xff]
    %v568 = vld [vmem:[%s566 + $0x8] sm:$0xff]
    %v569 = vld [vmem:[%s566 + $0x10] sm:$0xff]
    %570 = vmatprep.subr.mxu0 %v391
    %571 = vmatpush1.msra.mxu0 %v390
    %572 = vmatprep.subr.mxu0 %v388
    %573 = vmatpush1.msra.mxu0 %v387
    %574 = vmatprep.subr.mxu0 %v385
    %575 = vmatpush1.msra.mxu0 %v384
    %576 = vmatprep.subr.mxu0 %v382
    %577 = vmatpush1.msra.mxu0 %v381
    %578 = vmatprep.subr.mxu0 %v379
    %579 = vmatpush1.msra.mxu0 %v378
    %580 = vmatprep.subr.mxu0 %v376
    %581 = vmatpush1.msra.mxu0 %v375
    %582 = vmatprep.subr.mxu0 %v373
    %583 = vmatpush1.msra.mxu0 %v372
    %584 = vmatprep.subr.mxu0 %v370
    %585 = vmatpush1.msra.mxu0 %v369
    %586 = vmatprep.subr.mxu0 %v367
    %587 = vmatpush1.msra.mxu0 %v366
    %588 = vmatprep.subr.mxu0 %v364
    %589 = vmatpush1.msra.mxu0 %v363
    %590 = vmatprep.subr.mxu0 %v361
    %591 = vmatpush1.msra.mxu0 %v360
    %592 = vmatprep.subr.mxu0 %v358
    %593 = vmatpush1.msra.mxu0 %v357
    %594 = vmatprep.subr.mxu0 %v355
    %595 = vmatpush1.msra.mxu0 %v354
    %596 = vmatprep.subr.mxu0 %v352
    %597 = vmatpush1.msra.mxu0 %v351
    %598 = vmatprep.subr.mxu0 %v349
    %599 = vmatpush1.msra.mxu0 %v348
    %600 = vmatprep.subr.mxu0 %v346
    %601 = vmatpush1.msra.mxu0 %v345
    %602 = vmatprep.subr.mxu0 0.0
    %603 = vmatpush2.msra.mxu0 0.0
    %604 = vmatprep.subr.mxu0 0.0
    %605 = vmatpush2.msra.mxu0 0.0
    %606 = vmatprep.subr.mxu0 0.0
    %607 = vmatpush2.msra.mxu0 0.0
    %608 = vmatprep.subr.mxu0 0.0
    %609 = vmatpush2.msra.mxu0 0.0
    %610 = vmatprep.subr.mxu0 0.0
    %611 = vmatpush2.msra.mxu0 0.0
    %612 = vmatprep.subr.mxu0 0.0
    %613 = vmatpush2.msra.mxu0 0.0
    %614 = vmatprep.subr.mxu0 0.0
    %615 = vmatpush2.msra.mxu0 0.0
    %616 = vmatprep.subr.mxu0 0.0
    %617 = vmatpush2.msra.mxu0 0.0
    %618 = vmatprep.subr.mxu0 0.0
    %619 = vmatpush2.msra.mxu0 0.0
    %620 = vmatprep.subr.mxu0 0.0
    %621 = vmatpush2.msra.mxu0 0.0
    %622 = vmatprep.subr.mxu0 0.0
    %623 = vmatpush2.msra.mxu0 0.0
    %624 = vmatprep.subr.mxu0 0.0
    %625 = vmatpush2.msra.mxu0 0.0
    %626 = vmatprep.subr.mxu0 0.0
    %627 = vmatpush2.msra.mxu0 0.0
    %628 = vmatprep.subr.mxu0 0.0
    %629 = vmatpush2.msra.mxu0 0.0
    %630 = vmatprep.subr.mxu0 0.0
    %631 = vmatpush2.msra.mxu0 0.0
    %632 = vmatprep.subr.mxu0 0.0
    %633 = vmatpush2.msra.mxu0 0.0
    %634 = vmatprep.mubr.f32.mxu0 0.0
    %635 = vmatmul.mubr.f32.gmra.mxu0 %v562
    %v636 = vpop.f32.mrf.mxu0
    %v637 = vadd.f32 0.0, %v636
    %v638 = vpop.f32.mrf.mxu0
    %v639 = vadd.f32 0.0, %v638
    %640 = vdwg.mxu0
    %641 = vmatprep.subr.mxu0 0.0
    %642 = vmatpush1.msra.mxu0 %v392
    %643 = vmatprep.subr.mxu0 0.0
    %644 = vmatpush1.msra.mxu0 %v389
    %645 = vmatprep.subr.mxu0 0.0
    %646 = vmatpush1.msra.mxu0 %v386
    %647 = vmatprep.subr.mxu0 0.0
    %648 = vmatpush1.msra.mxu0 %v383
    %649 = vmatprep.subr.mxu0 0.0
    %650 = vmatpush1.msra.mxu0 %v380
    %651 = vmatprep.subr.mxu0 0.0
    %652 = vmatpush1.msra.mxu0 %v377
    %653 = vmatprep.subr.mxu0 0.0
    %654 = vmatpush1.msra.mxu0 %v374
    %655 = vmatprep.subr.mxu0 0.0
    %656 = vmatpush1.msra.mxu0 %v371
    %657 = vmatprep.subr.mxu0 0.0
    %658 = vmatpush1.msra.mxu0 %v368
    %659 = vmatprep.subr.mxu0 0.0
    %660 = vmatpush1.msra.mxu0 %v365
    %661 = vmatprep.subr.mxu0 0.0
    %662 = vmatpush1.msra.mxu0 %v362
    %663 = vmatprep.subr.mxu0 0.0
    %664 = vmatpush1.msra.mxu0 %v359
    %665 = vmatprep.subr.mxu0 0.0
    %666 = vmatpush1.msra.mxu0 %v356
    %667 = vmatprep.subr.mxu0 0.0
    %668 = vmatpush1.msra.mxu0 %v353
    %669 = vmatprep.subr.mxu0 0.0
    %670 = vmatpush1.msra.mxu0 %v350
    %671 = vmatprep.subr.mxu0 0.0
    %672 = vmatpush1.msra.mxu0 %v347
    %673 = vmatprep.subr.mxu0 0.0
    %674 = vmatpush2.msra.mxu0 0.0
    %675 = vmatprep.subr.mxu0 0.0
    %676 = vmatpush2.msra.mxu0 0.0
    %677 = vmatprep.subr.mxu0 0.0
    %678 = vmatpush2.msra.mxu0 0.0
    %679 = vmatprep.subr.mxu0 0.0
    %680 = vmatpush2.msra.mxu0 0.0
    %681 = vmatprep.subr.mxu0 0.0
    %682 = vmatpush2.msra.mxu0 0.0
    %683 = vmatprep.subr.mxu0 0.0
    %684 = vmatpush2.msra.mxu0 0.0
    %685 = vmatprep.subr.mxu0 0.0
    %686 = vmatpush2.msra.mxu0 0.0
    %687 = vmatprep.subr.mxu0 0.0
    %688 = vmatpush2.msra.mxu0 0.0
    %689 = vmatprep.subr.mxu0 0.0
    %690 = vmatpush2.msra.mxu0 0.0
    %691 = vmatprep.subr.mxu0 0.0
    %692 = vmatpush2.msra.mxu0 0.0
    %693 = vmatprep.subr.mxu0 0.0
    %694 = vmatpush2.msra.mxu0 0.0
    %695 = vmatprep.subr.mxu0 0.0
    %696 = vmatpush2.msra.mxu0 0.0
    %697 = vmatprep.subr.mxu0 0.0
    %698 = vmatpush2.msra.mxu0 0.0
    %699 = vmatprep.subr.mxu0 0.0
    %700 = vmatpush2.msra.mxu0 0.0
    %701 = vmatprep.subr.mxu0 0.0
    %702 = vmatpush2.msra.mxu0 0.0
    %703 = vmatprep.subr.mxu0 0.0
    %704 = vmatpush2.msra.mxu0 0.0
    %705 = vmatprep.mubr.f32.mxu0 0.0
    %706 = vmatmul.mubr.f32.gmra.mxu0 %v562
    %v707 = vpop.f32.mrf.mxu0
    %v708 = vadd.f32 0.0, %v707
    %v709 = vpop.f32.mrf.mxu0
    %710 = vdwg.mxu0
    %v711 = vadd.f32 %v567, %v637
    %v712 = vxor.u32 %v711, 2147483648
    %v713 = vmul.f32 %v712, 1.442695
    %v714 = vpow.pop %v713
    %v715 = vadd.f32 %v714, 1.0
    %v716 = vrcp.pop %v715
    %v717 = vmul.f32 1.0, %v716
    %v718 = vadd.f32 %v568, %v639
    %v719 = vxor.u32 %v718, 2147483648
    %v720 = vmul.f32 %v719, 1.442695
    %v721 = vpow.pop %v720
    %v722 = vadd.f32 %v721, 1.0
    %v723 = vrcp.pop %v722
    %v724 = vmul.f32 1.0, %v723
    %v725 = vadd.f32 %v708, %v343
    %v726 = vmul.f32 %v717, %v725
    %v727 = vadd.f32 %v569, %v726
    %v728 = vtanh.pop %v727
    %v729 = vsub.f32 1.0, %v724
    %v730 = vmul.f32 %v729, %v728
    %v731 = vmul.f32 %v724, %v562
    %v732 = vadd.f32 %v730, %v731
    %s733 = scalar_lea.vmem [#allocation7], 8
    %734 = vst [vmem:[%s733] sm:$0xff] %v732
    %s735 = smul.u32 2, 3
    %s736 = smul.addr %s735, 8
    %s737 = scalar_lea.vmem [#allocation3], %s736
    %v738 = vld [vmem:[%s737] sm:$0xff]
    %v739 = vld [vmem:[%s737 + $0x8] sm:$0xff]
    %v740 = vld [vmem:[%s737 + $0x10] sm:$0xff]
    %741 = vmatprep.subr.mxu0 %v391
    %742 = vmatpush1.msra.mxu0 %v390
    %743 = vmatprep.subr.mxu0 %v388
    %744 = vmatpush1.msra.mxu0 %v387
    %745 = vmatprep.subr.mxu0 %v385
    %746 = vmatpush1.msra.mxu0 %v384
    %747 = vmatprep.subr.mxu0 %v382
    %748 = vmatpush1.msra.mxu0 %v381
    %749 = vmatprep.subr.mxu0 %v379
    %750 = vmatpush1.msra.mxu0 %v378
    %751 = vmatprep.subr.mxu0 %v376
    %752 = vmatpush1.msra.mxu0 %v375
    %753 = vmatprep.subr.mxu0 %v373
    %754 = vmatpush1.msra.mxu0 %v372
    %755 = vmatprep.subr.mxu0 %v370
    %756 = vmatpush1.msra.mxu0 %v369
    %757 = vmatprep.subr.mxu0 %v367
    %758 = vmatpush1.msra.mxu0 %v366
    %759 = vmatprep.subr.mxu0 %v364
    %760 = vmatpush1.msra.mxu0 %v363
    %761 = vmatprep.subr.mxu0 %v361
    %762 = vmatpush1.msra.mxu0 %v360
    %763 = vmatprep.subr.mxu0 %v358
    %764 = vmatpush1.msra.mxu0 %v357
    %765 = vmatprep.subr.mxu0 %v355
    %766 = vmatpush1.msra.mxu0 %v354
    %767 = vmatprep.subr.mxu0 %v352
    %768 = vmatpush1.msra.mxu0 %v351
    %769 = vmatprep.subr.mxu0 %v349
    %770 = vmatpush1.msra.mxu0 %v348
    %771 = vmatprep.subr.mxu0 %v346
    %772 = vmatpush1.msra.mxu0 %v345
    %773 = vmatprep.subr.mxu0 0.0
    %774 = vmatpush2.msra.mxu0 0.0
    %775 = vmatprep.subr.mxu0 0.0
    %776 = vmatpush2.msra.mxu0 0.0
    %777 = vmatprep.subr.mxu0 0.0
    %778 = vmatpush2.msra.mxu0 0.0
    %779 = vmatprep.subr.mxu0 0.0
    %780 = vmatpush2.msra.mxu0 0.0
    %781 = vmatprep.subr.mxu0 0.0
    %782 = vmatpush2.msra.mxu0 0.0
    %783 = vmatprep.subr.mxu0 0.0
    %784 = vmatpush2.msra.mxu0 0.0
    %785 = vmatprep.subr.mxu0 0.0
    %786 = vmatpush2.msra.mxu0 0.0
    %787 = vmatprep.subr.mxu0 0.0
    %788 = vmatpush2.msra.mxu0 0.0
    %789 = vmatprep.subr.mxu0 0.0
    %790 = vmatpush2.msra.mxu0 0.0
    %791 = vmatprep.subr.mxu0 0.0
    %792 = vmatpush2.msra.mxu0 0.0
    %793 = vmatprep.subr.mxu0 0.0
    %794 = vmatpush2.msra.mxu0 0.0
    %795 = vmatprep.subr.mxu0 0.0
    %796 = vmatpush2.msra.mxu0 0.0
    %797 = vmatprep.subr.mxu0 0.0
    %798 = vmatpush2.msra.mxu0 0.0
    %799 = vmatprep.subr.mxu0 0.0
    %800 = vmatpush2.msra.mxu0 0.0
    %801 = vmatprep.subr.mxu0 0.0
    %802 = vmatpush2.msra.mxu0 0.0
    %803 = vmatprep.subr.mxu0 0.0
    %804 = vmatpush2.msra.mxu0 0.0
    %805 = vmatprep.mubr.f32.mxu0 0.0
    %806 = vmatmul.mubr.f32.gmra.mxu0 %v732
    %v807 = vpop.f32.mrf.mxu0
    %v808 = vadd.f32 0.0, %v807
    %v809 = vpop.f32.mrf.mxu0
    %v810 = vadd.f32 0.0, %v809
    %811 = vdwg.mxu0
    %812 = vmatprep.subr.mxu0 0.0
    %813 = vmatpush1.msra.mxu0 %v392
    %814 = vmatprep.subr.mxu0 0.0
    %815 = vmatpush1.msra.mxu0 %v389
    %816 = vmatprep.subr.mxu0 0.0
    %817 = vmatpush1.msra.mxu0 %v386
    %818 = vmatprep.subr.mxu0 0.0
    %819 = vmatpush1.msra.mxu0 %v383
    %820 = vmatprep.subr.mxu0 0.0
    %821 = vmatpush1.msra.mxu0 %v380
    %822 = vmatprep.subr.mxu0 0.0
    %823 = vmatpush1.msra.mxu0 %v377
    %824 = vmatprep.subr.mxu0 0.0
    %825 = vmatpush1.msra.mxu0 %v374
    %826 = vmatprep.subr.mxu0 0.0
    %827 = vmatpush1.msra.mxu0 %v371
    %828 = vmatprep.subr.mxu0 0.0
    %829 = vmatpush1.msra.mxu0 %v368
    %830 = vmatprep.subr.mxu0 0.0
    %831 = vmatpush1.msra.mxu0 %v365
    %832 = vmatprep.subr.mxu0 0.0
    %833 = vmatpush1.msra.mxu0 %v362
    %834 = vmatprep.subr.mxu0 0.0
    %835 = vmatpush1.msra.mxu0 %v359
    %836 = vmatprep.subr.mxu0 0.0
    %837 = vmatpush1.msra.mxu0 %v356
    %838 = vmatprep.subr.mxu0 0.0
    %839 = vmatpush1.msra.mxu0 %v353
    %840 = vmatprep.subr.mxu0 0.0
    %841 = vmatpush1.msra.mxu0 %v350
    %842 = vmatprep.subr.mxu0 0.0
    %843 = vmatpush1.msra.mxu0 %v347
    %844 = vmatprep.subr.mxu0 0.0
    %845 = vmatpush2.msra.mxu0 0.0
    %846 = vmatprep.subr.mxu0 0.0
    %847 = vmatpush2.msra.mxu0 0.0
    %848 = vmatprep.subr.mxu0 0.0
    %849 = vmatpush2.msra.mxu0 0.0
    %850 = vmatprep.subr.mxu0 0.0
    %851 = vmatpush2.msra.mxu0 0.0
    %852 = vmatprep.subr.mxu0 0.0
    %853 = vmatpush2.msra.mxu0 0.0
    %854 = vmatprep.subr.mxu0 0.0
    %855 = vmatpush2.msra.mxu0 0.0
    %856 = vmatprep.subr.mxu0 0.0
    %857 = vmatpush2.msra.mxu0 0.0
    %858 = vmatprep.subr.mxu0 0.0
    %859 = vmatpush2.msra.mxu0 0.0
    %860 = vmatprep.subr.mxu0 0.0
    %861 = vmatpush2.msra.mxu0 0.0
    %862 = vmatprep.subr.mxu0 0.0
    %863 = vmatpush2.msra.mxu0 0.0
    %864 = vmatprep.subr.mxu0 0.0
    %865 = vmatpush2.msra.mxu0 0.0
    %866 = vmatprep.subr.mxu0 0.0
    %867 = vmatpush2.msra.mxu0 0.0
    %868 = vmatprep.subr.mxu0 0.0
    %869 = vmatpush2.msra.mxu0 0.0
    %870 = vmatprep.subr.mxu0 0.0
    %871 = vmatpush2.msra.mxu0 0.0
    %872 = vmatprep.subr.mxu0 0.0
    %873 = vmatpush2.msra.mxu0 0.0
    %874 = vmatprep.subr.mxu0 0.0
    %875 = vmatpush2.msra.mxu0 0.0
    %876 = vmatprep.mubr.f32.mxu0 0.0
    %877 = vmatmul.mubr.f32.gmra.mxu0 %v732
    %v878 = vpop.f32.mrf.mxu0
    %v879 = vadd.f32 0.0, %v878
    %v880 = vpop.f32.mrf.mxu0
    %881 = vdwg.mxu0
    %v882 = vadd.f32 %v738, %v808
    %v883 = vxor.u32 %v882, 2147483648
    %v884 = vmul.f32 %v883, 1.442695
    %v885 = vpow.pop %v884
    %v886 = vadd.f32 %v885, 1.0
    %v887 = vrcp.pop %v886
    %v888 = vmul.f32 1.0, %v887
    %v889 = vadd.f32 %v739, %v810
    %v890 = vxor.u32 %v889, 2147483648
    %v891 = vmul.f32 %v890, 1.442695
    %v892 = vpow.pop %v891
    %v893 = vadd.f32 %v892, 1.0
    %v894 = vrcp.pop %v893
    %v895 = vmul.f32 1.0, %v894
    %v896 = vadd.f32 %v879, %v343
    %v897 = vmul.f32 %v888, %v896
    %v898 = vadd.f32 %v740, %v897
    %v899 = vtanh.pop %v898
    %v900 = vsub.f32 1.0, %v895
    %v901 = vmul.f32 %v900, %v899
    %v902 = vmul.f32 %v895, %v732
    %v903 = vadd.f32 %v901, %v902
    %s904 = scalar_lea.vmem [#allocation7], 16
    %905 = vst [vmem:[%s904] sm:$0xff] %v903
    %s906 = smul.u32 3, 3
    %s907 = smul.addr %s906, 8
    %s908 = scalar_lea.vmem [#allocation3], %s907
    %v909 = vld [vmem:[%s908] sm:$0xff]
    %v910 = vld [vmem:[%s908 + $0x8] sm:$0xff]
    %v911 = vld [vmem:[%s908 + $0x10] sm:$0xff]
    %912 = vmatprep.subr.mxu0 %v391
    %913 = vmatpush1.msra.mxu0 %v390
    %914 = vmatprep.subr.mxu0 %v388
    %915 = vmatpush1.msra.mxu0 %v387
    %916 = vmatprep.subr.mxu0 %v385
    %917 = vmatpush1.msra.mxu0 %v384
    %918 = vmatprep.subr.mxu0 %v382
    %919 = vmatpush1.msra.mxu0 %v381
    %920 = vmatprep.subr.mxu0 %v379
    %921 = vmatpush1.msra.mxu0 %v378
    %922 = vmatprep.subr.mxu0 %v376
    %923 = vmatpush1.msra.mxu0 %v375
    %924 = vmatprep.subr.mxu0 %v373
    %925 = vmatpush1.msra.mxu0 %v372
    %926 = vmatprep.subr.mxu0 %v370
    %927 = vmatpush1.msra.mxu0 %v369
    %928 = vmatprep.subr.mxu0 %v367
    %929 = vmatpush1.msra.mxu0 %v366
    %930 = vmatprep.subr.mxu0 %v364
    %931 = vmatpush1.msra.mxu0 %v363
    %932 = vmatprep.subr.mxu0 %v361
    %933 = vmatpush1.msra.mxu0 %v360
    %934 = vmatprep.subr.mxu0 %v358
    %935 = vmatpush1.msra.mxu0 %v357
    %936 = vmatprep.subr.mxu0 %v355
    %937 = vmatpush1.msra.mxu0 %v354
    %938 = vmatprep.subr.mxu0 %v352
    %939 = vmatpush1.msra.mxu0 %v351
    %940 = vmatprep.subr.mxu0 %v349
    %941 = vmatpush1.msra.mxu0 %v348
    %942 = vmatprep.subr.mxu0 %v346
    %943 = vmatpush1.msra.mxu0 %v345
    %944 = vmatprep.subr.mxu0 0.0
    %945 = vmatpush2.msra.mxu0 0.0
    %946 = vmatprep.subr.mxu0 0.0
    %947 = vmatpush2.msra.mxu0 0.0
    %948 = vmatprep.subr.mxu0 0.0
    %949 = vmatpush2.msra.mxu0 0.0
    %950 = vmatprep.subr.mxu0 0.0
    %951 = vmatpush2.msra.mxu0 0.0
    %952 = vmatprep.subr.mxu0 0.0
    %953 = vmatpush2.msra.mxu0 0.0
    %954 = vmatprep.subr.mxu0 0.0
    %955 = vmatpush2.msra.mxu0 0.0
    %956 = vmatprep.subr.mxu0 0.0
    %957 = vmatpush2.msra.mxu0 0.0
    %958 = vmatprep.subr.mxu0 0.0
    %959 = vmatpush2.msra.mxu0 0.0
    %960 = vmatprep.subr.mxu0 0.0
    %961 = vmatpush2.msra.mxu0 0.0
    %962 = vmatprep.subr.mxu0 0.0
    %963 = vmatpush2.msra.mxu0 0.0
    %964 = vmatprep.subr.mxu0 0.0
    %965 = vmatpush2.msra.mxu0 0.0
    %966 = vmatprep.subr.mxu0 0.0
    %967 = vmatpush2.msra.mxu0 0.0
    %968 = vmatprep.subr.mxu0 0.0
    %969 = vmatpush2.msra.mxu0 0.0
    %970 = vmatprep.subr.mxu0 0.0
    %971 = vmatpush2.msra.mxu0 0.0
    %972 = vmatprep.subr.mxu0 0.0
    %973 = vmatpush2.msra.mxu0 0.0
    %974 = vmatprep.subr.mxu0 0.0
    %975 = vmatpush2.msra.mxu0 0.0
    %976 = vmatprep.mubr.f32.mxu0 0.0
    %977 = vmatmul.mubr.f32.gmra.mxu0 %v903
    %v978 = vpop.f32.mrf.mxu0
    %v979 = vadd.f32 0.0, %v978
    %v980 = vpop.f32.mrf.mxu0
    %v981 = vadd.f32 0.0, %v980
    %982 = vdwg.mxu0
    %983 = vmatprep.subr.mxu0 0.0
    %984 = vmatpush1.msra.mxu0 %v392
    %985 = vmatprep.subr.mxu0 0.0
    %986 = vmatpush1.msra.mxu0 %v389
    %987 = vmatprep.subr.mxu0 0.0
    %988 = vmatpush1.msra.mxu0 %v386
    %989 = vmatprep.subr.mxu0 0.0
    %990 = vmatpush1.msra.mxu0 %v383
    %991 = vmatprep.subr.mxu0 0.0
    %992 = vmatpush1.msra.mxu0 %v380
    %993 = vmatprep.subr.mxu0 0.0
    %994 = vmatpush1.msra.mxu0 %v377
    %995 = vmatprep.subr.mxu0 0.0
    %996 = vmatpush1.msra.mxu0 %v374
    %997 = vmatprep.subr.mxu0 0.0
    %998 = vmatpush1.msra.mxu0 %v371
    %999 = vmatprep.subr.mxu0 0.0
    %1000 = vmatpush1.msra.mxu0 %v368
    %1001 = vmatprep.subr.mxu0 0.0
    %1002 = vmatpush1.msra.mxu0 %v365
    %1003 = vmatprep.subr.mxu0 0.0
    %1004 = vmatpush1.msra.mxu0 %v362
    %1005 = vmatprep.subr.mxu0 0.0
    %1006 = vmatpush1.msra.mxu0 %v359
    %1007 = vmatprep.subr.mxu0 0.0
    %1008 = vmatpush1.msra.mxu0 %v356
    %1009 = vmatprep.subr.mxu0 0.0
    %1010 = vmatpush1.msra.mxu0 %v353
    %1011 = vmatprep.subr.mxu0 0.0
    %1012 = vmatpush1.msra.mxu0 %v350
    %1013 = vmatprep.subr.mxu0 0.0
    %1014 = vmatpush1.msra.mxu0 %v347
    %1015 = vmatprep.subr.mxu0 0.0
    %1016 = vmatpush2.msra.mxu0 0.0
    %1017 = vmatprep.subr.mxu0 0.0
    %1018 = vmatpush2.msra.mxu0 0.0
    %1019 = vmatprep.subr.mxu0 0.0
    %1020 = vmatpush2.msra.mxu0 0.0
    %1021 = vmatprep.subr.mxu0 0.0
    %1022 = vmatpush2.msra.mxu0 0.0
    %1023 = vmatprep.subr.mxu0 0.0
    %1024 = vmatpush2.msra.mxu0 0.0
    %1025 = vmatprep.subr.mxu0 0.0
    %1026 = vmatpush2.msra.mxu0 0.0
    %1027 = vmatprep.subr.mxu0 0.0
    %1028 = vmatpush2.msra.mxu0 0.0
    %1029 = vmatprep.subr.mxu0 0.0
    %1030 = vmatpush2.msra.mxu0 0.0
    %1031 = vmatprep.subr.mxu0 0.0
    %1032 = vmatpush2.msra.mxu0 0.0
    %1033 = vmatprep.subr.mxu0 0.0
    %1034 = vmatpush2.msra.mxu0 0.0
    %1035 = vmatprep.subr.mxu0 0.0
    %1036 = vmatpush2.msra.mxu0 0.0
    %1037 = vmatprep.subr.mxu0 0.0
    %1038 = vmatpush2.msra.mxu0 0.0
    %1039 = vmatprep.subr.mxu0 0.0
    %1040 = vmatpush2.msra.mxu0 0.0
    %1041 = vmatprep.subr.mxu0 0.0
    %1042 = vmatpush2.msra.mxu0 0.0
    %1043 = vmatprep.subr.mxu0 0.0
    %1044 = vmatpush2.msra.mxu0 0.0
    %1045 = vmatprep.subr.mxu0 0.0
    %1046 = vmatpush2.msra.mxu0 0.0
    %1047 = vmatprep.mubr.f32.mxu0 0.0
    %1048 = vmatmul.mubr.f32.gmra.mxu0 %v903
    %v1049 = vpop.f32.mrf.mxu0
    %v1050 = vadd.f32 0.0, %v1049
    %v1051 = vpop.f32.mrf.mxu0
    %1052 = vdwg.mxu0
    %v1053 = vadd.f32 %v909, %v979
    %v1054 = vxor.u32 %v1053, 2147483648
    %v1055 = vmul.f32 %v1054, 1.442695
    %v1056 = vpow.pop %v1055
    %v1057 = vadd.f32 %v1056, 1.0
    %v1058 = vrcp.pop %v1057
    %v1059 = vmul.f32 1.0, %v1058
    %v1060 = vadd.f32 %v910, %v981
    %v1061 = vxor.u32 %v1060, 2147483648
    %v1062 = vmul.f32 %v1061, 1.442695
    %v1063 = vpow.pop %v1062
    %v1064 = vadd.f32 %v1063, 1.0
    %v1065 = vrcp.pop %v1064
    %v1066 = vmul.f32 1.0, %v1065
    %v1067 = vadd.f32 %v1050, %v343
    %v1068 = vmul.f32 %v1059, %v1067
    %v1069 = vadd.f32 %v911, %v1068
    %v1070 = vtanh.pop %v1069
    %v1071 = vsub.f32 1.0, %v1066
    %v1072 = vmul.f32 %v1071, %v1070
    %v1073 = vmul.f32 %v1066, %v903
    %v1074 = vadd.f32 %v1072, %v1073
    %s1075 = scalar_lea.vmem [#allocation7], 24
    %1076 = vst [vmem:[%s1075] sm:$0xff] %v1074
    %s1077 = smul.u32 4, 3
    %s1078 = smul.addr %s1077, 8
    %s1079 = scalar_lea.vmem [#allocation3], %s1078
    %v1080 = vld [vmem:[%s1079] sm:$0xff]
    %v1081 = vld [vmem:[%s1079 + $0x8] sm:$0xff]
    %v1082 = vld [vmem:[%s1079 + $0x10] sm:$0xff]
    %1083 = vmatprep.subr.mxu0 %v391
    %1084 = vmatpush1.msra.mxu0 %v390
    %1085 = vmatprep.subr.mxu0 %v388
    %1086 = vmatpush1.msra.mxu0 %v387
    %1087 = vmatprep.subr.mxu0 %v385
    %1088 = vmatpush1.msra.mxu0 %v384
    %1089 = vmatprep.subr.mxu0 %v382
    %1090 = vmatpush1.msra.mxu0 %v381
    %1091 = vmatprep.subr.mxu0 %v379
    %1092 = vmatpush1.msra.mxu0 %v378
    %1093 = vmatprep.subr.mxu0 %v376
    %1094 = vmatpush1.msra.mxu0 %v375
    %1095 = vmatprep.subr.mxu0 %v373
    %1096 = vmatpush1.msra.mxu0 %v372
    %1097 = vmatprep.subr.mxu0 %v370
    %1098 = vmatpush1.msra.mxu0 %v369
    %1099 = vmatprep.subr.mxu0 %v367
    %1100 = vmatpush1.msra.mxu0 %v366
    %1101 = vmatprep.subr.mxu0 %v364
    %1102 = vmatpush1.msra.mxu0 %v363
    %1103 = vmatprep.subr.mxu0 %v361
    %1104 = vmatpush1.msra.mxu0 %v360
    %1105 = vmatprep.subr.mxu0 %v358
    %1106 = vmatpush1.msra.mxu0 %v357
    %1107 = vmatprep.subr.mxu0 %v355
    %1108 = vmatpush1.msra.mxu0 %v354
    %1109 = vmatprep.subr.mxu0 %v352
    %1110 = vmatpush1.msra.mxu0 %v351
    %1111 = vmatprep.subr.mxu0 %v349
    %1112 = vmatpush1.msra.mxu0 %v348
    %1113 = vmatprep.subr.mxu0 %v346
    %1114 = vmatpush1.msra.mxu0 %v345
    %1115 = vmatprep.subr.mxu0 0.0
    %1116 = vmatpush2.msra.mxu0 0.0
    %1117 = vmatprep.subr.mxu0 0.0
    %1118 = vmatpush2.msra.mxu0 0.0
    %1119 = vmatprep.subr.mxu0 0.0
    %1120 = vmatpush2.msra.mxu0 0.0
    %1121 = vmatprep.subr.mxu0 0.0
    %1122 = vmatpush2.msra.mxu0 0.0
    %1123 = vmatprep.subr.mxu0 0.0
    %1124 = vmatpush2.msra.mxu0 0.0
    %1125 = vmatprep.subr.mxu0 0.0
    %1126 = vmatpush2.msra.mxu0 0.0
    %1127 = vmatprep.subr.mxu0 0.0
    %1128 = vmatpush2.msra.mxu0 0.0
    %1129 = vmatprep.subr.mxu0 0.0
    %1130 = vmatpush2.msra.mxu0 0.0
    %1131 = vmatprep.subr.mxu0 0.0
    %1132 = vmatpush2.msra.mxu0 0.0
    %1133 = vmatprep.subr.mxu0 0.0
    %1134 = vmatpush2.msra.mxu0 0.0
    %1135 = vmatprep.subr.mxu0 0.0
    %1136 = vmatpush2.msra.mxu0 0.0
    %1137 = vmatprep.subr.mxu0 0.0
    %1138 = vmatpush2.msra.mxu0 0.0
    %1139 = vmatprep.subr.mxu0 0.0
    %1140 = vmatpush2.msra.mxu0 0.0
    %1141 = vmatprep.subr.mxu0 0.0
    %1142 = vmatpush2.msra.mxu0 0.0
    %1143 = vmatprep.subr.mxu0 0.0
    %1144 = vmatpush2.msra.mxu0 0.0
    %1145 = vmatprep.subr.mxu0 0.0
    %1146 = vmatpush2.msra.mxu0 0.0
    %1147 = vmatprep.mubr.f32.mxu0 0.0
    %1148 = vmatmul.mubr.f32.gmra.mxu0 %v1074
    %v1149 = vpop.f32.mrf.mxu0
    %v1150 = vadd.f32 0.0, %v1149
    %v1151 = vpop.f32.mrf.mxu0
    %v1152 = vadd.f32 0.0, %v1151
    %1153 = vdwg.mxu0
    %1154 = vmatprep.subr.mxu0 0.0
    %1155 = vmatpush1.msra.mxu0 %v392
    %1156 = vmatprep.subr.mxu0 0.0
    %1157 = vmatpush1.msra.mxu0 %v389
    %1158 = vmatprep.subr.mxu0 0.0
    %1159 = vmatpush1.msra.mxu0 %v386
    %1160 = vmatprep.subr.mxu0 0.0
    %1161 = vmatpush1.msra.mxu0 %v383
    %1162 = vmatprep.subr.mxu0 0.0
    %1163 = vmatpush1.msra.mxu0 %v380
    %1164 = vmatprep.subr.mxu0 0.0
    %1165 = vmatpush1.msra.mxu0 %v377
    %1166 = vmatprep.subr.mxu0 0.0
    %1167 = vmatpush1.msra.mxu0 %v374
    %1168 = vmatprep.subr.mxu0 0.0
    %1169 = vmatpush1.msra.mxu0 %v371
    %1170 = vmatprep.subr.mxu0 0.0
    %1171 = vmatpush1.msra.mxu0 %v368
    %1172 = vmatprep.subr.mxu0 0.0
    %1173 = vmatpush1.msra.mxu0 %v365
    %1174 = vmatprep.subr.mxu0 0.0
    %1175 = vmatpush1.msra.mxu0 %v362
    %1176 = vmatprep.subr.mxu0 0.0
    %1177 = vmatpush1.msra.mxu0 %v359
    %1178 = vmatprep.subr.mxu0 0.0
    %1179 = vmatpush1.msra.mxu0 %v356
    %1180 = vmatprep.subr.mxu0 0.0
    %1181 = vmatpush1.msra.mxu0 %v353
    %1182 = vmatprep.subr.mxu0 0.0
    %1183 = vmatpush1.msra.mxu0 %v350
    %1184 = vmatprep.subr.mxu0 0.0
    %1185 = vmatpush1.msra.mxu0 %v347
    %1186 = vmatprep.subr.mxu0 0.0
    %1187 = vmatpush2.msra.mxu0 0.0
    %1188 = vmatprep.subr.mxu0 0.0
    %1189 = vmatpush2.msra.mxu0 0.0
    %1190 = vmatprep.subr.mxu0 0.0
    %1191 = vmatpush2.msra.mxu0 0.0
    %1192 = vmatprep.subr.mxu0 0.0
    %1193 = vmatpush2.msra.mxu0 0.0
    %1194 = vmatprep.subr.mxu0 0.0
    %1195 = vmatpush2.msra.mxu0 0.0
    %1196 = vmatprep.subr.mxu0 0.0
    %1197 = vmatpush2.msra.mxu0 0.0
    %1198 = vmatprep.subr.mxu0 0.0
    %1199 = vmatpush2.msra.mxu0 0.0
    %1200 = vmatprep.subr.mxu0 0.0
    %1201 = vmatpush2.msra.mxu0 0.0
    %1202 = vmatprep.subr.mxu0 0.0
    %1203 = vmatpush2.msra.mxu0 0.0
    %1204 = vmatprep.subr.mxu0 0.0
    %1205 = vmatpush2.msra.mxu0 0.0
    %1206 = vmatprep.subr.mxu0 0.0
    %1207 = vmatpush2.msra.mxu0 0.0
    %1208 = vmatprep.subr.mxu0 0.0
    %1209 = vmatpush2.msra.mxu0 0.0
    %1210 = vmatprep.subr.mxu0 0.0
    %1211 = vmatpush2.msra.mxu0 0.0
    %1212 = vmatprep.subr.mxu0 0.0
    %1213 = vmatpush2.msra.mxu0 0.0
    %1214 = vmatprep.subr.mxu0 0.0
    %1215 = vmatpush2.msra.mxu0 0.0
    %1216 = vmatprep.subr.mxu0 0.0
    %1217 = vmatpush2.msra.mxu0 0.0
    %1218 = vmatprep.mubr.f32.mxu0 0.0
    %1219 = vmatmul.mubr.f32.gmra.mxu0 %v1074
    %v1220 = vpop.f32.mrf.mxu0
    %v1221 = vadd.f32 0.0, %v1220
    %v1222 = vpop.f32.mrf.mxu0
    %1223 = vdwg.mxu0
    %v1224 = vadd.f32 %v1080, %v1150
    %v1225 = vxor.u32 %v1224, 2147483648
    %v1226 = vmul.f32 %v1225, 1.442695
    %v1227 = vpow.pop %v1226
    %v1228 = vadd.f32 %v1227, 1.0
    %v1229 = vrcp.pop %v1228
    %v1230 = vmul.f32 1.0, %v1229
    %v1231 = vadd.f32 %v1081, %v1152
    %v1232 = vxor.u32 %v1231, 2147483648
    %v1233 = vmul.f32 %v1232, 1.442695
    %v1234 = vpow.pop %v1233
    %v1235 = vadd.f32 %v1234, 1.0
    %v1236 = vrcp.pop %v1235
    %v1237 = vmul.f32 1.0, %v1236
    %v1238 = vadd.f32 %v1221, %v343
    %v1239 = vmul.f32 %v1230, %v1238
    %v1240 = vadd.f32 %v1082, %v1239
    %v1241 = vtanh.pop %v1240
    %v1242 = vsub.f32 1.0, %v1237
    %v1243 = vmul.f32 %v1242, %v1241
    %v1244 = vmul.f32 %v1237, %v1074
    %v1245 = vadd.f32 %v1243, %v1244
    %s1246 = scalar_lea.vmem [#allocation7], 32
    %1247 = vst [vmem:[%s1246] sm:$0xff] %v1245
    %s1248 = smul.u32 5, 3
    %s1249 = smul.addr %s1248, 8
    %s1250 = scalar_lea.vmem [#allocation3], %s1249
    %v1251 = vld [vmem:[%s1250] sm:$0xff]
    %v1252 = vld [vmem:[%s1250 + $0x8] sm:$0xff]
    %v1253 = vld [vmem:[%s1250 + $0x10] sm:$0xff]
    %1254 = vmatprep.subr.mxu0 %v391
    %1255 = vmatpush1.msra.mxu0 %v390
    %1256 = vmatprep.subr.mxu0 %v388
    %1257 = vmatpush1.msra.mxu0 %v387
    %1258 = vmatprep.subr.mxu0 %v385
    %1259 = vmatpush1.msra.mxu0 %v384
    %1260 = vmatprep.subr.mxu0 %v382
    %1261 = vmatpush1.msra.mxu0 %v381
    %1262 = vmatprep.subr.mxu0 %v379
    %1263 = vmatpush1.msra.mxu0 %v378
    %1264 = vmatprep.subr.mxu0 %v376
    %1265 = vmatpush1.msra.mxu0 %v375
    %1266 = vmatprep.subr.mxu0 %v373
    %1267 = vmatpush1.msra.mxu0 %v372
    %1268 = vmatprep.subr.mxu0 %v370
    %1269 = vmatpush1.msra.mxu0 %v369
    %1270 = vmatprep.subr.mxu0 %v367
    %1271 = vmatpush1.msra.mxu0 %v366
    %1272 = vmatprep.subr.mxu0 %v364
    %1273 = vmatpush1.msra.mxu0 %v363
    %1274 = vmatprep.subr.mxu0 %v361
    %1275 = vmatpush1.msra.mxu0 %v360
    %1276 = vmatprep.subr.mxu0 %v358
    %1277 = vmatpush1.msra.mxu0 %v357
    %1278 = vmatprep.subr.mxu0 %v355
    %1279 = vmatpush1.msra.mxu0 %v354
    %1280 = vmatprep.subr.mxu0 %v352
    %1281 = vmatpush1.msra.mxu0 %v351
    %1282 = vmatprep.subr.mxu0 %v349
    %1283 = vmatpush1.msra.mxu0 %v348
    %1284 = vmatprep.subr.mxu0 %v346
    %1285 = vmatpush1.msra.mxu0 %v345
    %1286 = vmatprep.subr.mxu0 0.0
    %1287 = vmatpush2.msra.mxu0 0.0
    %1288 = vmatprep.subr.mxu0 0.0
    %1289 = vmatpush2.msra.mxu0 0.0
    %1290 = vmatprep.subr.mxu0 0.0
    %1291 = vmatpush2.msra.mxu0 0.0
    %1292 = vmatprep.subr.mxu0 0.0
    %1293 = vmatpush2.msra.mxu0 0.0
    %1294 = vmatprep.subr.mxu0 0.0
    %1295 = vmatpush2.msra.mxu0 0.0
    %1296 = vmatprep.subr.mxu0 0.0
    %1297 = vmatpush2.msra.mxu0 0.0
    %1298 = vmatprep.subr.mxu0 0.0
    %1299 = vmatpush2.msra.mxu0 0.0
    %1300 = vmatprep.subr.mxu0 0.0
    %1301 = vmatpush2.msra.mxu0 0.0
    %1302 = vmatprep.subr.mxu0 0.0
    %1303 = vmatpush2.msra.mxu0 0.0
    %1304 = vmatprep.subr.mxu0 0.0
    %1305 = vmatpush2.msra.mxu0 0.0
    %1306 = vmatprep.subr.mxu0 0.0
    %1307 = vmatpush2.msra.mxu0 0.0
    %1308 = vmatprep.subr.mxu0 0.0
    %1309 = vmatpush2.msra.mxu0 0.0
    %1310 = vmatprep.subr.mxu0 0.0
    %1311 = vmatpush2.msra.mxu0 0.0
    %1312 = vmatprep.subr.mxu0 0.0
    %1313 = vmatpush2.msra.mxu0 0.0
    %1314 = vmatprep.subr.mxu0 0.0
    %1315 = vmatpush2.msra.mxu0 0.0
    %1316 = vmatprep.subr.mxu0 0.0
    %1317 = vmatpush2.msra.mxu0 0.0
    %1318 = vmatprep.mubr.f32.mxu0 0.0
    %1319 = vmatmul.mubr.f32.gmra.mxu0 %v1245
    %v1320 = vpop.f32.mrf.mxu0
    %v1321 = vadd.f32 0.0, %v1320
    %v1322 = vpop.f32.mrf.mxu0
    %v1323 = vadd.f32 0.0, %v1322
    %1324 = vdwg.mxu0
    %1325 = vmatprep.subr.mxu0 0.0
    %1326 = vmatpush1.msra.mxu0 %v392
    %1327 = vmatprep.subr.mxu0 0.0
    %1328 = vmatpush1.msra.mxu0 %v389
    %1329 = vmatprep.subr.mxu0 0.0
    %1330 = vmatpush1.msra.mxu0 %v386
    %1331 = vmatprep.subr.mxu0 0.0
    %1332 = vmatpush1.msra.mxu0 %v383
    %1333 = vmatprep.subr.mxu0 0.0
    %1334 = vmatpush1.msra.mxu0 %v380
    %1335 = vmatprep.subr.mxu0 0.0
    %1336 = vmatpush1.msra.mxu0 %v377
    %1337 = vmatprep.subr.mxu0 0.0
    %1338 = vmatpush1.msra.mxu0 %v374
    %1339 = vmatprep.subr.mxu0 0.0
    %1340 = vmatpush1.msra.mxu0 %v371
    %1341 = vmatprep.subr.mxu0 0.0
    %1342 = vmatpush1.msra.mxu0 %v368
    %1343 = vmatprep.subr.mxu0 0.0
    %1344 = vmatpush1.msra.mxu0 %v365
    %1345 = vmatprep.subr.mxu0 0.0
    %1346 = vmatpush1.msra.mxu0 %v362
    %1347 = vmatprep.subr.mxu0 0.0
    %1348 = vmatpush1.msra.mxu0 %v359
    %1349 = vmatprep.subr.mxu0 0.0
    %1350 = vmatpush1.msra.mxu0 %v356
    %1351 = vmatprep.subr.mxu0 0.0
    %1352 = vmatpush1.msra.mxu0 %v353
    %1353 = vmatprep.subr.mxu0 0.0
    %1354 = vmatpush1.msra.mxu0 %v350
    %1355 = vmatprep.subr.mxu0 0.0
    %1356 = vmatpush1.msra.mxu0 %v347
    %1357 = vmatprep.subr.mxu0 0.0
    %1358 = vmatpush2.msra.mxu0 0.0
    %1359 = vmatprep.subr.mxu0 0.0
    %1360 = vmatpush2.msra.mxu0 0.0
    %1361 = vmatprep.subr.mxu0 0.0
    %1362 = vmatpush2.msra.mxu0 0.0
    %1363 = vmatprep.subr.mxu0 0.0
    %1364 = vmatpush2.msra.mxu0 0.0
    %1365 = vmatprep.subr.mxu0 0.0
    %1366 = vmatpush2.msra.mxu0 0.0
    %1367 = vmatprep.subr.mxu0 0.0
    %1368 = vmatpush2.msra.mxu0 0.0
    %1369 = vmatprep.subr.mxu0 0.0
    %1370 = vmatpush2.msra.mxu0 0.0
    %1371 = vmatprep.subr.mxu0 0.0
    %1372 = vmatpush2.msra.mxu0 0.0
    %1373 = vmatprep.subr.mxu0 0.0
    %1374 = vmatpush2.msra.mxu0 0.0
    %1375 = vmatprep.subr.mxu0 0.0
    %1376 = vmatpush2.msra.mxu0 0.0
    %1377 = vmatprep.subr.mxu0 0.0
    %1378 = vmatpush2.msra.mxu0 0.0
    %1379 = vmatprep.subr.mxu0 0.0
    %1380 = vmatpush2.msra.mxu0 0.0
    %1381 = vmatprep.subr.mxu0 0.0
    %1382 = vmatpush2.msra.mxu0 0.0
    %1383 = vmatprep.subr.mxu0 0.0
    %1384 = vmatpush2.msra.mxu0 0.0
    %1385 = vmatprep.subr.mxu0 0.0
    %1386 = vmatpush2.msra.mxu0 0.0
    %1387 = vmatprep.subr.mxu0 0.0
    %1388 = vmatpush2.msra.mxu0 0.0
    %1389 = vmatprep.mubr.f32.mxu0 0.0
    %1390 = vmatmul.mubr.f32.gmra.mxu0 %v1245
    %v1391 = vpop.f32.mrf.mxu0
    %v1392 = vadd.f32 0.0, %v1391
    %v1393 = vpop.f32.mrf.mxu0
    %1394 = vdwg.mxu0
    %v1395 = vadd.f32 %v1251, %v1321
    %v1396 = vxor.u32 %v1395, 2147483648
    %v1397 = vmul.f32 %v1396, 1.442695
    %v1398 = vpow.pop %v1397
    %v1399 = vadd.f32 %v1398, 1.0
    %v1400 = vrcp.pop %v1399
    %v1401 = vmul.f32 1.0, %v1400
    %v1402 = vadd.f32 %v1252, %v1323
    %v1403 = vxor.u32 %v1402, 2147483648
    %v1404 = vmul.f32 %v1403, 1.442695
    %v1405 = vpow.pop %v1404
    %v1406 = vadd.f32 %v1405, 1.0
    %v1407 = vrcp.pop %v1406
    %v1408 = vmul.f32 1.0, %v1407
    %v1409 = vadd.f32 %v1392, %v343
    %v1410 = vmul.f32 %v1401, %v1409
    %v1411 = vadd.f32 %v1253, %v1410
    %v1412 = vtanh.pop %v1411
    %v1413 = vsub.f32 1.0, %v1408
    %v1414 = vmul.f32 %v1413, %v1412
    %v1415 = vmul.f32 %v1408, %v1245
    %v1416 = vadd.f32 %v1414, %v1415
    %s1417 = scalar_lea.vmem [#allocation7], 40
    %1418 = vst [vmem:[%s1417] sm:$0xff] %v1416
    %s1419 = smul.u32 6, 3
    %s1420 = smul.addr %s1419, 8
    %s1421 = scalar_lea.vmem [#allocation3], %s1420
    %v1422 = vld [vmem:[%s1421] sm:$0xff]
    %v1423 = vld [vmem:[%s1421 + $0x8] sm:$0xff]
    %v1424 = vld [vmem:[%s1421 + $0x10] sm:$0xff]
    %1425 = vmatprep.subr.mxu0 %v391
    %1426 = vmatpush1.msra.mxu0 %v390
    %1427 = vmatprep.subr.mxu0 %v388
    %1428 = vmatpush1.msra.mxu0 %v387
    %1429 = vmatprep.subr.mxu0 %v385
    %1430 = vmatpush1.msra.mxu0 %v384
    %1431 = vmatprep.subr.mxu0 %v382
    %1432 = vmatpush1.msra.mxu0 %v381
    %1433 = vmatprep.subr.mxu0 %v379
    %1434 = vmatpush1.msra.mxu0 %v378
    %1435 = vmatprep.subr.mxu0 %v376
    %1436 = vmatpush1.msra.mxu0 %v375
    %1437 = vmatprep.subr.mxu0 %v373
    %1438 = vmatpush1.msra.mxu0 %v372
    %1439 = vmatprep.subr.mxu0 %v370
    %1440 = vmatpush1.msra.mxu0 %v369
    %1441 = vmatprep.subr.mxu0 %v367
    %1442 = vmatpush1.msra.mxu0 %v366
    %1443 = vmatprep.subr.mxu0 %v364
    %1444 = vmatpush1.msra.mxu0 %v363
    %1445 = vmatprep.subr.mxu0 %v361
    %1446 = vmatpush1.msra.mxu0 %v360
    %1447 = vmatprep.subr.mxu0 %v358
    %1448 = vmatpush1.msra.mxu0 %v357
    %1449 = vmatprep.subr.mxu0 %v355
    %1450 = vmatpush1.msra.mxu0 %v354
    %1451 = vmatprep.subr.mxu0 %v352
    %1452 = vmatpush1.msra.mxu0 %v351
    %1453 = vmatprep.subr.mxu0 %v349
    %1454 = vmatpush1.msra.mxu0 %v348
    %1455 = vmatprep.subr.mxu0 %v346
    %1456 = vmatpush1.msra.mxu0 %v345
    %1457 = vmatprep.subr.mxu0 0.0
    %1458 = vmatpush2.msra.mxu0 0.0
    %1459 = vmatprep.subr.mxu0 0.0
    %1460 = vmatpush2.msra.mxu0 0.0
    %1461 = vmatprep.subr.mxu0 0.0
    %1462 = vmatpush2.msra.mxu0 0.0
    %1463 = vmatprep.subr.mxu0 0.0
    %1464 = vmatpush2.msra.mxu0 0.0
    %1465 = vmatprep.subr.mxu0 0.0
    %1466 = vmatpush2.msra.mxu0 0.0
    %1467 = vmatprep.subr.mxu0 0.0
    %1468 = vmatpush2.msra.mxu0 0.0
    %1469 = vmatprep.subr.mxu0 0.0
    %1470 = vmatpush2.msra.mxu0 0.0
    %1471 = vmatprep.subr.mxu0 0.0
    %1472 = vmatpush2.msra.mxu0 0.0
    %1473 = vmatprep.subr.mxu0 0.0
    %1474 = vmatpush2.msra.mxu0 0.0
    %1475 = vmatprep.subr.mxu0 0.0
    %1476 = vmatpush2.msra.mxu0 0.0
    %1477 = vmatprep.subr.mxu0 0.0
    %1478 = vmatpush2.msra.mxu0 0.0
    %1479 = vmatprep.subr.mxu0 0.0
    %1480 = vmatpush2.msra.mxu0 0.0
    %1481 = vmatprep.subr.mxu0 0.0
    %1482 = vmatpush2.msra.mxu0 0.0
    %1483 = vmatprep.subr.mxu0 0.0
    %1484 = vmatpush2.msra.mxu0 0.0
    %1485 = vmatprep.subr.mxu0 0.0
    %1486 = vmatpush2.msra.mxu0 0.0
    %1487 = vmatprep.subr.mxu0 0.0
    %1488 = vmatpush2.msra.mxu0 0.0
    %1489 = vmatprep.mubr.f32.mxu0 0.0
    %1490 = vmatmul.mubr.f32.gmra.mxu0 %v1416
    %v1491 = vpop.f32.mrf.mxu0
    %v1492 = vadd.f32 0.0, %v1491
    %v1493 = vpop.f32.mrf.mxu0
    %v1494 = vadd.f32 0.0, %v1493
    %1495 = vdwg.mxu0
    %1496 = vmatprep.subr.mxu0 0.0
    %1497 = vmatpush1.msra.mxu0 %v392
    %1498 = vmatprep.subr.mxu0 0.0
    %1499 = vmatpush1.msra.mxu0 %v389
    %1500 = vmatprep.subr.mxu0 0.0
    %1501 = vmatpush1.msra.mxu0 %v386
    %1502 = vmatprep.subr.mxu0 0.0
    %1503 = vmatpush1.msra.mxu0 %v383
    %1504 = vmatprep.subr.mxu0 0.0
    %1505 = vmatpush1.msra.mxu0 %v380
    %1506 = vmatprep.subr.mxu0 0.0
    %1507 = vmatpush1.msra.mxu0 %v377
    %1508 = vmatprep.subr.mxu0 0.0
    %1509 = vmatpush1.msra.mxu0 %v374
    %1510 = vmatprep.subr.mxu0 0.0
    %1511 = vmatpush1.msra.mxu0 %v371
    %1512 = vmatprep.subr.mxu0 0.0
    %1513 = vmatpush1.msra.mxu0 %v368
    %1514 = vmatprep.subr.mxu0 0.0
    %1515 = vmatpush1.msra.mxu0 %v365
    %1516 = vmatprep.subr.mxu0 0.0
    %1517 = vmatpush1.msra.mxu0 %v362
    %1518 = vmatprep.subr.mxu0 0.0
    %1519 = vmatpush1.msra.mxu0 %v359
    %1520 = vmatprep.subr.mxu0 0.0
    %1521 = vmatpush1.msra.mxu0 %v356
    %1522 = vmatprep.subr.mxu0 0.0
    %1523 = vmatpush1.msra.mxu0 %v353
    %1524 = vmatprep.subr.mxu0 0.0
    %1525 = vmatpush1.msra.mxu0 %v350
    %1526 = vmatprep.subr.mxu0 0.0
    %1527 = vmatpush1.msra.mxu0 %v347
    %1528 = vmatprep.subr.mxu0 0.0
    %1529 = vmatpush2.msra.mxu0 0.0
    %1530 = vmatprep.subr.mxu0 0.0
    %1531 = vmatpush2.msra.mxu0 0.0
    %1532 = vmatprep.subr.mxu0 0.0
    %1533 = vmatpush2.msra.mxu0 0.0
    %1534 = vmatprep.subr.mxu0 0.0
    %1535 = vmatpush2.msra.mxu0 0.0
    %1536 = vmatprep.subr.mxu0 0.0
    %1537 = vmatpush2.msra.mxu0 0.0
    %1538 = vmatprep.subr.mxu0 0.0
    %1539 = vmatpush2.msra.mxu0 0.0
    %1540 = vmatprep.subr.mxu0 0.0
    %1541 = vmatpush2.msra.mxu0 0.0
    %1542 = vmatprep.subr.mxu0 0.0
    %1543 = vmatpush2.msra.mxu0 0.0
    %1544 = vmatprep.subr.mxu0 0.0
    %1545 = vmatpush2.msra.mxu0 0.0
    %1546 = vmatprep.subr.mxu0 0.0
    %1547 = vmatpush2.msra.mxu0 0.0
    %1548 = vmatprep.subr.mxu0 0.0
    %1549 = vmatpush2.msra.mxu0 0.0
    %1550 = vmatprep.subr.mxu0 0.0
    %1551 = vmatpush2.msra.mxu0 0.0
    %1552 = vmatprep.subr.mxu0 0.0
    %1553 = vmatpush2.msra.mxu0 0.0
    %1554 = vmatprep.subr.mxu0 0.0
    %1555 = vmatpush2.msra.mxu0 0.0
    %1556 = vmatprep.subr.mxu0 0.0
    %1557 = vmatpush2.msra.mxu0 0.0
    %1558 = vmatprep.subr.mxu0 0.0
    %1559 = vmatpush2.msra.mxu0 0.0
    %1560 = vmatprep.mubr.f32.mxu0 0.0
    %1561 = vmatmul.mubr.f32.gmra.mxu0 %v1416
    %v1562 = vpop.f32.mrf.mxu0
    %v1563 = vadd.f32 0.0, %v1562
    %v1564 = vpop.f32.mrf.mxu0
    %1565 = vdwg.mxu0
    %v1566 = vadd.f32 %v1422, %v1492
    %v1567 = vxor.u32 %v1566, 2147483648
    %v1568 = vmul.f32 %v1567, 1.442695
    %v1569 = vpow.pop %v1568
    %v1570 = vadd.f32 %v1569, 1.0
    %v1571 = vrcp.pop %v1570
    %v1572 = vmul.f32 1.0, %v1571
    %v1573 = vadd.f32 %v1423, %v1494
    %v1574 = vxor.u32 %v1573, 2147483648
    %v1575 = vmul.f32 %v1574, 1.442695
    %v1576 = vpow.pop %v1575
    %v1577 = vadd.f32 %v1576, 1.0
    %v1578 = vrcp.pop %v1577
    %v1579 = vmul.f32 1.0, %v1578
    %v1580 = vadd.f32 %v1563, %v343
    %v1581 = vmul.f32 %v1572, %v1580
    %v1582 = vadd.f32 %v1424, %v1581
    %v1583 = vtanh.pop %v1582
    %v1584 = vsub.f32 1.0, %v1579
    %v1585 = vmul.f32 %v1584, %v1583
    %v1586 = vmul.f32 %v1579, %v1416
    %v1587 = vadd.f32 %v1585, %v1586
    %s1588 = scalar_lea.vmem [#allocation7], 48
    %1589 = vst [vmem:[%s1588] sm:$0xff] %v1587
    %s1590 = smul.u32 7, 3
    %s1591 = smul.addr %s1590, 8
    %s1592 = scalar_lea.vmem [#allocation3], %s1591
    %v1593 = vld [vmem:[%s1592] sm:$0xff]
    %v1594 = vld [vmem:[%s1592 + $0x8] sm:$0xff]
    %v1595 = vld [vmem:[%s1592 + $0x10] sm:$0xff]
    %1596 = vmatprep.subr.mxu0 %v391
    %1597 = vmatpush1.msra.mxu0 %v390
    %1598 = vmatprep.subr.mxu0 %v388
    %1599 = vmatpush1.msra.mxu0 %v387
    %1600 = vmatprep.subr.mxu0 %v385
    %1601 = vmatpush1.msra.mxu0 %v384
    %1602 = vmatprep.subr.mxu0 %v382
    %1603 = vmatpush1.msra.mxu0 %v381
    %1604 = vmatprep.subr.mxu0 %v379
    %1605 = vmatpush1.msra.mxu0 %v378
    %1606 = vmatprep.subr.mxu0 %v376
    %1607 = vmatpush1.msra.mxu0 %v375
    %1608 = vmatprep.subr.mxu0 %v373
    %1609 = vmatpush1.msra.mxu0 %v372
    %1610 = vmatprep.subr.mxu0 %v370
    %1611 = vmatpush1.msra.mxu0 %v369
    %1612 = vmatprep.subr.mxu0 %v367
    %1613 = vmatpush1.msra.mxu0 %v366
    %1614 = vmatprep.subr.mxu0 %v364
    %1615 = vmatpush1.msra.mxu0 %v363
    %1616 = vmatprep.subr.mxu0 %v361
    %1617 = vmatpush1.msra.mxu0 %v360
    %1618 = vmatprep.subr.mxu0 %v358
    %1619 = vmatpush1.msra.mxu0 %v357
    %1620 = vmatprep.subr.mxu0 %v355
    %1621 = vmatpush1.msra.mxu0 %v354
    %1622 = vmatprep.subr.mxu0 %v352
    %1623 = vmatpush1.msra.mxu0 %v351
    %1624 = vmatprep.subr.mxu0 %v349
    %1625 = vmatpush1.msra.mxu0 %v348
    %1626 = vmatprep.subr.mxu0 %v346
    %1627 = vmatpush1.msra.mxu0 %v345
    %1628 = vmatprep.subr.mxu0 0.0
    %1629 = vmatpush2.msra.mxu0 0.0
    %1630 = vmatprep.subr.mxu0 0.0
    %1631 = vmatpush2.msra.mxu0 0.0
    %1632 = vmatprep.subr.mxu0 0.0
    %1633 = vmatpush2.msra.mxu0 0.0
    %1634 = vmatprep.subr.mxu0 0.0
    %1635 = vmatpush2.msra.mxu0 0.0
    %1636 = vmatprep.subr.mxu0 0.0
    %1637 = vmatpush2.msra.mxu0 0.0
    %1638 = vmatprep.subr.mxu0 0.0
    %1639 = vmatpush2.msra.mxu0 0.0
    %1640 = vmatprep.subr.mxu0 0.0
    %1641 = vmatpush2.msra.mxu0 0.0
    %1642 = vmatprep.subr.mxu0 0.0
    %1643 = vmatpush2.msra.mxu0 0.0
    %1644 = vmatprep.subr.mxu0 0.0
    %1645 = vmatpush2.msra.mxu0 0.0
    %1646 = vmatprep.subr.mxu0 0.0
    %1647 = vmatpush2.msra.mxu0 0.0
    %1648 = vmatprep.subr.mxu0 0.0
    %1649 = vmatpush2.msra.mxu0 0.0
    %1650 = vmatprep.subr.mxu0 0.0
    %1651 = vmatpush2.msra.mxu0 0.0
    %1652 = vmatprep.subr.mxu0 0.0
    %1653 = vmatpush2.msra.mxu0 0.0
    %1654 = vmatprep.subr.mxu0 0.0
    %1655 = vmatpush2.msra.mxu0 0.0
    %1656 = vmatprep.subr.mxu0 0.0
    %1657 = vmatpush2.msra.mxu0 0.0
    %1658 = vmatprep.subr.mxu0 0.0
    %1659 = vmatpush2.msra.mxu0 0.0
    %1660 = vmatprep.mubr.f32.mxu0 0.0
    %1661 = vmatmul.mubr.f32.gmra.mxu0 %v1587
    %v1662 = vpop.f32.mrf.mxu0
    %v1663 = vadd.f32 0.0, %v1662
    %v1664 = vpop.f32.mrf.mxu0
    %v1665 = vadd.f32 0.0, %v1664
    %1666 = vdwg.mxu0
    %1667 = vmatprep.subr.mxu0 0.0
    %1668 = vmatpush1.msra.mxu0 %v392
    %1669 = vmatprep.subr.mxu0 0.0
    %1670 = vmatpush1.msra.mxu0 %v389
    %1671 = vmatprep.subr.mxu0 0.0
    %1672 = vmatpush1.msra.mxu0 %v386
    %1673 = vmatprep.subr.mxu0 0.0
    %1674 = vmatpush1.msra.mxu0 %v383
    %1675 = vmatprep.subr.mxu0 0.0
    %1676 = vmatpush1.msra.mxu0 %v380
    %1677 = vmatprep.subr.mxu0 0.0
    %1678 = vmatpush1.msra.mxu0 %v377
    %1679 = vmatprep.subr.mxu0 0.0
    %1680 = vmatpush1.msra.mxu0 %v374
    %1681 = vmatprep.subr.mxu0 0.0
    %1682 = vmatpush1.msra.mxu0 %v371
    %1683 = vmatprep.subr.mxu0 0.0
    %1684 = vmatpush1.msra.mxu0 %v368
    %1685 = vmatprep.subr.mxu0 0.0
    %1686 = vmatpush1.msra.mxu0 %v365
    %1687 = vmatprep.subr.mxu0 0.0
    %1688 = vmatpush1.msra.mxu0 %v362
    %1689 = vmatprep.subr.mxu0 0.0
    %1690 = vmatpush1.msra.mxu0 %v359
    %1691 = vmatprep.subr.mxu0 0.0
    %1692 = vmatpush1.msra.mxu0 %v356
    %1693 = vmatprep.subr.mxu0 0.0
    %1694 = vmatpush1.msra.mxu0 %v353
    %1695 = vmatprep.subr.mxu0 0.0
    %1696 = vmatpush1.msra.mxu0 %v350
    %1697 = vmatprep.subr.mxu0 0.0
    %1698 = vmatpush1.msra.mxu0 %v347
    %1699 = vmatprep.subr.mxu0 0.0
    %1700 = vmatpush2.msra.mxu0 0.0
    %1701 = vmatprep.subr.mxu0 0.0
    %1702 = vmatpush2.msra.mxu0 0.0
    %1703 = vmatprep.subr.mxu0 0.0
    %1704 = vmatpush2.msra.mxu0 0.0
    %1705 = vmatprep.subr.mxu0 0.0
    %1706 = vmatpush2.msra.mxu0 0.0
    %1707 = vmatprep.subr.mxu0 0.0
    %1708 = vmatpush2.msra.mxu0 0.0
    %1709 = vmatprep.subr.mxu0 0.0
    %1710 = vmatpush2.msra.mxu0 0.0
    %1711 = vmatprep.subr.mxu0 0.0
    %1712 = vmatpush2.msra.mxu0 0.0
    %1713 = vmatprep.subr.mxu0 0.0
    %1714 = vmatpush2.msra.mxu0 0.0
    %1715 = vmatprep.subr.mxu0 0.0
    %1716 = vmatpush2.msra.mxu0 0.0
    %1717 = vmatprep.subr.mxu0 0.0
    %1718 = vmatpush2.msra.mxu0 0.0
    %1719 = vmatprep.subr.mxu0 0.0
    %1720 = vmatpush2.msra.mxu0 0.0
    %1721 = vmatprep.subr.mxu0 0.0
    %1722 = vmatpush2.msra.mxu0 0.0
    %1723 = vmatprep.subr.mxu0 0.0
    %1724 = vmatpush2.msra.mxu0 0.0
    %1725 = vmatprep.subr.mxu0 0.0
    %1726 = vmatpush2.msra.mxu0 0.0
    %1727 = vmatprep.subr.mxu0 0.0
    %1728 = vmatpush2.msra.mxu0 0.0
    %1729 = vmatprep.subr.mxu0 0.0
    %1730 = vmatpush2.msra.mxu0 0.0
    %1731 = vmatprep.mubr.f32.mxu0 0.0
    %1732 = vmatmul.mubr.f32.gmra.mxu0 %v1587
    %v1733 = vpop.f32.mrf.mxu0
    %v1734 = vadd.f32 0.0, %v1733
    %v1735 = vpop.f32.mrf.mxu0
    %1736 = vdwg.mxu0
    %v1737 = vadd.f32 %v1593, %v1663
    %v1738 = vxor.u32 %v1737, 2147483648
    %v1739 = vmul.f32 %v1738, 1.442695
    %v1740 = vpow.pop %v1739
    %v1741 = vadd.f32 %v1740, 1.0
    %v1742 = vrcp.pop %v1741
    %v1743 = vmul.f32 1.0, %v1742
    %v1744 = vadd.f32 %v1594, %v1665
    %v1745 = vxor.u32 %v1744, 2147483648
    %v1746 = vmul.f32 %v1745, 1.442695
    %v1747 = vpow.pop %v1746
    %v1748 = vadd.f32 %v1747, 1.0
    %v1749 = vrcp.pop %v1748
    %v1750 = vmul.f32 1.0, %v1749
    %v1751 = vadd.f32 %v1734, %v343
    %v1752 = vmul.f32 %v1743, %v1751
    %v1753 = vadd.f32 %v1595, %v1752
    %v1754 = vtanh.pop %v1753
    %v1755 = vsub.f32 1.0, %v1750
    %v1756 = vmul.f32 %v1755, %v1754
    %v1757 = vmul.f32 %v1750, %v1587
    %v1758 = vadd.f32 %v1756, %v1757
    %s1759 = scalar_lea.vmem [#allocation7], 56
    %1760 = vst [vmem:[%s1759] sm:$0xff] %v1758
    %1761 = vst [vmem:[#allocation2] sm:$0xff] %v1758
    // Predicated region
    $region30: #{tpu_custom_call.1} parent=1 // pred_check
      _
    $region31: #{tpu_custom_call.1} parent=1 // pred_check_branch
      %1763 = sbr.rel (0) target = $region33
    $region32: #{tpu_custom_call.1} parent=1 // pred_region
      %s1765 = ssub.s32 1024, 1024
      %1766 = vsyncadd [#allocation6], %s1765
      %s1767 = sshll.u32 [#allocation7], 4
      %s1768 = int_to_ptr.vmem [resolvable:$true] %s1767
      %1773 = dma.vmem_to_hbm [thread:$0]  %s1768, 1024, %s5, [#allocation6], 128, 128, 8
    $region33: #{tpu_custom_call.1} parent=1 // pred_fallthru
      _
    // Predicated region
    $region34: #{tpu_custom_call.1} parent=1 // pred_check
      _
    $region35: #{tpu_custom_call.1} parent=1 // pred_check_branch
      %1775 = sbr.rel (0) target = $region37
    $region36: #{tpu_custom_call.1} parent=1 // pred_region
      %1776 = dma.done [#allocation6], 1024
    $region37: #{tpu_custom_call.1} parent=1 // pred_fallthru
      _
    %1777 = vsyncpa [#allocation5], 1
    %1778 = vsyncpa [#allocation6], 1

</llo_original>
